<compile_context>
chip_gen: v7x
topology: tpu7x:2x2x1
jax: 0.10.0
libtpu: 0.0.40
codegen_flags: <defaults>
</compile_context>

<pallas_src>
import jax
import jax.numpy as jnp
from jax import lax
from jax.experimental import pallas as pl
from jax.experimental.pallas import tpu as pltpu

VMEM = pltpu.MemorySpace.VMEM


def _vmem_specs(n):
    return [pl.BlockSpec(memory_space=VMEM) for _ in range(n)]


# ----------------------------------------------------------------------------
# Stage 1: conv1 (deterministic input) + ReLU + 2x2 max-pool, fused
# ----------------------------------------------------------------------------
def _stage1_kernel(pm_ref, w_ref, b_ref, sw_ref, mu_ref, sig_ref):
    """pm_ref: [4, K, N] phase-split transposed im2col patches
         (K = 9 taps on sublanes, N = B*13*13 pooled pixels on lanes;
          phase p <-> pooling-window offset (p//2, p%2), row-major order).
       w_ref: [Cout, K] (torch (cout, cin*kh*kw) layout); b_ref/sw_ref: [Cout, 1].
       Outputs mu_ref / sig_ref: [Cout, N] (lane-dense stores).

       Input layer is deterministic => sigma_in = 0, so
         mu    = W @ patch + b
         sigma = sigma_w * ||patch||^2        (no S @ W^2 matmul)
       followed by the fused ReLU gate and first-max-wins 2x2 pooling with
       sigma gathered at the mu argmax (same semantics as the reference)."""
    Wb = w_ref[...].astype(jnp.bfloat16)
    b = b_ref[...]
    sw = sw_ref[...]
    best_mu = None
    best_sig = None
    for p in range(4):                                   # 2x2 window, row-major
        A = pm_ref[p]                                    # [K, N] f32
        mu_p = jnp.dot(Wb, A.astype(jnp.bfloat16),
                       preferred_element_type=jnp.float32) + b       # [Cout, N]
        ssq = jnp.sum(A * A, axis=0, keepdims=True)                  # [1, N]
        sig_p = sw * ssq                                             # [Cout, N]
        gate = mu_p > 0.0                                # fused VDP ReLU
        mu_p = jnp.where(gate, mu_p, 0.0)
        sig_p = jnp.where(gate, sig_p, 0.0)
        if best_mu is None:
            best_mu, best_sig = mu_p, sig_p
        else:                                            # fused max-pool
            take = mu_p > best_mu
            best_mu = jnp.where(take, mu_p, best_mu)
            best_sig = jnp.where(take, sig_p, best_sig)
    mu_ref[...] = best_mu
    sig_ref[...] = best_sig


def vdp_stage1(x_nchw, w1f, b1, sw1):
    """conv1(1->32,k=3) + relu + maxpool(2,2) in one pallas_call."""
    B, _, H, Wd = x_nchw.shape
    k = 3
    OH, OW = H - k + 1, Wd - k + 1            # 26, 26
    PH, PW = OH // 2, OW // 2                 # 13, 13
    Cout = w1f.shape[0]
    N = B * PH * PW
    x = x_nchw[:, 0, :, :].astype(jnp.float32)            # [B, H, W] (Cin = 1)

    # XLA glue: phase-split, transposed im2col (tap order i*k+j matches the
    # torch weight flatten since Cin == 1).
    phases = []
    for di in (0, 1):
        for dj in (0, 1):
            taps = []
            for i in range(k):
                for j in range(k):
                    t = x[:, i:i + OH, j:j + OW]           # [B, OH, OW]
                    t = t[:, di:2 * PH:2, dj:2 * PW:2]     # [B, PH, PW]
                    taps.append(t.reshape(1, N))
            phases.append(jnp.concatenate(taps, axis=0))    # [k*k, N]
    pm = jnp.stack(phases, axis=0)                           # [4, k*k, N]

    out_shape = (jax.ShapeDtypeStruct((Cout, N), jnp.float32),
                 jax.ShapeDtypeStruct((Cout, N), jnp.float32))
    mu_t, sig_t = pl.pallas_call(
        _stage1_kernel,
        out_shape=out_shape,
        in_specs=_vmem_specs(4),
        out_specs=tuple(_vmem_specs(2)),
    )(pm, w1f, b1.reshape(Cout, 1), sw1.reshape(Cout, 1))

    # [Cout, B*PH*PW] -> NHWC [B, PH, PW, Cout] for the next stage's glue.
    mu = jnp.transpose(mu_t.reshape(Cout, B, PH, PW), (1, 2, 3, 0))
    sig = jnp.transpose(sig_t.reshape(Cout, B, PH, PW), (1, 2, 3, 0))
    return mu, sig


# ----------------------------------------------------------------------------
# Stage 2: conv2 + ReLU + 2x2 max-pool, fused
# ----------------------------------------------------------------------------
def _stage2_kernel(pm_ref, ps_ref, w_ref, b_ref, sw_ref, mu_ref, sig_ref):
    """pm_ref / ps_ref: [4, N, K] phase-split im2col of (mu, sigma)
         (N = B*4*4 pooled pixels, K = Cin*kh*kw = 800 lane-dense columns).
       w_ref: [K, Cout]; b_ref / sw_ref: [1, Cout].
         mu    = A @ W + b
         sigma = S @ (W*W) + sigma_w * rowsum(S + A*A)
       W*W is formed in-kernel on the VPU.  ReLU + 2x2 pooling fused as in
       stage 1."""
    W = w_ref[...]
    Wb = W.astype(jnp.bfloat16)
    W2b = (W * W).astype(jnp.bfloat16)
    b = b_ref[...]
    sw = sw_ref[...]
    best_mu = None
    best_sig = None
    for p in range(4):
        A = pm_ref[p]                                    # [N, K]
        S = ps_ref[p]                                    # [N, K]
        mu_p = jnp.dot(A.astype(jnp.bfloat16), Wb,
                       preferred_element_type=jnp.float32) + b
        rs = jnp.sum(S + A * A, axis=-1, keepdims=True)              # [N, 1]
        sig_p = jnp.dot(S.astype(jnp.bfloat16), W2b,
                        preferred_element_type=jnp.float32) + rs * sw
        gate = mu_p > 0.0
        mu_p = jnp.where(gate, mu_p, 0.0)
        sig_p = jnp.where(gate, sig_p, 0.0)
        if best_mu is None:
            best_mu, best_sig = mu_p, sig_p
        else:
            take = mu_p > best_mu
            best_mu = jnp.where(take, mu_p, best_mu)
            best_sig = jnp.where(take, sig_p, best_sig)
    mu_ref[...] = best_mu
    sig_ref[...] = best_sig


def vdp_stage2(mu_img, sig_img, w2f, b2, sw2):
    """conv2(32->64,k=5) + relu + maxpool(2,2) in one pallas_call."""
    B, H, Wd, Cin = mu_img.shape                         # [B, 13, 13, 32]
    k = 5
    OH, OW = H - k + 1, Wd - k + 1                       # 9, 9
    PH, PW = OH // 2, OW // 2                            # 4, 4 (torch floor)
    K = Cin * k * k                                      # 800
    Cout = w2f.shape[1]
    N = B * PH * PW

    def phase_patches(img):
        # im2col columns in torch (cin, kh, kw) flatten order, then split the
        # conv output grid into the four 2x2-pool phases (row-major order).
        cols = [img[:, i:i + OH, j:j + OW, :] for i in range(k) for j in range(k)]
        full = jnp.stack(cols, axis=-1).reshape(B, OH, OW, K)        # [B,9,9,K]
        ph = [full[:, di:2 * PH:2, dj:2 * PW:2, :].reshape(N, K)
              for di in (0, 1) for dj in (0, 1)]
        return jnp.stack(ph, axis=0)                                  # [4, N, K]

    pm = phase_patches(mu_img)
    ps = phase_patches(sig_img)
    out_shape = (jax.ShapeDtypeStruct((N, Cout), jnp.float32),
                 jax.ShapeDtypeStruct((N, Cout), jnp.float32))
    mu, sig = pl.pallas_call(
        _stage2_kernel,
        out_shape=out_shape,
        in_specs=_vmem_specs(5),
        out_specs=tuple(_vmem_specs(2)),
    )(pm, ps, w2f, b2.reshape(1, Cout), sw2.reshape(1, Cout))
    return mu, sig, (PH, PW, Cout)           # rows of mu/sig are (b, ph, pw)


# ----------------------------------------------------------------------------
# Stage 3: fully-connected (full output covariance) + softmax, fused
# ----------------------------------------------------------------------------
def _stage3_kernel(mu_ref, sig_ref, w_ref, b_ref, sw_ref, p_ref, cov_ref):
    """mu_out    = softmax(W mu_in + bias)
       Sigma_fc  = W diag(sigma_in) W^T + diag(sigma_w*(sum(sigma_in)+||mu_in||^2))
       Sigma_out = J Sigma_fc J^T,  J = diag(p) - p p^T
       A single copy of W [O, Nin] is passed; the x @ W^T contraction is
       expressed through dot_general dimension numbers (no W.T input)."""
    mu = mu_ref[...]                     # [B, Nin]
    s = sig_ref[...]                     # [B, Nin]
    W = w_ref[...]                       # [O, Nin]  (torch layout)
    b = b_ref[...]                       # [1, O]
    sw = sw_ref[...]                     # [1, O]
    B = mu.shape[0]
    O = W.shape[0]
    Wb = W.astype(jnp.bfloat16)
    dn_t = (((1,), (1,)), ((), ()))      # contract the Nin axes (x @ W^T)

    z = lax.dot_general(mu.astype(jnp.bfloat16), Wb, dn_t,
                        preferred_element_type=jnp.float32) + b      # [B, O]
    m = jnp.max(z, axis=-1, keepdims=True)
    e = jnp.exp(z - m)
    p = e * pl.reciprocal(jnp.sum(e, axis=-1, keepdims=True), approx=True)
    p_ref[...] = p

    eye = (lax.broadcasted_iota(jnp.int32, (O, O), 0) ==
           lax.broadcasted_iota(jnp.int32, (O, O), 1)).astype(jnp.float32)
    # B is tiny & static; the loop keeps every matmul 2-D.
    # TODO(synk): for large batches replace with a batched dot_general over B.
    for bi in range(B):
        s_b = s[bi]                                                  # [Nin]
        mu_b = mu[bi]
        scale = jnp.sum(s_b) + jnp.sum(mu_b * mu_b)                  # scalar
        cov = lax.dot_general((W * s_b[None, :]).astype(jnp.bfloat16), Wb,
                              dn_t, preferred_element_type=jnp.float32)  # [O,O]
        sigma_fc = cov + eye * (sw * scale)
        p_b = p[bi]
        pr = p_b[None, :]
        J = eye * pr - p_b[:, None] * pr                             # [O, O]
        inner = jnp.dot(sigma_fc, J, preferred_element_type=jnp.float32)
        cov_ref[bi] = jnp.dot(J, inner, preferred_element_type=jnp.float32)


def vdp_stage3(mu2, sig2, wfc, bfc, swfc, B, spatial):
    PH, PW, C = spatial

    def to_flat(a):                      # torch NCHW .view(B, -1) flatten order
        img = a.reshape(B, PH, PW, C)
        return jnp.transpose(img, (0, 3, 1, 2)).reshape(B, C * PH * PW)

    mu_flat = to_flat(mu2)
    sig_flat = to_flat(sig2)
    O = wfc.shape[0]
    out_shape = (jax.ShapeDtypeStruct((B, O), jnp.float32),
                 jax.ShapeDtypeStruct((B, O, O), jnp.float32))
    return pl.pallas_call(
        _stage3_kernel,
        out_shape=out_shape,
        in_specs=_vmem_specs(5),
        out_specs=tuple(_vmem_specs(2)),
    )(mu_flat, sig_flat, wfc, bfc.reshape(1, O), swfc.reshape(1, O))


# ----------------------------------------------------------------------------
# Parameters and full forward pass (mirrors Net.forward)
# ----------------------------------------------------------------------------
def init_params(key):
    # Deterministic synthetic parameters (shapes from the module's __init__);
    # weight variances are per-output-filter/unit, kept positive via softplus.
    keys = jax.random.split(key, 9)
    w1 = jax.random.normal(keys[0], (32, 1, 3, 3), jnp.float32) * 0.30
    b1 = jax.random.normal(keys[1], (32,), jnp.float32) * 0.05
    rho1 = -4.0 + 0.1 * jax.random.normal(keys[2], (32,), jnp.float32)
    w2 = jax.random.normal(keys[3], (64, 32, 5, 5), jnp.float32) * 0.05
    b2 = jax.random.normal(keys[4], (64,), jnp.float32) * 0.05
    rho2 = -4.0 + 0.1 * jax.random.normal(keys[5], (64,), jnp.float32)
    wfc = jax.random.normal(keys[6], (10, 1024), jnp.float32) * 0.03
    bfc = jax.random.normal(keys[7], (10,), jnp.float32) * 0.05
    rhofc = -4.0 + 0.1 * jax.random.normal(keys[8], (10,), jnp.float32)
    return {
        "w1": w1.reshape(32, -1),           # [Cout, K]   (kernel LHS directly)
        "b1": b1, "sw1": jax.nn.softplus(rho1),
        "w2": w2.reshape(64, -1).T,         # [K, Cout]   torch (cin,kh,kw) order
        "b2": b2, "sw2": jax.nn.softplus(rho2),
        "wfc": wfc,                         # [O, Nin]    torch layout
        "bfc": bfc, "swfc": jax.nn.softplus(rhofc),
    }


def vdp_net_forward(x_nchw, params):
    B = x_nchw.shape[0]
    mu, sig = vdp_stage1(x_nchw, params["w1"], params["b1"], params["sw1"])
    mu, sig, spatial = vdp_stage2(mu, sig, params["w2"], params["b2"],
                                  params["sw2"])
    mu, sig = vdp_stage3(mu, sig, params["wfc"], params["bfc"],
                         params["swfc"], B, spatial)
    # TODO(synk): batch_loss / nll_gaussian / kl_loss_term are training-time
    # host-side losses (matrix inverse/det of 10x10), not part of forward.
    return mu, sig


if __name__ == "__main__":
    key = jax.random.PRNGKey(0)
    pkey, xkey = jax.random.split(key)
    params = init_params(pkey)
    # MNIST-shaped input (28x28 is required so that flatten -> 1024 = 64*4*4).
    x = jax.random.normal(xkey, (2, 1, 28, 28), jnp.float32)

    fwd = jax.jit(vdp_net_forward)
    mu, sigma = fwd(x, params)
    jax.block_until_ready((mu, sigma))

    assert mu.shape == (2, 10) and mu.dtype == jnp.float32
    assert sigma.shape == (2, 10, 10) and sigma.dtype == jnp.float32
    assert bool(jnp.all(jnp.isfinite(mu))) and bool(jnp.all(jnp.isfinite(sigma)))
    # softmax means sum to ~1 (approx EUP reciprocal + bf16 MXU inputs).
    assert bool(jnp.allclose(jnp.sum(mu, axis=-1), 1.0, atol=5e-3))
    print("KERNEL_OK")
</pallas_src>

<mosaic_0001>
module attributes {stable_mosaic.version = 11 : i64} {
  func.func @_stage1_kernel(%arg0: memref<4x9x338xf32, #tpu.memory_space<vmem>>, %arg1: memref<32x9xf32, #tpu.memory_space<vmem>>, %arg2: memref<32x1xf32, #tpu.memory_space<vmem>>, %arg3: memref<32x1xf32, #tpu.memory_space<vmem>>, %arg4: memref<32x338xf32, #tpu.memory_space<vmem>>, %arg5: memref<32x338xf32, #tpu.memory_space<vmem>>) attributes {dimension_semantics = [], scalar_prefetch = 0 : i64, scratch_operands = 0 : i64, tpu.core_type = #tpu.core_type<tc>} {
    %c0 = arith.constant 0 : index
    %c0_0 = arith.constant 0 : index
    %0 = vector.load %arg1[%c0, %c0_0] : memref<32x9xf32, #tpu.memory_space<vmem>>, vector<32x9xf32>
    %1 = arith.truncf %0 : vector<32x9xf32> to vector<32x9xbf16>
    %c0_1 = arith.constant 0 : index
    %c0_2 = arith.constant 0 : index
    %2 = vector.load %arg2[%c0_1, %c0_2] : memref<32x1xf32, #tpu.memory_space<vmem>>, vector<32x1xf32>
    %c0_3 = arith.constant 0 : index
    %c0_4 = arith.constant 0 : index
    %3 = vector.load %arg3[%c0_3, %c0_4] : memref<32x1xf32, #tpu.memory_space<vmem>>, vector<32x1xf32>
    %c0_5 = arith.constant 0 : index
    %c0_6 = arith.constant 0 : index
    %c0_7 = arith.constant 0 : index
    %4 = vector.load %arg0[%c0_5, %c0_6, %c0_7] : memref<4x9x338xf32, #tpu.memory_space<vmem>>, vector<1x9x338xf32>
    %5 = vector.shape_cast %4 : vector<1x9x338xf32> to vector<9x338xf32>
    %6 = arith.truncf %5 : vector<9x338xf32> to vector<9x338xbf16>
    %cst = arith.constant dense<0.000000e+00> : vector<32x338xf32>
    %7 = tpu.matmul %1, %6, %cst {dimension_numbers = #tpu.dot_dimension_numbers<[1], [0], [0], [1], [0, 0, 1, 1], [], []>} : vector<32x9xbf16>, vector<9x338xbf16>, vector<32x338xf32> -> vector<32x338xf32>
    %8 = vector.broadcast %2 : vector<32x1xf32> to vector<32x338xf32>
    %9 = arith.addf %7, %8 : vector<32x338xf32>
    %10 = arith.mulf %5, %5 : vector<9x338xf32>
    %cst_8 = arith.constant dense<0.000000e+00> : vector<338xf32>
    %11 = vector.multi_reduction <add>, %10, %cst_8 [0] : vector<9x338xf32> to vector<338xf32>
    %12 = vector.shape_cast %11 : vector<338xf32> to vector<1x338xf32>
    %13 = vector.broadcast %3 : vector<32x1xf32> to vector<32x338xf32>
    %14 = vector.broadcast %12 : vector<1x338xf32> to vector<32x338xf32>
    %15 = arith.mulf %13, %14 : vector<32x338xf32>
    %cst_9 = arith.constant 0.000000e+00 : f32
    %16 = vector.broadcast %cst_9 : f32 to vector<32x338xf32>
    %17 = arith.cmpf ogt, %9, %16 : vector<32x338xf32>
    %cst_10 = arith.constant 0.000000e+00 : f32
    %18 = vector.broadcast %cst_10 : f32 to vector<32x338xf32>
    %19 = arith.select %17, %9, %18 : vector<32x338xi1>, vector<32x338xf32>
    %cst_11 = arith.constant 0.000000e+00 : f32
    %20 = vector.broadcast %cst_11 : f32 to vector<32x338xf32>
    %21 = arith.select %17, %15, %20 : vector<32x338xi1>, vector<32x338xf32>
    %c1 = arith.constant 1 : index
    %c0_12 = arith.constant 0 : index
    %c0_13 = arith.constant 0 : index
    %22 = vector.load %arg0[%c1, %c0_12, %c0_13] : memref<4x9x338xf32, #tpu.memory_space<vmem>>, vector<1x9x338xf32>
    %23 = vector.shape_cast %22 : vector<1x9x338xf32> to vector<9x338xf32>
    %24 = arith.truncf %23 : vector<9x338xf32> to vector<9x338xbf16>
    %cst_14 = arith.constant dense<0.000000e+00> : vector<32x338xf32>
    %25 = tpu.matmul %1, %24, %cst_14 {dimension_numbers = #tpu.dot_dimension_numbers<[1], [0], [0], [1], [0, 0, 1, 1], [], []>} : vector<32x9xbf16>, vector<9x338xbf16>, vector<32x338xf32> -> vector<32x338xf32>
    %26 = vector.broadcast %2 : vector<32x1xf32> to vector<32x338xf32>
    %27 = arith.addf %25, %26 : vector<32x338xf32>
    %28 = arith.mulf %23, %23 : vector<9x338xf32>
    %cst_15 = arith.constant dense<0.000000e+00> : vector<338xf32>
    %29 = vector.multi_reduction <add>, %28, %cst_15 [0] : vector<9x338xf32> to vector<338xf32>
    %30 = vector.shape_cast %29 : vector<338xf32> to vector<1x338xf32>
    %31 = vector.broadcast %3 : vector<32x1xf32> to vector<32x338xf32>
    %32 = vector.broadcast %30 : vector<1x338xf32> to vector<32x338xf32>
    %33 = arith.mulf %31, %32 : vector<32x338xf32>
    %cst_16 = arith.constant 0.000000e+00 : f32
    %34 = vector.broadcast %cst_16 : f32 to vector<32x338xf32>
    %35 = arith.cmpf ogt, %27, %34 : vector<32x338xf32>
    %cst_17 = arith.constant 0.000000e+00 : f32
    %36 = vector.broadcast %cst_17 : f32 to vector<32x338xf32>
    %37 = arith.select %35, %27, %36 : vector<32x338xi1>, vector<32x338xf32>
    %cst_18 = arith.constant 0.000000e+00 : f32
    %38 = vector.broadcast %cst_18 : f32 to vector<32x338xf32>
    %39 = arith.select %35, %33, %38 : vector<32x338xi1>, vector<32x338xf32>
    %40 = arith.cmpf ogt, %37, %19 : vector<32x338xf32>
    %41 = arith.select %40, %37, %19 : vector<32x338xi1>, vector<32x338xf32>
    %42 = arith.select %40, %39, %21 : vector<32x338xi1>, vector<32x338xf32>
    %c2 = arith.constant 2 : index
    %c0_19 = arith.constant 0 : index
    %c0_20 = arith.constant 0 : index
    %43 = vector.load %arg0[%c2, %c0_19, %c0_20] : memref<4x9x338xf32, #tpu.memory_space<vmem>>, vector<1x9x338xf32>
    %44 = vector.shape_cast %43 : vector<1x9x338xf32> to vector<9x338xf32>
    %45 = arith.truncf %44 : vector<9x338xf32> to vector<9x338xbf16>
    %cst_21 = arith.constant dense<0.000000e+00> : vector<32x338xf32>
    %46 = tpu.matmul %1, %45, %cst_21 {dimension_numbers = #tpu.dot_dimension_numbers<[1], [0], [0], [1], [0, 0, 1, 1], [], []>} : vector<32x9xbf16>, vector<9x338xbf16>, vector<32x338xf32> -> vector<32x338xf32>
    %47 = vector.broadcast %2 : vector<32x1xf32> to vector<32x338xf32>
    %48 = arith.addf %46, %47 : vector<32x338xf32>
    %49 = arith.mulf %44, %44 : vector<9x338xf32>
    %cst_22 = arith.constant dense<0.000000e+00> : vector<338xf32>
    %50 = vector.multi_reduction <add>, %49, %cst_22 [0] : vector<9x338xf32> to vector<338xf32>
    %51 = vector.shape_cast %50 : vector<338xf32> to vector<1x338xf32>
    %52 = vector.broadcast %3 : vector<32x1xf32> to vector<32x338xf32>
    %53 = vector.broadcast %51 : vector<1x338xf32> to vector<32x338xf32>
    %54 = arith.mulf %52, %53 : vector<32x338xf32>
    %cst_23 = arith.constant 0.000000e+00 : f32
    %55 = vector.broadcast %cst_23 : f32 to vector<32x338xf32>
    %56 = arith.cmpf ogt, %48, %55 : vector<32x338xf32>
    %cst_24 = arith.constant 0.000000e+00 : f32
    %57 = vector.broadcast %cst_24 : f32 to vector<32x338xf32>
    %58 = arith.select %56, %48, %57 : vector<32x338xi1>, vector<32x338xf32>
    %cst_25 = arith.constant 0.000000e+00 : f32
    %59 = vector.broadcast %cst_25 : f32 to vector<32x338xf32>
    %60 = arith.select %56, %54, %59 : vector<32x338xi1>, vector<32x338xf32>
    %61 = arith.cmpf ogt, %58, %41 : vector<32x338xf32>
    %62 = arith.select %61, %58, %41 : vector<32x338xi1>, vector<32x338xf32>
    %63 = arith.select %61, %60, %42 : vector<32x338xi1>, vector<32x338xf32>
    %c3 = arith.constant 3 : index
    %c0_26 = arith.constant 0 : index
    %c0_27 = arith.constant 0 : index
    %64 = vector.load %arg0[%c3, %c0_26, %c0_27] : memref<4x9x338xf32, #tpu.memory_space<vmem>>, vector<1x9x338xf32>
    %65 = vector.shape_cast %64 : vector<1x9x338xf32> to vector<9x338xf32>
    %66 = arith.truncf %65 : vector<9x338xf32> to vector<9x338xbf16>
    %cst_28 = arith.constant dense<0.000000e+00> : vector<32x338xf32>
    %67 = tpu.matmul %1, %66, %cst_28 {dimension_numbers = #tpu.dot_dimension_numbers<[1], [0], [0], [1], [0, 0, 1, 1], [], []>} : vector<32x9xbf16>, vector<9x338xbf16>, vector<32x338xf32> -> vector<32x338xf32>
    %68 = vector.broadcast %2 : vector<32x1xf32> to vector<32x338xf32>
    %69 = arith.addf %67, %68 : vector<32x338xf32>
    %70 = arith.mulf %65, %65 : vector<9x338xf32>
    %cst_29 = arith.constant dense<0.000000e+00> : vector<338xf32>
    %71 = vector.multi_reduction <add>, %70, %cst_29 [0] : vector<9x338xf32> to vector<338xf32>
    %72 = vector.shape_cast %71 : vector<338xf32> to vector<1x338xf32>
    %73 = vector.broadcast %3 : vector<32x1xf32> to vector<32x338xf32>
    %74 = vector.broadcast %72 : vector<1x338xf32> to vector<32x338xf32>
    %75 = arith.mulf %73, %74 : vector<32x338xf32>
    %cst_30 = arith.constant 0.000000e+00 : f32
    %76 = vector.broadcast %cst_30 : f32 to vector<32x338xf32>
    %77 = arith.cmpf ogt, %69, %76 : vector<32x338xf32>
    %cst_31 = arith.constant 0.000000e+00 : f32
    %78 = vector.broadcast %cst_31 : f32 to vector<32x338xf32>
    %79 = arith.select %77, %69, %78 : vector<32x338xi1>, vector<32x338xf32>
    %cst_32 = arith.constant 0.000000e+00 : f32
    %80 = vector.broadcast %cst_32 : f32 to vector<32x338xf32>
    %81 = arith.select %77, %75, %80 : vector<32x338xi1>, vector<32x338xf32>
    %82 = arith.cmpf ogt, %79, %62 : vector<32x338xf32>
    %83 = arith.select %82, %79, %62 : vector<32x338xi1>, vector<32x338xf32>
    %84 = arith.select %82, %81, %63 : vector<32x338xi1>, vector<32x338xf32>
    %c0_33 = arith.constant 0 : index
    %c0_34 = arith.constant 0 : index
    %85 = vector.load %arg4[%c0_33, %c0_34] : memref<32x338xf32, #tpu.memory_space<vmem>>, vector<32x338xf32>
    tpu.vector_store %arg4[%c0_33, %c0_34], %83 {strides = array<i32>} : memref<32x338xf32, #tpu.memory_space<vmem>>, vector<32x338xf32>,
    %c0_35 = arith.constant 0 : index
    %c0_36 = arith.constant 0 : index
    %86 = vector.load %arg5[%c0_35, %c0_36] : memref<32x338xf32, #tpu.memory_space<vmem>>, vector<32x338xf32>
    tpu.vector_store %arg5[%c0_35, %c0_36], %84 {strides = array<i32>} : memref<32x338xf32, #tpu.memory_space<vmem>>, vector<32x338xf32>,
    return
  }
}

module attributes {stable_mosaic.version = 11 : i64} {
  func.func @_stage2_kernel(%arg0: memref<4x32x800xf32, #tpu.memory_space<vmem>>, %arg1: memref<4x32x800xf32, #tpu.memory_space<vmem>>, %arg2: memref<800x64xf32, #tpu.memory_space<vmem>>, %arg3: memref<1x64xf32, #tpu.memory_space<vmem>>, %arg4: memref<1x64xf32, #tpu.memory_space<vmem>>, %arg5: memref<32x64xf32, #tpu.memory_space<vmem>>, %arg6: memref<32x64xf32, #tpu.memory_space<vmem>>) attributes {dimension_semantics = [], scalar_prefetch = 0 : i64, scratch_operands = 0 : i64, tpu.core_type = #tpu.core_type<tc>} {
    %c0 = arith.constant 0 : index
    %c0_0 = arith.constant 0 : index
    %0 = vector.load %arg2[%c0, %c0_0] : memref<800x64xf32, #tpu.memory_space<vmem>>, vector<800x64xf32>
    %1 = arith.truncf %0 : vector<800x64xf32> to vector<800x64xbf16>
    %2 = arith.mulf %0, %0 : vector<800x64xf32>
    %3 = arith.truncf %2 : vector<800x64xf32> to vector<800x64xbf16>
    %c0_1 = arith.constant 0 : index
    %c0_2 = arith.constant 0 : index
    %4 = vector.load %arg3[%c0_1, %c0_2] : memref<1x64xf32, #tpu.memory_space<vmem>>, vector<1x64xf32>
    %c0_3 = arith.constant 0 : index
    %c0_4 = arith.constant 0 : index
    %5 = vector.load %arg4[%c0_3, %c0_4] : memref<1x64xf32, #tpu.memory_space<vmem>>, vector<1x64xf32>
    %c0_5 = arith.constant 0 : index
    %c0_6 = arith.constant 0 : index
    %c0_7 = arith.constant 0 : index
    %6 = vector.load %arg0[%c0_5, %c0_6, %c0_7] : memref<4x32x800xf32, #tpu.memory_space<vmem>>, vector<1x32x800xf32>
    %7 = vector.shape_cast %6 : vector<1x32x800xf32> to vector<32x800xf32>
    %c0_8 = arith.constant 0 : index
    %c0_9 = arith.constant 0 : index
    %c0_10 = arith.constant 0 : index
    %8 = vector.load %arg1[%c0_8, %c0_9, %c0_10] : memref<4x32x800xf32, #tpu.memory_space<vmem>>, vector<1x32x800xf32>
    %9 = vector.shape_cast %8 : vector<1x32x800xf32> to vector<32x800xf32>
    %10 = arith.truncf %7 : vector<32x800xf32> to vector<32x800xbf16>
    %cst = arith.constant dense<0.000000e+00> : vector<32x64xf32>
    %11 = tpu.matmul %10, %1, %cst {dimension_numbers = #tpu.dot_dimension_numbers<[1], [0], [0], [1], [0, 0, 1, 1], [], []>} : vector<32x800xbf16>, vector<800x64xbf16>, vector<32x64xf32> -> vector<32x64xf32>
    %12 = vector.broadcast %4 : vector<1x64xf32> to vector<32x64xf32>
    %13 = arith.addf %11, %12 : vector<32x64xf32>
    %14 = arith.mulf %7, %7 : vector<32x800xf32>
    %15 = arith.addf %9, %14 : vector<32x800xf32>
    %cst_11 = arith.constant dense<0.000000e+00> : vector<32xf32>
    %16 = vector.multi_reduction <add>, %15, %cst_11 [1] : vector<32x800xf32> to vector<32xf32>
    %17 = vector.shape_cast %16 : vector<32xf32> to vector<32x1xf32>
    %18 = arith.truncf %9 : vector<32x800xf32> to vector<32x800xbf16>
    %cst_12 = arith.constant dense<0.000000e+00> : vector<32x64xf32>
    %19 = tpu.matmul %18, %3, %cst_12 {dimension_numbers = #tpu.dot_dimension_numbers<[1], [0], [0], [1], [0, 0, 1, 1], [], []>} : vector<32x800xbf16>, vector<800x64xbf16>, vector<32x64xf32> -> vector<32x64xf32>
    %20 = vector.broadcast %17 : vector<32x1xf32> to vector<32x64xf32>
    %21 = vector.broadcast %5 : vector<1x64xf32> to vector<32x64xf32>
    %22 = arith.mulf %20, %21 : vector<32x64xf32>
    %23 = arith.addf %19, %22 : vector<32x64xf32>
    %cst_13 = arith.constant 0.000000e+00 : f32
    %24 = vector.broadcast %cst_13 : f32 to vector<32x64xf32>
    %25 = arith.cmpf ogt, %13, %24 : vector<32x64xf32>
    %cst_14 = arith.constant 0.000000e+00 : f32
    %26 = vector.broadcast %cst_14 : f32 to vector<32x64xf32>
    %27 = arith.select %25, %13, %26 : vector<32x64xi1>, vector<32x64xf32>
    %cst_15 = arith.constant 0.000000e+00 : f32
    %28 = vector.broadcast %cst_15 : f32 to vector<32x64xf32>
    %29 = arith.select %25, %23, %28 : vector<32x64xi1>, vector<32x64xf32>
    %c1 = arith.constant 1 : index
    %c0_16 = arith.constant 0 : index
    %c0_17 = arith.constant 0 : index
    %30 = vector.load %arg0[%c1, %c0_16, %c0_17] : memref<4x32x800xf32, #tpu.memory_space<vmem>>, vector<1x32x800xf32>
    %31 = vector.shape_cast %30 : vector<1x32x800xf32> to vector<32x800xf32>
    %c1_18 = arith.constant 1 : index
    %c0_19 = arith.constant 0 : index
    %c0_20 = arith.constant 0 : index
    %32 = vector.load %arg1[%c1_18, %c0_19, %c0_20] : memref<4x32x800xf32, #tpu.memory_space<vmem>>, vector<1x32x800xf32>
    %33 = vector.shape_cast %32 : vector<1x32x800xf32> to vector<32x800xf32>
    %34 = arith.truncf %31 : vector<32x800xf32> to vector<32x800xbf16>
    %cst_21 = arith.constant dense<0.000000e+00> : vector<32x64xf32>
    %35 = tpu.matmul %34, %1, %cst_21 {dimension_numbers = #tpu.dot_dimension_numbers<[1], [0], [0], [1], [0, 0, 1, 1], [], []>} : vector<32x800xbf16>, vector<800x64xbf16>, vector<32x64xf32> -> vector<32x64xf32>
    %36 = vector.broadcast %4 : vector<1x64xf32> to vector<32x64xf32>
    %37 = arith.addf %35, %36 : vector<32x64xf32>
    %38 = arith.mulf %31, %31 : vector<32x800xf32>
    %39 = arith.addf %33, %38 : vector<32x800xf32>
    %cst_22 = arith.constant dense<0.000000e+00> : vector<32xf32>
    %40 = vector.multi_reduction <add>, %39, %cst_22 [1] : vector<32x800xf32> to vector<32xf32>
    %41 = vector.shape_cast %40 : vector<32xf32> to vector<32x1xf32>
    %42 = arith.truncf %33 : vector<32x800xf32> to vector<32x800xbf16>
    %cst_23 = arith.constant dense<0.000000e+00> : vector<32x64xf32>
    %43 = tpu.matmul %42, %3, %cst_23 {dimension_numbers = #tpu.dot_dimension_numbers<[1], [0], [0], [1], [0, 0, 1, 1], [], []>} : vector<32x800xbf16>, vector<800x64xbf16>, vector<32x64xf32> -> vector<32x64xf32>
    %44 = vector.broadcast %41 : vector<32x1xf32> to vector<32x64xf32>
    %45 = vector.broadcast %5 : vector<1x64xf32> to vector<32x64xf32>
    %46 = arith.mulf %44, %45 : vector<32x64xf32>
    %47 = arith.addf %43, %46 : vector<32x64xf32>
    %cst_24 = arith.constant 0.000000e+00 : f32
    %48 = vector.broadcast %cst_24 : f32 to vector<32x64xf32>
    %49 = arith.cmpf ogt, %37, %48 : vector<32x64xf32>
    %cst_25 = arith.constant 0.000000e+00 : f32
    %50 = vector.broadcast %cst_25 : f32 to vector<32x64xf32>
    %51 = arith.select %49, %37, %50 : vector<32x64xi1>, vector<32x64xf32>
    %cst_26 = arith.constant 0.000000e+00 : f32
    %52 = vector.broadcast %cst_26 : f32 to vector<32x64xf32>
    %53 = arith.select %49, %47, %52 : vector<32x64xi1>, vector<32x64xf32>
    %54 = arith.cmpf ogt, %51, %27 : vector<32x64xf32>
    %55 = arith.select %54, %51, %27 : vector<32x64xi1>, vector<32x64xf32>
    %56 = arith.select %54, %53, %29 : vector<32x64xi1>, vector<32x64xf32>
    %c2 = arith.constant 2 : index
    %c0_27 = arith.constant 0 : index
    %c0_28 = arith.constant 0 : index
    %57 = vector.load %arg0[%c2, %c0_27, %c0_28] : memref<4x32x800xf32, #tpu.memory_space<vmem>>, vector<1x32x800xf32>
    %58 = vector.shape_cast %57 : vector<1x32x800xf32> to vector<32x800xf32>
    %c2_29 = arith.constant 2 : index
    %c0_30 = arith.constant 0 : index
    %c0_31 = arith.constant 0 : index
    %59 = vector.load %arg1[%c2_29, %c0_30, %c0_31] : memref<4x32x800xf32, #tpu.memory_space<vmem>>, vector<1x32x800xf32>
    %60 = vector.shape_cast %59 : vector<1x32x800xf32> to vector<32x800xf32>
    %61 = arith.truncf %58 : vector<32x800xf32> to vector<32x800xbf16>
    %cst_32 = arith.constant dense<0.000000e+00> : vector<32x64xf32>
    %62 = tpu.matmul %61, %1, %cst_32 {dimension_numbers = #tpu.dot_dimension_numbers<[1], [0], [0], [1], [0, 0, 1, 1], [], []>} : vector<32x800xbf16>, vector<800x64xbf16>, vector<32x64xf32> -> vector<32x64xf32>
    %63 = vector.broadcast %4 : vector<1x64xf32> to vector<32x64xf32>
    %64 = arith.addf %62, %63 : vector<32x64xf32>
    %65 = arith.mulf %58, %58 : vector<32x800xf32>
    %66 = arith.addf %60, %65 : vector<32x800xf32>
    %cst_33 = arith.constant dense<0.000000e+00> : vector<32xf32>
    %67 = vector.multi_reduction <add>, %66, %cst_33 [1] : vector<32x800xf32> to vector<32xf32>
    %68 = vector.shape_cast %67 : vector<32xf32> to vector<32x1xf32>
    %69 = arith.truncf %60 : vector<32x800xf32> to vector<32x800xbf16>
    %cst_34 = arith.constant dense<0.000000e+00> : vector<32x64xf32>
    %70 = tpu.matmul %69, %3, %cst_34 {dimension_numbers = #tpu.dot_dimension_numbers<[1], [0], [0], [1], [0, 0, 1, 1], [], []>} : vector<32x800xbf16>, vector<800x64xbf16>, vector<32x64xf32> -> vector<32x64xf32>
    %71 = vector.broadcast %68 : vector<32x1xf32> to vector<32x64xf32>
    %72 = vector.broadcast %5 : vector<1x64xf32> to vector<32x64xf32>
    %73 = arith.mulf %71, %72 : vector<32x64xf32>
    %74 = arith.addf %70, %73 : vector<32x64xf32>
    %cst_35 = arith.constant 0.000000e+00 : f32
    %75 = vector.broadcast %cst_35 : f32 to vector<32x64xf32>
    %76 = arith.cmpf ogt, %64, %75 : vector<32x64xf32>
    %cst_36 = arith.constant 0.000000e+00 : f32
    %77 = vector.broadcast %cst_36 : f32 to vector<32x64xf32>
    %78 = arith.select %76, %64, %77 : vector<32x64xi1>, vector<32x64xf32>
    %cst_37 = arith.constant 0.000000e+00 : f32
    %79 = vector.broadcast %cst_37 : f32 to vector<32x64xf32>
    %80 = arith.select %76, %74, %79 : vector<32x64xi1>, vector<32x64xf32>
    %81 = arith.cmpf ogt, %78, %55 : vector<32x64xf32>
    %82 = arith.select %81, %78, %55 : vector<32x64xi1>, vector<32x64xf32>
    %83 = arith.select %81, %80, %56 : vector<32x64xi1>, vector<32x64xf32>
    %c3 = arith.constant 3 : index
    %c0_38 = arith.constant 0 : index
    %c0_39 = arith.constant 0 : index
    %84 = vector.load %arg0[%c3, %c0_38, %c0_39] : memref<4x32x800xf32, #tpu.memory_space<vmem>>, vector<1x32x800xf32>
    %85 = vector.shape_cast %84 : vector<1x32x800xf32> to vector<32x800xf32>
    %c3_40 = arith.constant 3 : index
    %c0_41 = arith.constant 0 : index
    %c0_42 = arith.constant 0 : index
    %86 = vector.load %arg1[%c3_40, %c0_41, %c0_42] : memref<4x32x800xf32, #tpu.memory_space<vmem>>, vector<1x32x800xf32>
    %87 = vector.shape_cast %86 : vector<1x32x800xf32> to vector<32x800xf32>
    %88 = arith.truncf %85 : vector<32x800xf32> to vector<32x800xbf16>
    %cst_43 = arith.constant dense<0.000000e+00> : vector<32x64xf32>
    %89 = tpu.matmul %88, %1, %cst_43 {dimension_numbers = #tpu.dot_dimension_numbers<[1], [0], [0], [1], [0, 0, 1, 1], [], []>} : vector<32x800xbf16>, vector<800x64xbf16>, vector<32x64xf32> -> vector<32x64xf32>
    %90 = vector.broadcast %4 : vector<1x64xf32> to vector<32x64xf32>
    %91 = arith.addf %89, %90 : vector<32x64xf32>
    %92 = arith.mulf %85, %85 : vector<32x800xf32>
    %93 = arith.addf %87, %92 : vector<32x800xf32>
    %cst_44 = arith.constant dense<0.000000e+00> : vector<32xf32>
    %94 = vector.multi_reduction <add>, %93, %cst_44 [1] : vector<32x800xf32> to vector<32xf32>
    %95 = vector.shape_cast %94 : vector<32xf32> to vector<32x1xf32>
    %96 = arith.truncf %87 : vector<32x800xf32> to vector<32x800xbf16>
    %cst_45 = arith.constant dense<0.000000e+00> : vector<32x64xf32>
    %97 = tpu.matmul %96, %3, %cst_45 {dimension_numbers = #tpu.dot_dimension_numbers<[1], [0], [0], [1], [0, 0, 1, 1], [], []>} : vector<32x800xbf16>, vector<800x64xbf16>, vector<32x64xf32> -> vector<32x64xf32>
    %98 = vector.broadcast %95 : vector<32x1xf32> to vector<32x64xf32>
    %99 = vector.broadcast %5 : vector<1x64xf32> to vector<32x64xf32>
    %100 = arith.mulf %98, %99 : vector<32x64xf32>
    %101 = arith.addf %97, %100 : vector<32x64xf32>
    %cst_46 = arith.constant 0.000000e+00 : f32
    %102 = vector.broadcast %cst_46 : f32 to vector<32x64xf32>
    %103 = arith.cmpf ogt, %91, %102 : vector<32x64xf32>
    %cst_47 = arith.constant 0.000000e+00 : f32
    %104 = vector.broadcast %cst_47 : f32 to vector<32x64xf32>
    %105 = arith.select %103, %91, %104 : vector<32x64xi1>, vector<32x64xf32>
    %cst_48 = arith.constant 0.000000e+00 : f32
    %106 = vector.broadcast %cst_48 : f32 to vector<32x64xf32>
    %107 = arith.select %103, %101, %106 : vector<32x64xi1>, vector<32x64xf32>
    %108 = arith.cmpf ogt, %105, %82 : vector<32x64xf32>
    %109 = arith.select %108, %105, %82 : vector<32x64xi1>, vector<32x64xf32>
    %110 = arith.select %108, %107, %83 : vector<32x64xi1>, vector<32x64xf32>
    %c0_49 = arith.constant 0 : index
    %c0_50 = arith.constant 0 : index
    %111 = vector.load %arg5[%c0_49, %c0_50] : memref<32x64xf32, #tpu.memory_space<vmem>>, vector<32x64xf32>
    tpu.vector_store %arg5[%c0_49, %c0_50], %109 {strides = array<i32>} : memref<32x64xf32, #tpu.memory_space<vmem>>, vector<32x64xf32>,
    %c0_51 = arith.constant 0 : index
    %c0_52 = arith.constant 0 : index
    %112 = vector.load %arg6[%c0_51, %c0_52] : memref<32x64xf32, #tpu.memory_space<vmem>>, vector<32x64xf32>
    tpu.vector_store %arg6[%c0_51, %c0_52], %110 {strides = array<i32>} : memref<32x64xf32, #tpu.memory_space<vmem>>, vector<32x64xf32>,
    return
  }
}

module attributes {stable_mosaic.version = 11 : i64} {
  func.func @_stage3_kernel(%arg0: memref<2x1024xf32, #tpu.memory_space<vmem>>, %arg1: memref<2x1024xf32, #tpu.memory_space<vmem>>, %arg2: memref<10x1024xf32, #tpu.memory_space<vmem>>, %arg3: memref<1x10xf32, #tpu.memory_space<vmem>>, %arg4: memref<1x10xf32, #tpu.memory_space<vmem>>, %arg5: memref<2x10xf32, #tpu.memory_space<vmem>>, %arg6: memref<2x10x10xf32, #tpu.memory_space<vmem>>) attributes {dimension_semantics = [], scalar_prefetch = 0 : i64, scratch_operands = 0 : i64, tpu.core_type = #tpu.core_type<tc>} {
    %c0 = arith.constant 0 : index
    %c0_0 = arith.constant 0 : index
    %0 = vector.load %arg0[%c0, %c0_0] : memref<2x1024xf32, #tpu.memory_space<vmem>>, vector<2x1024xf32>
    %c0_1 = arith.constant 0 : index
    %c0_2 = arith.constant 0 : index
    %1 = vector.load %arg1[%c0_1, %c0_2] : memref<2x1024xf32, #tpu.memory_space<vmem>>, vector<2x1024xf32>
    %c0_3 = arith.constant 0 : index
    %c0_4 = arith.constant 0 : index
    %2 = vector.load %arg2[%c0_3, %c0_4] : memref<10x1024xf32, #tpu.memory_space<vmem>>, vector<10x1024xf32>
    %c0_5 = arith.constant 0 : index
    %c0_6 = arith.constant 0 : index
    %3 = vector.load %arg3[%c0_5, %c0_6] : memref<1x10xf32, #tpu.memory_space<vmem>>, vector<1x10xf32>
    %c0_7 = arith.constant 0 : index
    %c0_8 = arith.constant 0 : index
    %4 = vector.load %arg4[%c0_7, %c0_8] : memref<1x10xf32, #tpu.memory_space<vmem>>, vector<1x10xf32>
    %5 = arith.truncf %2 : vector<10x1024xf32> to vector<10x1024xbf16>
    %6 = arith.truncf %0 : vector<2x1024xf32> to vector<2x1024xbf16>
    %cst = arith.constant dense<0.000000e+00> : vector<2x10xf32>
    %7 = tpu.matmul %6, %5, %cst {dimension_numbers = #tpu.dot_dimension_numbers<[1], [1], [0], [0], [0, 0, 1, 0], [], []>} : vector<2x1024xbf16>, vector<10x1024xbf16>, vector<2x10xf32> -> vector<2x10xf32>
    %8 = vector.broadcast %3 : vector<1x10xf32> to vector<2x10xf32>
    %9 = arith.addf %7, %8 : vector<2x10xf32>
    %cst_9 = arith.constant dense<0xFF800000> : vector<2xf32>
    %10 = vector.multi_reduction <maximumf>, %9, %cst_9 [1] : vector<2x10xf32> to vector<2xf32>
    %11 = vector.shape_cast %10 : vector<2xf32> to vector<2x1xf32>
    %12 = vector.broadcast %11 : vector<2x1xf32> to vector<2x10xf32>
    %13 = arith.subf %9, %12 : vector<2x10xf32>
    %14 = math.exp %13 : vector<2x10xf32>
    %cst_10 = arith.constant dense<0.000000e+00> : vector<2xf32>
    %15 = vector.multi_reduction <add>, %14, %cst_10 [1] : vector<2x10xf32> to vector<2xf32>
    %16 = vector.shape_cast %15 : vector<2xf32> to vector<2x1xf32>
    %17 = tpu.reciprocal %16 {approx = true} : vector<2x1xf32> -> vector<2x1xf32>
    %18 = vector.broadcast %17 : vector<2x1xf32> to vector<2x10xf32>
    %19 = arith.mulf %14, %18 : vector<2x10xf32>
    %c0_11 = arith.constant 0 : index
    %c0_12 = arith.constant 0 : index
    %20 = vector.load %arg5[%c0_11, %c0_12] : memref<2x10xf32, #tpu.memory_space<vmem>>, vector<2x10xf32>
    tpu.vector_store %arg5[%c0_11, %c0_12], %19 {strides = array<i32>} : memref<2x10xf32, #tpu.memory_space<vmem>>, vector<2x10xf32>,
    %21 = tpu.iota {dimensions = array<i32: 0>} : vector<10x10xi32>
    %22 = tpu.iota {dimensions = array<i32: 1>} : vector<10x10xi32>
    %23 = arith.cmpi eq, %21, %22 : vector<10x10xi32>
    %24 = arith.extui %23 : vector<10x10xi1> to vector<10x10xi32>
    %25 = arith.sitofp %24 : vector<10x10xi32> to vector<10x10xf32>
    %26 = vector.extract_strided_slice %1 {offsets = [0, 0], sizes = [1, 1024], strides = [1, 1]} : vector<2x1024xf32> to vector<1x1024xf32>
    %27 = vector.shape_cast %26 : vector<1x1024xf32> to vector<1024xf32>
    %28 = vector.extract_strided_slice %0 {offsets = [0, 0], sizes = [1, 1024], strides = [1, 1]} : vector<2x1024xf32> to vector<1x1024xf32>
    %29 = vector.shape_cast %28 : vector<1x1024xf32> to vector<1024xf32>
    %30 = vector.shape_cast %27 : vector<1024xf32> to vector<1x1024xf32>
    %cst_13 = arith.constant dense<0.000000e+00> : vector<1xf32>
    %31 = vector.multi_reduction <add>, %30, %cst_13 [1] : vector<1x1024xf32> to vector<1xf32>
    %32 = vector.shape_cast %31 : vector<1xf32> to vector<1x1xf32>
    %33 = vector.extract %32[0, 0] : f32 from vector<1x1xf32>
    %34 = arith.mulf %29, %29 : vector<1024xf32>
    %35 = vector.shape_cast %34 : vector<1024xf32> to vector<1x1024xf32>
    %cst_14 = arith.constant dense<0.000000e+00> : vector<1xf32>
    %36 = vector.multi_reduction <add>, %35, %cst_14 [1] : vector<1x1024xf32> to vector<1xf32>
    %37 = vector.shape_cast %36 : vector<1xf32> to vector<1x1xf32>
    %38 = vector.extract %37[0, 0] : f32 from vector<1x1xf32>
    %39 = arith.addf %33, %38 : f32
    %40 = vector.shape_cast %27 : vector<1024xf32> to vector<1x1024xf32>
    %41 = vector.broadcast %40 : vector<1x1024xf32> to vector<10x1024xf32>
    %42 = arith.mulf %2, %41 : vector<10x1024xf32>
    %43 = arith.truncf %42 : vector<10x1024xf32> to vector<10x1024xbf16>
    %cst_15 = arith.constant dense<0.000000e+00> : vector<10x10xf32>
    %44 = tpu.matmul %43, %5, %cst_15 {dimension_numbers = #tpu.dot_dimension_numbers<[1], [1], [0], [0], [0, 0, 1, 0], [], []>} : vector<10x1024xbf16>, vector<10x1024xbf16>, vector<10x10xf32> -> vector<10x10xf32>
    %45 = vector.broadcast %39 : f32 to vector<1x10xf32>
    %46 = arith.mulf %4, %45 : vector<1x10xf32>
    %47 = vector.broadcast %46 : vector<1x10xf32> to vector<10x10xf32>
    %48 = arith.mulf %25, %47 : vector<10x10xf32>
    %49 = arith.addf %44, %48 : vector<10x10xf32>
    %50 = vector.extract_strided_slice %19 {offsets = [0, 0], sizes = [1, 10], strides = [1, 1]} : vector<2x10xf32> to vector<1x10xf32>
    %51 = vector.shape_cast %50 : vector<1x10xf32> to vector<10xf32>
    %52 = vector.shape_cast %51 : vector<10xf32> to vector<1x10xf32>
    %53 = vector.broadcast %52 : vector<1x10xf32> to vector<10x10xf32>
    %54 = arith.mulf %25, %53 : vector<10x10xf32>
    %55 = vector.shape_cast %51 : vector<10xf32> to vector<10x1xf32>
    %56 = vector.broadcast %55 : vector<10x1xf32> to vector<10x10xf32>
    %57 = vector.broadcast %52 : vector<1x10xf32> to vector<10x10xf32>
    %58 = arith.mulf %56, %57 : vector<10x10xf32>
    %59 = arith.subf %54, %58 : vector<10x10xf32>
    %cst_16 = arith.constant dense<0.000000e+00> : vector<10x10xf32>
    %60 = tpu.matmul %49, %59, %cst_16 {dimension_numbers = #tpu.dot_dimension_numbers<[1], [0], [0], [1], [0, 0, 1, 1], [], []>} : vector<10x10xf32>, vector<10x10xf32>, vector<10x10xf32> -> vector<10x10xf32>
    %cst_17 = arith.constant dense<0.000000e+00> : vector<10x10xf32>
    %61 = tpu.matmul %59, %60, %cst_17 {dimension_numbers = #tpu.dot_dimension_numbers<[1], [0], [0], [1], [0, 0, 1, 1], [], []>} : vector<10x10xf32>, vector<10x10xf32>, vector<10x10xf32> -> vector<10x10xf32>
    %c0_18 = arith.constant 0 : index
    %c0_19 = arith.constant 0 : index
    %c0_20 = arith.constant 0 : index
    %62 = vector.load %arg6[%c0_18, %c0_19, %c0_20] : memref<2x10x10xf32, #tpu.memory_space<vmem>>, vector<1x10x10xf32>
    %63 = vector.shape_cast %62 : vector<1x10x10xf32> to vector<10x10xf32>
    %64 = vector.shape_cast %61 : vector<10x10xf32> to vector<1x10x10xf32>
    tpu.vector_store %arg6[%c0_18, %c0_19, %c0_20], %64 {strides = array<i32>} : memref<2x10x10xf32, #tpu.memory_space<vmem>>, vector<1x10x10xf32>,
    %65 = vector.extract_strided_slice %1 {offsets = [1, 0], sizes = [1, 1024], strides = [1, 1]} : vector<2x1024xf32> to vector<1x1024xf32>
    %66 = vector.shape_cast %65 : vector<1x1024xf32> to vector<1024xf32>
    %67 = vector.extract_strided_slice %0 {offsets = [1, 0], sizes = [1, 1024], strides = [1, 1]} : vector<2x1024xf32> to vector<1x1024xf32>
    %68 = vector.shape_cast %67 : vector<1x1024xf32> to vector<1024xf32>
    %69 = vector.shape_cast %66 : vector<1024xf32> to vector<1x1024xf32>
    %cst_21 = arith.constant dense<0.000000e+00> : vector<1xf32>
    %70 = vector.multi_reduction <add>, %69, %cst_21 [1] : vector<1x1024xf32> to vector<1xf32>
    %71 = vector.shape_cast %70 : vector<1xf32> to vector<1x1xf32>
    %72 = vector.extract %71[0, 0] : f32 from vector<1x1xf32>
    %73 = arith.mulf %68, %68 : vector<1024xf32>
    %74 = vector.shape_cast %73 : vector<1024xf32> to vector<1x1024xf32>
    %cst_22 = arith.constant dense<0.000000e+00> : vector<1xf32>
    %75 = vector.multi_reduction <add>, %74, %cst_22 [1] : vector<1x1024xf32> to vector<1xf32>
    %76 = vector.shape_cast %75 : vector<1xf32> to vector<1x1xf32>
    %77 = vector.extract %76[0, 0] : f32 from vector<1x1xf32>
    %78 = arith.addf %72, %77 : f32
    %79 = vector.shape_cast %66 : vector<1024xf32> to vector<1x1024xf32>
    %80 = vector.broadcast %79 : vector<1x1024xf32> to vector<10x1024xf32>
    %81 = arith.mulf %2, %80 : vector<10x1024xf32>
    %82 = arith.truncf %81 : vector<10x1024xf32> to vector<10x1024xbf16>
    %cst_23 = arith.constant dense<0.000000e+00> : vector<10x10xf32>
    %83 = tpu.matmul %82, %5, %cst_23 {dimension_numbers = #tpu.dot_dimension_numbers<[1], [1], [0], [0], [0, 0, 1, 0], [], []>} : vector<10x1024xbf16>, vector<10x1024xbf16>, vector<10x10xf32> -> vector<10x10xf32>
    %84 = vector.broadcast %78 : f32 to vector<1x10xf32>
    %85 = arith.mulf %4, %84 : vector<1x10xf32>
    %86 = vector.broadcast %85 : vector<1x10xf32> to vector<10x10xf32>
    %87 = arith.mulf %25, %86 : vector<10x10xf32>
    %88 = arith.addf %83, %87 : vector<10x10xf32>
    %89 = vector.extract_strided_slice %19 {offsets = [1, 0], sizes = [1, 10], strides = [1, 1]} : vector<2x10xf32> to vector<1x10xf32>
    %90 = vector.shape_cast %89 : vector<1x10xf32> to vector<10xf32>
    %91 = vector.shape_cast %90 : vector<10xf32> to vector<1x10xf32>
    %92 = vector.broadcast %91 : vector<1x10xf32> to vector<10x10xf32>
    %93 = arith.mulf %25, %92 : vector<10x10xf32>
    %94 = vector.shape_cast %90 : vector<10xf32> to vector<10x1xf32>
    %95 = vector.broadcast %94 : vector<10x1xf32> to vector<10x10xf32>
    %96 = vector.broadcast %91 : vector<1x10xf32> to vector<10x10xf32>
    %97 = arith.mulf %95, %96 : vector<10x10xf32>
    %98 = arith.subf %93, %97 : vector<10x10xf32>
    %cst_24 = arith.constant dense<0.000000e+00> : vector<10x10xf32>
    %99 = tpu.matmul %88, %98, %cst_24 {dimension_numbers = #tpu.dot_dimension_numbers<[1], [0], [0], [1], [0, 0, 1, 1], [], []>} : vector<10x10xf32>, vector<10x10xf32>, vector<10x10xf32> -> vector<10x10xf32>
    %cst_25 = arith.constant dense<0.000000e+00> : vector<10x10xf32>
    %100 = tpu.matmul %98, %99, %cst_25 {dimension_numbers = #tpu.dot_dimension_numbers<[1], [0], [0], [1], [0, 0, 1, 1], [], []>} : vector<10x10xf32>, vector<10x10xf32>, vector<10x10xf32> -> vector<10x10xf32>
    %c1 = arith.constant 1 : index
    %c0_26 = arith.constant 0 : index
    %c0_27 = arith.constant 0 : index
    %101 = vector.load %arg6[%c1, %c0_26, %c0_27] : memref<2x10x10xf32, #tpu.memory_space<vmem>>, vector<1x10x10xf32>
    %102 = vector.shape_cast %101 : vector<1x10x10xf32> to vector<10x10xf32>
    %103 = vector.shape_cast %100 : vector<10x10xf32> to vector<1x10x10xf32>
    tpu.vector_store %arg6[%c1, %c0_26, %c0_27], %103 {strides = array<i32>} : memref<2x10x10xf32, #tpu.memory_space<vmem>>, vector<1x10x10xf32>,
    return
  }
}

</mosaic_0001>

<llo_original>
// kernel: vdp_net_forward.3
$region0: #{vdp_net_forward.3}
  #allocation0 [shape = 'u32[]', space=smem, size = 0x4, offset = 0x4, fixed_abs, tag = 'smem constant byte address 0x4 - core index']
  #allocation1 [shape = 'u32[144,128]{1,0:T(1,128)}', space=vmem, size = 0x12000, scoped, tag = 'internal scratch']
  %s0 = inlined_call_operand.vmem [shape: f32[4,9,338], index: 0, kind: input, shape index: {}]
  %s1 = inlined_call_operand.vmem [shape: f32[32,9], index: 1, kind: input, shape index: {}]
  %s2 = inlined_call_operand.vmem [shape: f32[32,1], index: 2, kind: input, shape index: {}]
  %s3 = inlined_call_operand.vmem [shape: f32[32,1], index: 3, kind: input, shape index: {}]
  %s4 = inlined_call_operand.vmem [shape: f32[32,338], index: 4, kind: output, shape index: {0}]
  %s5 = inlined_call_operand.vmem [shape: f32[32,338], index: 5, kind: output, shape index: {1}]
  %6 = xla_tuple %s4, %s5
  %s7 = sld [smem:[#allocation0]]
  $region34: #{vdp_net_forward.3} parent=0
    _
  %s9 = ssub.s32 1, %s7
  %s10 = scalar_select 0, %s9, %s7
  // Predicated region
  $region2: #{vdp_net_forward.3} parent=0 // pred_check
    _
  $region3: #{vdp_net_forward.3} parent=0 // pred_check_branch
    %12 = sbr.rel (0) target = $region5
  $region4: #{vdp_net_forward.3} parent=0 // pred_region
    _
  $region5: #{vdp_net_forward.3} parent=0 // pred_fallthru
    _
  // Predicated region
  $region6: #{vdp_net_forward.3} parent=0 // pred_check
    _
  $region7: #{vdp_net_forward.3} parent=0 // pred_check_branch
    %14 = sbr.rel (0) target = $region9
  $region8: #{vdp_net_forward.3} parent=0 // pred_region
    _
  $region9: #{vdp_net_forward.3} parent=0 // pred_fallthru
    _
  // Predicated region
  $region10: #{vdp_net_forward.3} parent=0 // pred_check
    _
  $region11: #{vdp_net_forward.3} parent=0 // pred_check_branch
    %16 = sbr.rel (0) target = $region13
  $region12: #{vdp_net_forward.3} parent=0 // pred_region
    _
  $region13: #{vdp_net_forward.3} parent=0 // pred_fallthru
    _
  // Predicated region
  $region14: #{vdp_net_forward.3} parent=0 // pred_check
    _
  $region15: #{vdp_net_forward.3} parent=0 // pred_check_branch
    %18 = sbr.rel (0) target = $region17
  $region16: #{vdp_net_forward.3} parent=0 // pred_region
    _
  $region17: #{vdp_net_forward.3} parent=0 // pred_fallthru
    _
  %v20 = vld [vmem:[%s1] sm:$0xff]
  %v21 = vld [vmem:[%s1 + $0x8] sm:$0xff]
  %v22 = vld [vmem:[%s1 + $0x10] sm:$0xff]
  %v23 = vld [vmem:[%s1 + $0x18] sm:$0xff]
  %v24 = vpack.c.bf16 %v21, %v20
  %v25 = vpack.c.bf16 %v23, %v22
  %v26 = vld [vmem:[%s2] sm:$0xff]
  %v27 = vld [vmem:[%s2 + $0x8] sm:$0xff]
  %v28 = vld [vmem:[%s2 + $0x10] sm:$0xff]
  %v29 = vld [vmem:[%s2 + $0x18] sm:$0xff]
  %v30 = vld [vmem:[%s3] sm:$0xff]
  %v31 = vld [vmem:[%s3 + $0x8] sm:$0xff]
  %v32 = vld [vmem:[%s3 + $0x10] sm:$0xff]
  %v33 = vld [vmem:[%s3 + $0x18] sm:$0xff]
  %v34 = vld [vmem:[%s0] sm:$0xff]
  %v35 = vld [vmem:[%s0 + $0x8] sm:$0xff]
  %v36 = vld [vmem:[%s0 + $0x10] sm:$0xff]
  %v37 = vld [vmem:[%s0 + $0x18] sm:$0x1]
  %v38 = vld [vmem:[%s0 + $0x20] sm:$0x1]
  %v39 = vld [vmem:[%s0 + $0x28] sm:$0x1]
  %v40 = vpack.c.bf16 %v37, %v34
  %v41 = vpack.c.bf16 %v38, %v35
  %v42 = vpack.c.bf16 %v39, %v36
  %44 = vset.pattern.permute.xlu0 0
  %45 = vperm.xlu0 %44, %v26
  %v46 = vpop.permute.xlu0 %45
  %49 = vset.pattern.permute.xlu0 0
  %50 = vperm.xlu0 %49, %v27
  %v51 = vpop.permute.xlu0 %50
  %54 = vset.pattern.permute.xlu0 0
  %55 = vperm.xlu0 %54, %v28
  %v56 = vpop.permute.xlu0 %55
  %59 = vset.pattern.permute.xlu0 0
  %60 = vperm.xlu0 %59, %v29
  %v61 = vpop.permute.xlu0 %60
  %vm63 = vcmask 72704
  %v65 = vsel %vm63, %v24, 0
  %v68 = vsel %vm63, %v25, 0
  %vm70 = vcmask 1043456
  %vm71 = vcmask 1044480
  %v72 = vsel %vm70, 4294967295, 65535
  %v73 = vsel %vm71, %v72, 0
  %v75 = vand.u32 %v40, %v73
  %v78 = vand.u32 %v41, %v73
  %v81 = vand.u32 %v42, %v73
  %83 = vmatprep.subr.bf16.mxu0 %v78
  %84 = vmatpush1.bf16.msra.mxu0 %v75
  %85 = vmatprep.subr.bf16.mxu0 0
  %86 = vmatpush1.bf16.msra.mxu0 0
  %87 = vmatprep.subr.bf16.mxu0 0
  %88 = vmatpush1.bf16.msra.mxu0 0
  %89 = vmatprep.subr.bf16.mxu0 0
  %90 = vmatpush1.bf16.msra.mxu0 0
  %91 = vmatprep.subr.bf16.mxu0 0
  %92 = vmatpush1.bf16.msra.mxu0 0
  %93 = vmatprep.subr.bf16.mxu0 0
  %94 = vmatpush1.bf16.msra.mxu0 0
  %95 = vmatprep.subr.bf16.mxu0 0
  %96 = vmatpush1.bf16.msra.mxu0 0
  %97 = vmatprep.subr.bf16.mxu0 0
  %98 = vmatpush1.bf16.msra.mxu0 0
  %99 = vmatprep.subr.bf16.mxu0 0
  %100 = vmatpush1.bf16.msra.mxu0 0
  %101 = vmatprep.subr.bf16.mxu0 0
  %102 = vmatpush1.bf16.msra.mxu0 0
  %103 = vmatprep.subr.bf16.mxu0 0
  %104 = vmatpush1.bf16.msra.mxu0 0
  %105 = vmatprep.subr.bf16.mxu0 0
  %106 = vmatpush1.bf16.msra.mxu0 0
  %107 = vmatprep.subr.bf16.mxu0 0
  %108 = vmatpush1.bf16.msra.mxu0 0
  %109 = vmatprep.subr.bf16.mxu0 0
  %110 = vmatpush1.bf16.msra.mxu0 0
  %111 = vmatprep.subr.bf16.mxu0 0
  %112 = vmatpush1.bf16.msra.mxu0 0
  %113 = vmatprep.subr.bf16.mxu0 0
  %114 = vmatpush1.bf16.msra.mxu0 0
  %115 = vmatprep.mubr.bf16.mxu0 0
  %116 = vmatmul.mubr.bf16.gmra.mrb[0].mxu0 %v65
  %v117 = vpop.f32.mrb[0].mxu0
  %v118 = vadd.f32 %v46, %v117
  %v119 = vpop.f32.mrb[0].mxu0
  %v120 = vadd.f32 %v46, %v119
  %v121 = vpop.f32.mrb[0].mxu0
  %v122 = vadd.f32 %v51, %v121
  %v123 = vpop.f32.mrb[0].mxu0
  %v124 = vadd.f32 %v51, %v123
  %125 = vmatprep.mubr.bf16.mxu0 0
  %126 = vmatmul.mubr.bf16.gmra.mrb[0].mxu0 %v68
  %v127 = vpop.f32.mrb[0].mxu0
  %v128 = vadd.f32 %v56, %v127
  %v129 = vpop.f32.mrb[0].mxu0
  %v130 = vadd.f32 %v56, %v129
  %v131 = vpop.f32.mrb[0].mxu0
  %v132 = vadd.f32 %v61, %v131
  %v133 = vpop.f32.mrb[0].mxu0
  %v134 = vadd.f32 %v61, %v133
  %135 = vdwg.mxu0
  %136 = vmatprep.subr.bf16.mxu0 0
  %137 = vmatpush1.bf16.msra.mxu0 %v81
  %138 = vmatprep.subr.bf16.mxu0 0
  %139 = vmatpush1.bf16.msra.mxu0 0
  %140 = vmatprep.subr.bf16.mxu0 0
  %141 = vmatpush1.bf16.msra.mxu0 0
  %142 = vmatprep.subr.bf16.mxu0 0
  %143 = vmatpush1.bf16.msra.mxu0 0
  %144 = vmatprep.subr.bf16.mxu0 0
  %145 = vmatpush1.bf16.msra.mxu0 0
  %146 = vmatprep.subr.bf16.mxu0 0
  %147 = vmatpush1.bf16.msra.mxu0 0
  %148 = vmatprep.subr.bf16.mxu0 0
  %149 = vmatpush1.bf16.msra.mxu0 0
  %150 = vmatprep.subr.bf16.mxu0 0
  %151 = vmatpush1.bf16.msra.mxu0 0
  %152 = vmatprep.subr.bf16.mxu0 0
  %153 = vmatpush1.bf16.msra.mxu0 0
  %154 = vmatprep.subr.bf16.mxu0 0
  %155 = vmatpush1.bf16.msra.mxu0 0
  %156 = vmatprep.subr.bf16.mxu0 0
  %157 = vmatpush1.bf16.msra.mxu0 0
  %158 = vmatprep.subr.bf16.mxu0 0
  %159 = vmatpush1.bf16.msra.mxu0 0
  %160 = vmatprep.subr.bf16.mxu0 0
  %161 = vmatpush1.bf16.msra.mxu0 0
  %162 = vmatprep.subr.bf16.mxu0 0
  %163 = vmatpush1.bf16.msra.mxu0 0
  %164 = vmatprep.subr.bf16.mxu0 0
  %165 = vmatpush1.bf16.msra.mxu0 0
  %166 = vmatprep.subr.bf16.mxu0 0
  %167 = vmatpush1.bf16.msra.mxu0 0
  %168 = vmatprep.mubr.bf16.mxu0 0
  %169 = vmatmul.mubr.bf16.gmra.mrb[0].mxu0 %v65
  %v170 = vpop.f32.mrb[0].mxu0
  %v171 = vadd.f32 %v46, %v170
  %v172 = vpop.f32.mrb[0].mxu0
  %v173 = vpop.f32.mrb[0].mxu0
  %v174 = vadd.f32 %v51, %v173
  %v175 = vpop.f32.mrb[0].mxu0
  %176 = vmatprep.mubr.bf16.mxu0 0
  %177 = vmatmul.mubr.bf16.gmra.mrb[0].mxu0 %v68
  %v178 = vpop.f32.mrb[0].mxu0
  %v179 = vadd.f32 %v56, %v178
  %v180 = vpop.f32.mrb[0].mxu0
  %v181 = vpop.f32.mrb[0].mxu0
  %v182 = vadd.f32 %v61, %v181
  %v183 = vpop.f32.mrb[0].mxu0
  %184 = vdwg.mxu0
  %v185 = vmul.f32 %v34, %v34
  %v186 = vmul.f32 %v35, %v35
  %v187 = vmul.f32 %v36, %v36
  %v188 = vmul.f32 %v37, %v37
  %v189 = vmul.f32 %v38, %v38
  %v190 = vmul.f32 %v39, %v39
  %vm191 = vcmask 1040384
  %v192 = vsel %vm191, %v188, 0.0
  %v193 = vadd.f32 %v185, %v192
  %v194 = vrot.slane %v193, 4
  %v195 = vadd.f32 %v193, %v194
  %v196 = vrot.slane %v195, 2
  %v197 = vadd.f32 %v195, %v196
  %v198 = vrot.slane %v197, 1
  %v199 = vadd.f32 %v197, %v198
  %v200 = vsel %vm191, %v189, 0.0
  %v201 = vadd.f32 %v186, %v200
  %v202 = vrot.slane %v201, 4
  %v203 = vadd.f32 %v201, %v202
  %v204 = vrot.slane %v203, 2
  %v205 = vadd.f32 %v203, %v204
  %v206 = vrot.slane %v205, 1
  %v207 = vadd.f32 %v205, %v206
  %vm208 = vcmask 670720
  %v209 = vsel %vm208, %v187, 0.0
  %vm210 = vcmask 663552
  %v211 = vsel %vm210, %v190, 0.0
  %v212 = vadd.f32 %v209, %v211
  %v213 = vrot.slane %v212, 4
  %v214 = vadd.f32 %v212, %v213
  %v215 = vrot.slane %v214, 2
  %v216 = vadd.f32 %v214, %v215
  %v217 = vrot.slane %v216, 1
  %v218 = vadd.f32 %v216, %v217
  %220 = vset.pattern.permute.xlu0 0
  %221 = vperm.xlu0 %220, %v30
  %v222 = vpop.permute.xlu0 %221
  %225 = vset.pattern.permute.xlu0 0
  %226 = vperm.xlu0 %225, %v31
  %v227 = vpop.permute.xlu0 %226
  %230 = vset.pattern.permute.xlu0 0
  %231 = vperm.xlu0 %230, %v32
  %v232 = vpop.permute.xlu0 %231
  %235 = vset.pattern.permute.xlu0 0
  %236 = vperm.xlu0 %235, %v33
  %v237 = vpop.permute.xlu0 %236
  %v239 = vmul.f32 %v222, %v199
  %v240 = vmul.f32 %v222, %v207
  %v241 = vmul.f32 %v222, %v218
  %v242 = vmul.f32 %v227, %v199
  %v243 = vmul.f32 %v227, %v207
  %v244 = vmul.f32 %v227, %v218
  %v245 = vmul.f32 %v232, %v199
  %v246 = vmul.f32 %v232, %v207
  %v247 = vmul.f32 %v232, %v218
  %v248 = vmul.f32 %v237, %v199
  %v249 = vmul.f32 %v237, %v207
  %v250 = vmul.f32 %v237, %v218
  %vm251 = vcmp.gt.f32.partialorder %v118, 0.0
  %vm252 = vcmp.gt.f32.partialorder %v120, 0.0
  %vm253 = vcmp.gt.f32.partialorder %v171, 0.0
  %vm254 = vcmp.gt.f32.partialorder %v122, 0.0
  %vm255 = vcmp.gt.f32.partialorder %v124, 0.0
  %vm256 = vcmp.gt.f32.partialorder %v174, 0.0
  %vm257 = vcmp.gt.f32.partialorder %v128, 0.0
  %vm258 = vcmp.gt.f32.partialorder %v130, 0.0
  %vm259 = vcmp.gt.f32.partialorder %v179, 0.0
  %vm260 = vcmp.gt.f32.partialorder %v132, 0.0
  %vm261 = vcmp.gt.f32.partialorder %v134, 0.0
  %vm262 = vcmp.gt.f32.partialorder %v182, 0.0
  %v263 = vsel %vm251, %v118, 0.0
  %v264 = vsel %vm252, %v120, 0.0
  %v265 = vsel %vm253, %v171, 0.0
  %v266 = vsel %vm254, %v122, 0.0
  %v267 = vsel %vm255, %v124, 0.0
  %v268 = vsel %vm256, %v174, 0.0
  %v269 = vsel %vm257, %v128, 0.0
  %v270 = vsel %vm258, %v130, 0.0
  %v271 = vsel %vm259, %v179, 0.0
  %v272 = vsel %vm260, %v132, 0.0
  %v273 = vsel %vm261, %v134, 0.0
  %v274 = vsel %vm262, %v182, 0.0
  %v275 = vsel %vm251, %v239, 0.0
  %v276 = vsel %vm252, %v240, 0.0
  %v277 = vsel %vm253, %v241, 0.0
  %v278 = vsel %vm254, %v242, 0.0
  %v279 = vsel %vm255, %v243, 0.0
  %v280 = vsel %vm256, %v244, 0.0
  %v281 = vsel %vm257, %v245, 0.0
  %v282 = vsel %vm258, %v246, 0.0
  %v283 = vsel %vm259, %v247, 0.0
  %v284 = vsel %vm260, %v248, 0.0
  %v285 = vsel %vm261, %v249, 0.0
  %v286 = vsel %vm262, %v250, 0.0
  %s287 = scalar_lea.vmem %s0, 48
  %v288 = vld [vmem:[%s287] sm:$0xff]
  %v289 = vld [vmem:[%s287 + $0x8] sm:$0xff]
  %v290 = vld [vmem:[%s287 + $0x10] sm:$0xff]
  %v291 = vld [vmem:[%s287 + $0x18] sm:$0x1]
  %v292 = vld [vmem:[%s287 + $0x20] sm:$0x1]
  %v293 = vld [vmem:[%s287 + $0x28] sm:$0x1]
  %v294 = vpack.c.bf16 %v291, %v288
  %v295 = vpack.c.bf16 %v292, %v289
  %v296 = vpack.c.bf16 %v293, %v290
  %v298 = vand.u32 %v294, %v73
  %v301 = vand.u32 %v295, %v73
  %v304 = vand.u32 %v296, %v73
  %306 = vmatprep.subr.bf16.mxu0 %v301
  %307 = vmatpush1.bf16.msra.mxu0 %v298
  %308 = vmatprep.subr.bf16.mxu0 0
  %309 = vmatpush1.bf16.msra.mxu0 0
  %310 = vmatprep.subr.bf16.mxu0 0
  %311 = vmatpush1.bf16.msra.mxu0 0
  %312 = vmatprep.subr.bf16.mxu0 0
  %313 = vmatpush1.bf16.msra.mxu0 0
  %314 = vmatprep.subr.bf16.mxu0 0
  %315 = vmatpush1.bf16.msra.mxu0 0
  %316 = vmatprep.subr.bf16.mxu0 0
  %317 = vmatpush1.bf16.msra.mxu0 0
  %318 = vmatprep.subr.bf16.mxu0 0
  %319 = vmatpush1.bf16.msra.mxu0 0
  %320 = vmatprep.subr.bf16.mxu0 0
  %321 = vmatpush1.bf16.msra.mxu0 0
  %322 = vmatprep.subr.bf16.mxu0 0
  %323 = vmatpush1.bf16.msra.mxu0 0
  %324 = vmatprep.subr.bf16.mxu0 0
  %325 = vmatpush1.bf16.msra.mxu0 0
  %326 = vmatprep.subr.bf16.mxu0 0
  %327 = vmatpush1.bf16.msra.mxu0 0
  %328 = vmatprep.subr.bf16.mxu0 0
  %329 = vmatpush1.bf16.msra.mxu0 0
  %330 = vmatprep.subr.bf16.mxu0 0
  %331 = vmatpush1.bf16.msra.mxu0 0
  %332 = vmatprep.subr.bf16.mxu0 0
  %333 = vmatpush1.bf16.msra.mxu0 0
  %334 = vmatprep.subr.bf16.mxu0 0
  %335 = vmatpush1.bf16.msra.mxu0 0
  %336 = vmatprep.subr.bf16.mxu0 0
  %337 = vmatpush1.bf16.msra.mxu0 0
  %338 = vmatprep.mubr.bf16.mxu0 0
  %339 = vmatmul.mubr.bf16.gmra.mrb[0].mxu0 %v65
  %v340 = vpop.f32.mrb[0].mxu0
  %v341 = vadd.f32 %v46, %v340
  %v342 = vpop.f32.mrb[0].mxu0
  %v343 = vadd.f32 %v46, %v342
  %v344 = vpop.f32.mrb[0].mxu0
  %v345 = vadd.f32 %v51, %v344
  %v346 = vpop.f32.mrb[0].mxu0
  %v347 = vadd.f32 %v51, %v346
  %348 = vmatprep.mubr.bf16.mxu0 0
  %349 = vmatmul.mubr.bf16.gmra.mrb[0].mxu0 %v68
  %v350 = vpop.f32.mrb[0].mxu0
  %v351 = vadd.f32 %v56, %v350
  %v352 = vpop.f32.mrb[0].mxu0
  %v353 = vadd.f32 %v56, %v352
  %v354 = vpop.f32.mrb[0].mxu0
  %v355 = vadd.f32 %v61, %v354
  %v356 = vpop.f32.mrb[0].mxu0
  %v357 = vadd.f32 %v61, %v356
  %358 = vdwg.mxu0
  %359 = vmatprep.subr.bf16.mxu0 0
  %360 = vmatpush1.bf16.msra.mxu0 %v304
  %361 = vmatprep.subr.bf16.mxu0 0
  %362 = vmatpush1.bf16.msra.mxu0 0
  %363 = vmatprep.subr.bf16.mxu0 0
  %364 = vmatpush1.bf16.msra.mxu0 0
  %365 = vmatprep.subr.bf16.mxu0 0
  %366 = vmatpush1.bf16.msra.mxu0 0
  %367 = vmatprep.subr.bf16.mxu0 0
  %368 = vmatpush1.bf16.msra.mxu0 0
  %369 = vmatprep.subr.bf16.mxu0 0
  %370 = vmatpush1.bf16.msra.mxu0 0
  %371 = vmatprep.subr.bf16.mxu0 0
  %372 = vmatpush1.bf16.msra.mxu0 0
  %373 = vmatprep.subr.bf16.mxu0 0
  %374 = vmatpush1.bf16.msra.mxu0 0
  %375 = vmatprep.subr.bf16.mxu0 0
  %376 = vmatpush1.bf16.msra.mxu0 0
  %377 = vmatprep.subr.bf16.mxu0 0
  %378 = vmatpush1.bf16.msra.mxu0 0
  %379 = vmatprep.subr.bf16.mxu0 0
  %380 = vmatpush1.bf16.msra.mxu0 0
  %381 = vmatprep.subr.bf16.mxu0 0
  %382 = vmatpush1.bf16.msra.mxu0 0
  %383 = vmatprep.subr.bf16.mxu0 0
  %384 = vmatpush1.bf16.msra.mxu0 0
  %385 = vmatprep.subr.bf16.mxu0 0
  %386 = vmatpush1.bf16.msra.mxu0 0
  %387 = vmatprep.subr.bf16.mxu0 0
  %388 = vmatpush1.bf16.msra.mxu0 0
  %389 = vmatprep.subr.bf16.mxu0 0
  %390 = vmatpush1.bf16.msra.mxu0 0
  %391 = vmatprep.mubr.bf16.mxu0 0
  %392 = vmatmul.mubr.bf16.gmra.mrb[0].mxu0 %v65
  %v393 = vpop.f32.mrb[0].mxu0
  %v394 = vadd.f32 %v46, %v393
  %v395 = vpop.f32.mrb[0].mxu0
  %v396 = vpop.f32.mrb[0].mxu0
  %v397 = vadd.f32 %v51, %v396
  %v398 = vpop.f32.mrb[0].mxu0
  %399 = vmatprep.mubr.bf16.mxu0 0
  %400 = vmatmul.mubr.bf16.gmra.mrb[0].mxu0 %v68
  %v401 = vpop.f32.mrb[0].mxu0
  %v402 = vadd.f32 %v56, %v401
  %v403 = vpop.f32.mrb[0].mxu0
  %v404 = vpop.f32.mrb[0].mxu0
  %v405 = vadd.f32 %v61, %v404
  %v406 = vpop.f32.mrb[0].mxu0
  %407 = vdwg.mxu0
  %v408 = vmul.f32 %v288, %v288
  %v409 = vmul.f32 %v289, %v289
  %v410 = vmul.f32 %v290, %v290
  %v411 = vmul.f32 %v291, %v291
  %v412 = vmul.f32 %v292, %v292
  %v413 = vmul.f32 %v293, %v293
  %v414 = vsel %vm191, %v411, 0.0
  %v415 = vadd.f32 %v408, %v414
  %v416 = vrot.slane %v415, 4
  %v417 = vadd.f32 %v415, %v416
  %v418 = vrot.slane %v417, 2
  %v419 = vadd.f32 %v417, %v418
  %v420 = vrot.slane %v419, 1
  %v421 = vadd.f32 %v419, %v420
  %v422 = vsel %vm191, %v412, 0.0
  %v423 = vadd.f32 %v409, %v422
  %v424 = vrot.slane %v423, 4
  %v425 = vadd.f32 %v423, %v424
  %v426 = vrot.slane %v425, 2
  %v427 = vadd.f32 %v425, %v426
  %v428 = vrot.slane %v427, 1
  %v429 = vadd.f32 %v427, %v428
  %v430 = vsel %vm208, %v410, 0.0
  %v431 = vsel %vm210, %v413, 0.0
  %v432 = vadd.f32 %v430, %v431
  %v433 = vrot.slane %v432, 4
  %v434 = vadd.f32 %v432, %v433
  %v435 = vrot.slane %v434, 2
  %v436 = vadd.f32 %v434, %v435
  %v437 = vrot.slane %v436, 1
  %v438 = vadd.f32 %v436, %v437
  %v439 = vmul.f32 %v222, %v421
  %v440 = vmul.f32 %v222, %v429
  %v441 = vmul.f32 %v222, %v438
  %v442 = vmul.f32 %v227, %v421
  %v443 = vmul.f32 %v227, %v429
  %v444 = vmul.f32 %v227, %v438
  %v445 = vmul.f32 %v232, %v421
  %v446 = vmul.f32 %v232, %v429
  %v447 = vmul.f32 %v232, %v438
  %v448 = vmul.f32 %v237, %v421
  %v449 = vmul.f32 %v237, %v429
  %v450 = vmul.f32 %v237, %v438
  %vm451 = vcmp.gt.f32.partialorder %v341, 0.0
  %vm452 = vcmp.gt.f32.partialorder %v343, 0.0
  %vm453 = vcmp.gt.f32.partialorder %v394, 0.0
  %vm454 = vcmp.gt.f32.partialorder %v345, 0.0
  %vm455 = vcmp.gt.f32.partialorder %v347, 0.0
  %vm456 = vcmp.gt.f32.partialorder %v397, 0.0
  %vm457 = vcmp.gt.f32.partialorder %v351, 0.0
  %vm458 = vcmp.gt.f32.partialorder %v353, 0.0
  %vm459 = vcmp.gt.f32.partialorder %v402, 0.0
  %vm460 = vcmp.gt.f32.partialorder %v355, 0.0
  %vm461 = vcmp.gt.f32.partialorder %v357, 0.0
  %vm462 = vcmp.gt.f32.partialorder %v405, 0.0
  %v463 = vsel %vm451, %v341, 0.0
  %v464 = vsel %vm452, %v343, 0.0
  %v465 = vsel %vm453, %v394, 0.0
  %v466 = vsel %vm454, %v345, 0.0
  %v467 = vsel %vm455, %v347, 0.0
  %v468 = vsel %vm456, %v397, 0.0
  %v469 = vsel %vm457, %v351, 0.0
  %v470 = vsel %vm458, %v353, 0.0
  %v471 = vsel %vm459, %v402, 0.0
  %v472 = vsel %vm460, %v355, 0.0
  %v473 = vsel %vm461, %v357, 0.0
  %v474 = vsel %vm462, %v405, 0.0
  %v475 = vsel %vm451, %v439, 0.0
  %v476 = vsel %vm452, %v440, 0.0
  %v477 = vsel %vm453, %v441, 0.0
  %v478 = vsel %vm454, %v442, 0.0
  %v479 = vsel %vm455, %v443, 0.0
  %v480 = vsel %vm456, %v444, 0.0
  %v481 = vsel %vm457, %v445, 0.0
  %v482 = vsel %vm458, %v446, 0.0
  %v483 = vsel %vm459, %v447, 0.0
  %v484 = vsel %vm460, %v448, 0.0
  %v485 = vsel %vm461, %v449, 0.0
  %v486 = vsel %vm462, %v450, 0.0
  %vm487 = vcmp.gt.f32.partialorder %v463, %v263
  %vm488 = vcmp.gt.f32.partialorder %v464, %v264
  %vm489 = vcmp.gt.f32.partialorder %v465, %v265
  %vm490 = vcmp.gt.f32.partialorder %v466, %v266
  %vm491 = vcmp.gt.f32.partialorder %v467, %v267
  %vm492 = vcmp.gt.f32.partialorder %v468, %v268
  %vm493 = vcmp.gt.f32.partialorder %v469, %v269
  %vm494 = vcmp.gt.f32.partialorder %v470, %v270
  %vm495 = vcmp.gt.f32.partialorder %v471, %v271
  %vm496 = vcmp.gt.f32.partialorder %v472, %v272
  %vm497 = vcmp.gt.f32.partialorder %v473, %v273
  %vm498 = vcmp.gt.f32.partialorder %v474, %v274
  %v499 = vsel %vm487, %v463, %v263
  %v500 = vsel %vm488, %v464, %v264
  %v501 = vsel %vm489, %v465, %v265
  %v502 = vsel %vm490, %v466, %v266
  %v503 = vsel %vm491, %v467, %v267
  %v504 = vsel %vm492, %v468, %v268
  %v505 = vsel %vm493, %v469, %v269
  %v506 = vsel %vm494, %v470, %v270
  %v507 = vsel %vm495, %v471, %v271
  %v508 = vsel %vm496, %v472, %v272
  %v509 = vsel %vm497, %v473, %v273
  %v510 = vsel %vm498, %v474, %v274
  %v511 = vsel %vm487, %v475, %v275
  %v512 = vsel %vm488, %v476, %v276
  %v513 = vsel %vm489, %v477, %v277
  %v514 = vsel %vm490, %v478, %v278
  %v515 = vsel %vm491, %v479, %v279
  %v516 = vsel %vm492, %v480, %v280
  %v517 = vsel %vm493, %v481, %v281
  %v518 = vsel %vm494, %v482, %v282
  %v519 = vsel %vm495, %v483, %v283
  %v520 = vsel %vm496, %v484, %v284
  %v521 = vsel %vm497, %v485, %v285
  %v522 = vsel %vm498, %v486, %v286
  %s523 = scalar_lea.vmem %s0, 96
  %v524 = vld [vmem:[%s523] sm:$0xff]
  %v525 = vld [vmem:[%s523 + $0x8] sm:$0xff]
  %v526 = vld [vmem:[%s523 + $0x10] sm:$0xff]
  %v527 = vld [vmem:[%s523 + $0x18] sm:$0x1]
  %v528 = vld [vmem:[%s523 + $0x20] sm:$0x1]
  %v529 = vld [vmem:[%s523 + $0x28] sm:$0x1]
  %v530 = vpack.c.bf16 %v527, %v524
  %v531 = vpack.c.bf16 %v528, %v525
  %v532 = vpack.c.bf16 %v529, %v526
  %v534 = vand.u32 %v530, %v73
  %v537 = vand.u32 %v531, %v73
  %v540 = vand.u32 %v532, %v73
  %542 = vmatprep.subr.bf16.mxu0 %v537
  %543 = vmatpush1.bf16.msra.mxu0 %v534
  %544 = vmatprep.subr.bf16.mxu0 0
  %545 = vmatpush1.bf16.msra.mxu0 0
  %546 = vmatprep.subr.bf16.mxu0 0
  %547 = vmatpush1.bf16.msra.mxu0 0
  %548 = vmatprep.subr.bf16.mxu0 0
  %549 = vmatpush1.bf16.msra.mxu0 0
  %550 = vmatprep.subr.bf16.mxu0 0
  %551 = vmatpush1.bf16.msra.mxu0 0
  %552 = vmatprep.subr.bf16.mxu0 0
  %553 = vmatpush1.bf16.msra.mxu0 0
  %554 = vmatprep.subr.bf16.mxu0 0
  %555 = vmatpush1.bf16.msra.mxu0 0
  %556 = vmatprep.subr.bf16.mxu0 0
  %557 = vmatpush1.bf16.msra.mxu0 0
  %558 = vmatprep.subr.bf16.mxu0 0
  %559 = vmatpush1.bf16.msra.mxu0 0
  %560 = vmatprep.subr.bf16.mxu0 0
  %561 = vmatpush1.bf16.msra.mxu0 0
  %562 = vmatprep.subr.bf16.mxu0 0
  %563 = vmatpush1.bf16.msra.mxu0 0
  %564 = vmatprep.subr.bf16.mxu0 0
  %565 = vmatpush1.bf16.msra.mxu0 0
  %566 = vmatprep.subr.bf16.mxu0 0
  %567 = vmatpush1.bf16.msra.mxu0 0
  %568 = vmatprep.subr.bf16.mxu0 0
  %569 = vmatpush1.bf16.msra.mxu0 0
  %570 = vmatprep.subr.bf16.mxu0 0
  %571 = vmatpush1.bf16.msra.mxu0 0
  %572 = vmatprep.subr.bf16.mxu0 0
  %573 = vmatpush1.bf16.msra.mxu0 0
  %574 = vmatprep.mubr.bf16.mxu0 0
  %575 = vmatmul.mubr.bf16.gmra.mrb[0].mxu0 %v65
  %v576 = vpop.f32.mrb[0].mxu0
  %v577 = vadd.f32 %v46, %v576
  %v578 = vpop.f32.mrb[0].mxu0
  %v579 = vadd.f32 %v46, %v578
  %v580 = vpop.f32.mrb[0].mxu0
  %v581 = vadd.f32 %v51, %v580
  %v582 = vpop.f32.mrb[0].mxu0
  %v583 = vadd.f32 %v51, %v582
  %584 = vmatprep.mubr.bf16.mxu0 0
  %585 = vmatmul.mubr.bf16.gmra.mrb[0].mxu0 %v68
  %v586 = vpop.f32.mrb[0].mxu0
  %v587 = vadd.f32 %v56, %v586
  %v588 = vpop.f32.mrb[0].mxu0
  %v589 = vadd.f32 %v56, %v588
  %v590 = vpop.f32.mrb[0].mxu0
  %v591 = vadd.f32 %v61, %v590
  %v592 = vpop.f32.mrb[0].mxu0
  %v593 = vadd.f32 %v61, %v592
  %594 = vdwg.mxu0
  %595 = vmatprep.subr.bf16.mxu0 0
  %596 = vmatpush1.bf16.msra.mxu0 %v540
  %597 = vmatprep.subr.bf16.mxu0 0
  %598 = vmatpush1.bf16.msra.mxu0 0
  %599 = vmatprep.subr.bf16.mxu0 0
  %600 = vmatpush1.bf16.msra.mxu0 0
  %601 = vmatprep.subr.bf16.mxu0 0
  %602 = vmatpush1.bf16.msra.mxu0 0
  %603 = vmatprep.subr.bf16.mxu0 0
  %604 = vmatpush1.bf16.msra.mxu0 0
  %605 = vmatprep.subr.bf16.mxu0 0
  %606 = vmatpush1.bf16.msra.mxu0 0
  %607 = vmatprep.subr.bf16.mxu0 0
  %608 = vmatpush1.bf16.msra.mxu0 0
  %609 = vmatprep.subr.bf16.mxu0 0
  %610 = vmatpush1.bf16.msra.mxu0 0
  %611 = vmatprep.subr.bf16.mxu0 0
  %612 = vmatpush1.bf16.msra.mxu0 0
  %613 = vmatprep.subr.bf16.mxu0 0
  %614 = vmatpush1.bf16.msra.mxu0 0
  %615 = vmatprep.subr.bf16.mxu0 0
  %616 = vmatpush1.bf16.msra.mxu0 0
  %617 = vmatprep.subr.bf16.mxu0 0
  %618 = vmatpush1.bf16.msra.mxu0 0
  %619 = vmatprep.subr.bf16.mxu0 0
  %620 = vmatpush1.bf16.msra.mxu0 0
  %621 = vmatprep.subr.bf16.mxu0 0
  %622 = vmatpush1.bf16.msra.mxu0 0
  %623 = vmatprep.subr.bf16.mxu0 0
  %624 = vmatpush1.bf16.msra.mxu0 0
  %625 = vmatprep.subr.bf16.mxu0 0
  %626 = vmatpush1.bf16.msra.mxu0 0
  %627 = vmatprep.mubr.bf16.mxu0 0
  %628 = vmatmul.mubr.bf16.gmra.mrb[0].mxu0 %v65
  %v629 = vpop.f32.mrb[0].mxu0
  %v630 = vadd.f32 %v46, %v629
  %v631 = vpop.f32.mrb[0].mxu0
  %v632 = vpop.f32.mrb[0].mxu0
  %v633 = vadd.f32 %v51, %v632
  %v634 = vpop.f32.mrb[0].mxu0
  %635 = vmatprep.mubr.bf16.mxu0 0
  %636 = vmatmul.mubr.bf16.gmra.mrb[0].mxu0 %v68
  %v637 = vpop.f32.mrb[0].mxu0
  %v638 = vadd.f32 %v56, %v637
  %v639 = vpop.f32.mrb[0].mxu0
  %v640 = vpop.f32.mrb[0].mxu0
  %v641 = vadd.f32 %v61, %v640
  %v642 = vpop.f32.mrb[0].mxu0
  %643 = vdwg.mxu0
  %v644 = vmul.f32 %v524, %v524
  %v645 = vmul.f32 %v525, %v525
  %v646 = vmul.f32 %v526, %v526
  %v647 = vmul.f32 %v527, %v527
  %v648 = vmul.f32 %v528, %v528
  %v649 = vmul.f32 %v529, %v529
  %v650 = vsel %vm191, %v647, 0.0
  %v651 = vadd.f32 %v644, %v650
  %v652 = vrot.slane %v651, 4
  %v653 = vadd.f32 %v651, %v652
  %v654 = vrot.slane %v653, 2
  %v655 = vadd.f32 %v653, %v654
  %v656 = vrot.slane %v655, 1
  %v657 = vadd.f32 %v655, %v656
  %v658 = vsel %vm191, %v648, 0.0
  %v659 = vadd.f32 %v645, %v658
  %v660 = vrot.slane %v659, 4
  %v661 = vadd.f32 %v659, %v660
  %v662 = vrot.slane %v661, 2
  %v663 = vadd.f32 %v661, %v662
  %v664 = vrot.slane %v663, 1
  %v665 = vadd.f32 %v663, %v664
  %v666 = vsel %vm208, %v646, 0.0
  %v667 = vsel %vm210, %v649, 0.0
  %v668 = vadd.f32 %v666, %v667
  %v669 = vrot.slane %v668, 4
  %v670 = vadd.f32 %v668, %v669
  %v671 = vrot.slane %v670, 2
  %v672 = vadd.f32 %v670, %v671
  %v673 = vrot.slane %v672, 1
  %v674 = vadd.f32 %v672, %v673
  %v675 = vmul.f32 %v222, %v657
  %v676 = vmul.f32 %v222, %v665
  %v677 = vmul.f32 %v222, %v674
  %v678 = vmul.f32 %v227, %v657
  %v679 = vmul.f32 %v227, %v665
  %v680 = vmul.f32 %v227, %v674
  %v681 = vmul.f32 %v232, %v657
  %v682 = vmul.f32 %v232, %v665
  %v683 = vmul.f32 %v232, %v674
  %v684 = vmul.f32 %v237, %v657
  %v685 = vmul.f32 %v237, %v665
  %v686 = vmul.f32 %v237, %v674
  %vm687 = vcmp.gt.f32.partialorder %v577, 0.0
  %vm688 = vcmp.gt.f32.partialorder %v579, 0.0
  %vm689 = vcmp.gt.f32.partialorder %v630, 0.0
  %vm690 = vcmp.gt.f32.partialorder %v581, 0.0
  %vm691 = vcmp.gt.f32.partialorder %v583, 0.0
  %vm692 = vcmp.gt.f32.partialorder %v633, 0.0
  %vm693 = vcmp.gt.f32.partialorder %v587, 0.0
  %vm694 = vcmp.gt.f32.partialorder %v589, 0.0
  %vm695 = vcmp.gt.f32.partialorder %v638, 0.0
  %vm696 = vcmp.gt.f32.partialorder %v591, 0.0
  %vm697 = vcmp.gt.f32.partialorder %v593, 0.0
  %vm698 = vcmp.gt.f32.partialorder %v641, 0.0
  %v699 = vsel %vm687, %v577, 0.0
  %v700 = vsel %vm688, %v579, 0.0
  %v701 = vsel %vm689, %v630, 0.0
  %v702 = vsel %vm690, %v581, 0.0
  %v703 = vsel %vm691, %v583, 0.0
  %v704 = vsel %vm692, %v633, 0.0
  %v705 = vsel %vm693, %v587, 0.0
  %v706 = vsel %vm694, %v589, 0.0
  %v707 = vsel %vm695, %v638, 0.0
  %v708 = vsel %vm696, %v591, 0.0
  %v709 = vsel %vm697, %v593, 0.0
  %v710 = vsel %vm698, %v641, 0.0
  %v711 = vsel %vm687, %v675, 0.0
  %v712 = vsel %vm688, %v676, 0.0
  %v713 = vsel %vm689, %v677, 0.0
  %v714 = vsel %vm690, %v678, 0.0
  %v715 = vsel %vm691, %v679, 0.0
  %v716 = vsel %vm692, %v680, 0.0
  %v717 = vsel %vm693, %v681, 0.0
  %v718 = vsel %vm694, %v682, 0.0
  %v719 = vsel %vm695, %v683, 0.0
  %v720 = vsel %vm696, %v684, 0.0
  %v721 = vsel %vm697, %v685, 0.0
  %v722 = vsel %vm698, %v686, 0.0
  %vm723 = vcmp.gt.f32.partialorder %v699, %v499
  %vm724 = vcmp.gt.f32.partialorder %v700, %v500
  %vm725 = vcmp.gt.f32.partialorder %v701, %v501
  %vm726 = vcmp.gt.f32.partialorder %v702, %v502
  %vm727 = vcmp.gt.f32.partialorder %v703, %v503
  %vm728 = vcmp.gt.f32.partialorder %v704, %v504
  %vm729 = vcmp.gt.f32.partialorder %v705, %v505
  %vm730 = vcmp.gt.f32.partialorder %v706, %v506
  %vm731 = vcmp.gt.f32.partialorder %v707, %v507
  %vm732 = vcmp.gt.f32.partialorder %v708, %v508
  %vm733 = vcmp.gt.f32.partialorder %v709, %v509
  %vm734 = vcmp.gt.f32.partialorder %v710, %v510
  %v735 = vsel %vm723, %v699, %v499
  %v736 = vsel %vm724, %v700, %v500
  %v737 = vsel %vm725, %v701, %v501
  %v738 = vsel %vm726, %v702, %v502
  %v739 = vsel %vm727, %v703, %v503
  %v740 = vsel %vm728, %v704, %v504
  %v741 = vsel %vm729, %v705, %v505
  %v742 = vsel %vm730, %v706, %v506
  %v743 = vsel %vm731, %v707, %v507
  %v744 = vsel %vm732, %v708, %v508
  %v745 = vsel %vm733, %v709, %v509
  %v746 = vsel %vm734, %v710, %v510
  %v747 = vsel %vm723, %v711, %v511
  %v748 = vsel %vm724, %v712, %v512
  %v749 = vsel %vm725, %v713, %v513
  %v750 = vsel %vm726, %v714, %v514
  %v751 = vsel %vm727, %v715, %v515
  %v752 = vsel %vm728, %v716, %v516
  %v753 = vsel %vm729, %v717, %v517
  %v754 = vsel %vm730, %v718, %v518
  %v755 = vsel %vm731, %v719, %v519
  %v756 = vsel %vm732, %v720, %v520
  %v757 = vsel %vm733, %v721, %v521
  %v758 = vsel %vm734, %v722, %v522
  %s759 = scalar_lea.vmem %s0, 144
  %v760 = vld [vmem:[%s759] sm:$0xff]
  %v761 = vld [vmem:[%s759 + $0x8] sm:$0xff]
  %v762 = vld [vmem:[%s759 + $0x10] sm:$0xff]
  %v763 = vld [vmem:[%s759 + $0x18] sm:$0x1]
  %v764 = vld [vmem:[%s759 + $0x20] sm:$0x1]
  %v765 = vld [vmem:[%s759 + $0x28] sm:$0x1]
  %v766 = vpack.c.bf16 %v763, %v760
  %v767 = vpack.c.bf16 %v764, %v761
  %v768 = vpack.c.bf16 %v765, %v762
  %v770 = vand.u32 %v766, %v73
  %v773 = vand.u32 %v767, %v73
  %v776 = vand.u32 %v768, %v73
  %778 = vmatprep.subr.bf16.mxu0 %v773
  %779 = vmatpush1.bf16.msra.mxu0 %v770
  %780 = vmatprep.subr.bf16.mxu0 0
  %781 = vmatpush1.bf16.msra.mxu0 0
  %782 = vmatprep.subr.bf16.mxu0 0
  %783 = vmatpush1.bf16.msra.mxu0 0
  %784 = vmatprep.subr.bf16.mxu0 0
  %785 = vmatpush1.bf16.msra.mxu0 0
  %786 = vmatprep.subr.bf16.mxu0 0
  %787 = vmatpush1.bf16.msra.mxu0 0
  %788 = vmatprep.subr.bf16.mxu0 0
  %789 = vmatpush1.bf16.msra.mxu0 0
  %790 = vmatprep.subr.bf16.mxu0 0
  %791 = vmatpush1.bf16.msra.mxu0 0
  %792 = vmatprep.subr.bf16.mxu0 0
  %793 = vmatpush1.bf16.msra.mxu0 0
  %794 = vmatprep.subr.bf16.mxu0 0
  %795 = vmatpush1.bf16.msra.mxu0 0
  %796 = vmatprep.subr.bf16.mxu0 0
  %797 = vmatpush1.bf16.msra.mxu0 0
  %798 = vmatprep.subr.bf16.mxu0 0
  %799 = vmatpush1.bf16.msra.mxu0 0
  %800 = vmatprep.subr.bf16.mxu0 0
  %801 = vmatpush1.bf16.msra.mxu0 0
  %802 = vmatprep.subr.bf16.mxu0 0
  %803 = vmatpush1.bf16.msra.mxu0 0
  %804 = vmatprep.subr.bf16.mxu0 0
  %805 = vmatpush1.bf16.msra.mxu0 0
  %806 = vmatprep.subr.bf16.mxu0 0
  %807 = vmatpush1.bf16.msra.mxu0 0
  %808 = vmatprep.subr.bf16.mxu0 0
  %809 = vmatpush1.bf16.msra.mxu0 0
  %810 = vmatprep.mubr.bf16.mxu0 0
  %811 = vmatmul.mubr.bf16.gmra.mrb[0].mxu0 %v65
  %v812 = vpop.f32.mrb[0].mxu0
  %v813 = vadd.f32 %v46, %v812
  %v814 = vpop.f32.mrb[0].mxu0
  %v815 = vadd.f32 %v46, %v814
  %v816 = vpop.f32.mrb[0].mxu0
  %v817 = vadd.f32 %v51, %v816
  %v818 = vpop.f32.mrb[0].mxu0
  %v819 = vadd.f32 %v51, %v818
  %820 = vmatprep.mubr.bf16.mxu0 0
  %821 = vmatmul.mubr.bf16.gmra.mrb[0].mxu0 %v68
  %v822 = vpop.f32.mrb[0].mxu0
  %v823 = vadd.f32 %v56, %v822
  %v824 = vpop.f32.mrb[0].mxu0
  %v825 = vadd.f32 %v56, %v824
  %v826 = vpop.f32.mrb[0].mxu0
  %v827 = vadd.f32 %v61, %v826
  %v828 = vpop.f32.mrb[0].mxu0
  %v829 = vadd.f32 %v61, %v828
  %830 = vdwg.mxu0
  %831 = vmatprep.subr.bf16.mxu0 0
  %832 = vmatpush1.bf16.msra.mxu0 %v776
  %833 = vmatprep.subr.bf16.mxu0 0
  %834 = vmatpush1.bf16.msra.mxu0 0
  %835 = vmatprep.subr.bf16.mxu0 0
  %836 = vmatpush1.bf16.msra.mxu0 0
  %837 = vmatprep.subr.bf16.mxu0 0
  %838 = vmatpush1.bf16.msra.mxu0 0
  %839 = vmatprep.subr.bf16.mxu0 0
  %840 = vmatpush1.bf16.msra.mxu0 0
  %841 = vmatprep.subr.bf16.mxu0 0
  %842 = vmatpush1.bf16.msra.mxu0 0
  %843 = vmatprep.subr.bf16.mxu0 0
  %844 = vmatpush1.bf16.msra.mxu0 0
  %845 = vmatprep.subr.bf16.mxu0 0
  %846 = vmatpush1.bf16.msra.mxu0 0
  %847 = vmatprep.subr.bf16.mxu0 0
  %848 = vmatpush1.bf16.msra.mxu0 0
  %849 = vmatprep.subr.bf16.mxu0 0
  %850 = vmatpush1.bf16.msra.mxu0 0
  %851 = vmatprep.subr.bf16.mxu0 0
  %852 = vmatpush1.bf16.msra.mxu0 0
  %853 = vmatprep.subr.bf16.mxu0 0
  %854 = vmatpush1.bf16.msra.mxu0 0
  %855 = vmatprep.subr.bf16.mxu0 0
  %856 = vmatpush1.bf16.msra.mxu0 0
  %857 = vmatprep.subr.bf16.mxu0 0
  %858 = vmatpush1.bf16.msra.mxu0 0
  %859 = vmatprep.subr.bf16.mxu0 0
  %860 = vmatpush1.bf16.msra.mxu0 0
  %861 = vmatprep.subr.bf16.mxu0 0
  %862 = vmatpush1.bf16.msra.mxu0 0
  %863 = vmatprep.mubr.bf16.mxu0 0
  %864 = vmatmul.mubr.bf16.gmra.mrb[0].mxu0 %v65
  %v865 = vpop.f32.mrb[0].mxu0
  %v866 = vadd.f32 %v46, %v865
  %v867 = vpop.f32.mrb[0].mxu0
  %v868 = vpop.f32.mrb[0].mxu0
  %v869 = vadd.f32 %v51, %v868
  %v870 = vpop.f32.mrb[0].mxu0
  %871 = vmatprep.mubr.bf16.mxu0 0
  %872 = vmatmul.mubr.bf16.gmra.mrb[0].mxu0 %v68
  %v873 = vpop.f32.mrb[0].mxu0
  %v874 = vadd.f32 %v56, %v873
  %v875 = vpop.f32.mrb[0].mxu0
  %v876 = vpop.f32.mrb[0].mxu0
  %v877 = vadd.f32 %v61, %v876
  %v878 = vpop.f32.mrb[0].mxu0
  %879 = vdwg.mxu0
  %v880 = vmul.f32 %v760, %v760
  %v881 = vmul.f32 %v761, %v761
  %v882 = vmul.f32 %v762, %v762
  %v883 = vmul.f32 %v763, %v763
  %v884 = vmul.f32 %v764, %v764
  %v885 = vmul.f32 %v765, %v765
  %v886 = vsel %vm191, %v883, 0.0
  %v887 = vadd.f32 %v880, %v886
  %v888 = vrot.slane %v887, 4
  %v889 = vadd.f32 %v887, %v888
  %v890 = vrot.slane %v889, 2
  %v891 = vadd.f32 %v889, %v890
  %v892 = vrot.slane %v891, 1
  %v893 = vadd.f32 %v891, %v892
  %v894 = vsel %vm191, %v884, 0.0
  %v895 = vadd.f32 %v881, %v894
  %v896 = vrot.slane %v895, 4
  %v897 = vadd.f32 %v895, %v896
  %v898 = vrot.slane %v897, 2
  %v899 = vadd.f32 %v897, %v898
  %v900 = vrot.slane %v899, 1
  %v901 = vadd.f32 %v899, %v900
  %v902 = vsel %vm208, %v882, 0.0
  %v903 = vsel %vm210, %v885, 0.0
  %v904 = vadd.f32 %v902, %v903
  %v905 = vrot.slane %v904, 4
  %v906 = vadd.f32 %v904, %v905
  %v907 = vrot.slane %v906, 2
  %v908 = vadd.f32 %v906, %v907
  %v909 = vrot.slane %v908, 1
  %v910 = vadd.f32 %v908, %v909
  %v911 = vmul.f32 %v222, %v893
  %v912 = vmul.f32 %v222, %v901
  %v913 = vmul.f32 %v222, %v910
  %v914 = vmul.f32 %v227, %v893
  %v915 = vmul.f32 %v227, %v901
  %v916 = vmul.f32 %v227, %v910
  %v917 = vmul.f32 %v232, %v893
  %v918 = vmul.f32 %v232, %v901
  %v919 = vmul.f32 %v232, %v910
  %v920 = vmul.f32 %v237, %v893
  %v921 = vmul.f32 %v237, %v901
  %v922 = vmul.f32 %v237, %v910
  %vm923 = vcmp.gt.f32.partialorder %v813, 0.0
  %vm924 = vcmp.gt.f32.partialorder %v815, 0.0
  %vm925 = vcmp.gt.f32.partialorder %v866, 0.0
  %vm926 = vcmp.gt.f32.partialorder %v817, 0.0
  %vm927 = vcmp.gt.f32.partialorder %v819, 0.0
  %vm928 = vcmp.gt.f32.partialorder %v869, 0.0
  %vm929 = vcmp.gt.f32.partialorder %v823, 0.0
  %vm930 = vcmp.gt.f32.partialorder %v825, 0.0
  %vm931 = vcmp.gt.f32.partialorder %v874, 0.0
  %vm932 = vcmp.gt.f32.partialorder %v827, 0.0
  %vm933 = vcmp.gt.f32.partialorder %v829, 0.0
  %vm934 = vcmp.gt.f32.partialorder %v877, 0.0
  %v935 = vsel %vm923, %v813, 0.0
  %v936 = vsel %vm924, %v815, 0.0
  %v937 = vsel %vm925, %v866, 0.0
  %v938 = vsel %vm926, %v817, 0.0
  %v939 = vsel %vm927, %v819, 0.0
  %v940 = vsel %vm928, %v869, 0.0
  %v941 = vsel %vm929, %v823, 0.0
  %v942 = vsel %vm930, %v825, 0.0
  %v943 = vsel %vm931, %v874, 0.0
  %v944 = vsel %vm932, %v827, 0.0
  %v945 = vsel %vm933, %v829, 0.0
  %v946 = vsel %vm934, %v877, 0.0
  %v947 = vsel %vm923, %v911, 0.0
  %v948 = vsel %vm924, %v912, 0.0
  %v949 = vsel %vm925, %v913, 0.0
  %v950 = vsel %vm926, %v914, 0.0
  %v951 = vsel %vm927, %v915, 0.0
  %v952 = vsel %vm928, %v916, 0.0
  %v953 = vsel %vm929, %v917, 0.0
  %v954 = vsel %vm930, %v918, 0.0
  %v955 = vsel %vm931, %v919, 0.0
  %v956 = vsel %vm932, %v920, 0.0
  %v957 = vsel %vm933, %v921, 0.0
  %v958 = vsel %vm934, %v922, 0.0
  %vm959 = vcmp.gt.f32.partialorder %v935, %v735
  %vm960 = vcmp.gt.f32.partialorder %v936, %v736
  %vm961 = vcmp.gt.f32.partialorder %v937, %v737
  %vm962 = vcmp.gt.f32.partialorder %v938, %v738
  %vm963 = vcmp.gt.f32.partialorder %v939, %v739
  %vm964 = vcmp.gt.f32.partialorder %v940, %v740
  %vm965 = vcmp.gt.f32.partialorder %v941, %v741
  %vm966 = vcmp.gt.f32.partialorder %v942, %v742
  %vm967 = vcmp.gt.f32.partialorder %v943, %v743
  %vm968 = vcmp.gt.f32.partialorder %v944, %v744
  %vm969 = vcmp.gt.f32.partialorder %v945, %v745
  %vm970 = vcmp.gt.f32.partialorder %v946, %v746
  %v971 = vsel %vm959, %v935, %v735
  %v972 = vsel %vm960, %v936, %v736
  %v973 = vsel %vm961, %v937, %v737
  %v974 = vsel %vm962, %v938, %v738
  %v975 = vsel %vm963, %v939, %v739
  %v976 = vsel %vm964, %v940, %v740
  %v977 = vsel %vm965, %v941, %v741
  %v978 = vsel %vm966, %v942, %v742
  %v979 = vsel %vm967, %v943, %v743
  %v980 = vsel %vm968, %v944, %v744
  %v981 = vsel %vm969, %v945, %v745
  %v982 = vsel %vm970, %v946, %v746
  %v983 = vsel %vm959, %v947, %v747
  %v984 = vsel %vm960, %v948, %v748
  %v985 = vsel %vm961, %v949, %v749
  %v986 = vsel %vm962, %v950, %v750
  %v987 = vsel %vm963, %v951, %v751
  %v988 = vsel %vm964, %v952, %v752
  %v989 = vsel %vm965, %v953, %v753
  %v990 = vsel %vm966, %v954, %v754
  %v991 = vsel %vm967, %v955, %v755
  %v992 = vsel %vm968, %v956, %v756
  %v993 = vsel %vm969, %v957, %v757
  %v994 = vsel %vm970, %v958, %v758
  %995 = vst [vmem:[%s4] sm:$0xff] %v971
  %996 = vst [vmem:[%s4 + $0x8] sm:$0xff] %v972
  %997 = vst.msk [vmem:[%s4 + $0x10] sm:$0xff] %vm208, %v973
  %998 = vst [vmem:[%s4 + $0x18] sm:$0xff] %v974
  %999 = vst [vmem:[%s4 + $0x20] sm:$0xff] %v975
  %1000 = vst.msk [vmem:[%s4 + $0x28] sm:$0xff] %vm208, %v976
  %1001 = vst [vmem:[%s4 + $0x30] sm:$0xff] %v977
  %1002 = vst [vmem:[%s4 + $0x38] sm:$0xff] %v978
  %1003 = vst.msk [vmem:[%s4 + $0x40] sm:$0xff] %vm208, %v979
  %1004 = vst [vmem:[%s4 + $0x48] sm:$0xff] %v980
  %1005 = vst [vmem:[%s4 + $0x50] sm:$0xff] %v981
  %1006 = vst.msk [vmem:[%s4 + $0x58] sm:$0xff] %vm208, %v982
  %1007 = vst [vmem:[%s5] sm:$0xff] %v983
  %1008 = vst [vmem:[%s5 + $0x8] sm:$0xff] %v984
  %1009 = vst.msk [vmem:[%s5 + $0x10] sm:$0xff] %vm208, %v985
  %1010 = vst [vmem:[%s5 + $0x18] sm:$0xff] %v986
  %1011 = vst [vmem:[%s5 + $0x20] sm:$0xff] %v987
  %1012 = vst.msk [vmem:[%s5 + $0x28] sm:$0xff] %vm208, %v988
  %1013 = vst [vmem:[%s5 + $0x30] sm:$0xff] %v989
  %1014 = vst [vmem:[%s5 + $0x38] sm:$0xff] %v990
  %1015 = vst.msk [vmem:[%s5 + $0x40] sm:$0xff] %vm208, %v991
  %1016 = vst [vmem:[%s5 + $0x48] sm:$0xff] %v992
  %1017 = vst [vmem:[%s5 + $0x50] sm:$0xff] %v993
  %1018 = vst.msk [vmem:[%s5 + $0x58] sm:$0xff] %vm208, %v994
  // Predicated region
  $region18: #{vdp_net_forward.3} parent=0 // pred_check
    _
  $region19: #{vdp_net_forward.3} parent=0 // pred_check_branch
    %1020 = sbr.rel (0) target = $region21
  $region20: #{vdp_net_forward.3} parent=0 // pred_region
    _
  $region21: #{vdp_net_forward.3} parent=0 // pred_fallthru
    _
  // Predicated region
  $region22: #{vdp_net_forward.3} parent=0 // pred_check
    _
  $region23: #{vdp_net_forward.3} parent=0 // pred_check_branch
    %1022 = sbr.rel (0) target = $region25
  $region24: #{vdp_net_forward.3} parent=0 // pred_region
    _
  $region25: #{vdp_net_forward.3} parent=0 // pred_fallthru
    _
  // Predicated region
  $region26: #{vdp_net_forward.3} parent=0 // pred_check
    _
  $region27: #{vdp_net_forward.3} parent=0 // pred_check_branch
    %1024 = sbr.rel (0) target = $region29
  $region28: #{vdp_net_forward.3} parent=0 // pred_region
    _
  $region29: #{vdp_net_forward.3} parent=0 // pred_fallthru
    _
  // Predicated region
  $region30: #{vdp_net_forward.3} parent=0 // pred_check
    _
  $region31: #{vdp_net_forward.3} parent=0 // pred_check_branch
    %1026 = sbr.rel (0) target = $region33
  $region32: #{vdp_net_forward.3} parent=0 // pred_region
    _
  $region33: #{vdp_net_forward.3} parent=0 // pred_fallthru
    _

// kernel: vdp_net_forward.4
$region0: #{vdp_net_forward.4}
  #allocation0 [shape = 'u32[]', space=smem, size = 0x4, offset = 0x4, fixed_abs, tag = 'smem constant byte address 0x4 - core index']
  #allocation1 [shape = 'u32[144,128]{1,0:T(1,128)}', space=vmem, size = 0x12000, scoped, tag = 'internal scratch']
  %s0 = inlined_call_operand.vmem [shape: f32[4,32,800], index: 0, kind: input, shape index: {}]
  %s1 = inlined_call_operand.vmem [shape: f32[4,32,800], index: 1, kind: input, shape index: {}]
  %s2 = inlined_call_operand.vmem [shape: f32[800,64], index: 2, kind: input, shape index: {}]
  %s3 = inlined_call_operand.vmem [shape: f32[1,64], index: 3, kind: input, shape index: {}]
  %s4 = inlined_call_operand.vmem [shape: f32[1,64], index: 4, kind: input, shape index: {}]
  %s5 = inlined_call_operand.vmem [shape: f32[32,64], index: 5, kind: output, shape index: {0}]
  %s6 = inlined_call_operand.vmem [shape: f32[32,64], index: 6, kind: output, shape index: {1}]
  %7 = xla_tuple %s5, %s6
  %s8 = sld [smem:[#allocation0]]
  $region38: #{vdp_net_forward.4} parent=0
    _
  %s10 = ssub.s32 1, %s8
  %s11 = scalar_select 0, %s10, %s8
  // Predicated region
  $region2: #{vdp_net_forward.4} parent=0 // pred_check
    _
  $region3: #{vdp_net_forward.4} parent=0 // pred_check_branch
    %13 = sbr.rel (0) target = $region5
  $region4: #{vdp_net_forward.4} parent=0 // pred_region
    _
  $region5: #{vdp_net_forward.4} parent=0 // pred_fallthru
    _
  // Predicated region
  $region6: #{vdp_net_forward.4} parent=0 // pred_check
    _
  $region7: #{vdp_net_forward.4} parent=0 // pred_check_branch
    %15 = sbr.rel (0) target = $region9
  $region8: #{vdp_net_forward.4} parent=0 // pred_region
    _
  $region9: #{vdp_net_forward.4} parent=0 // pred_fallthru
    _
  // Predicated region
  $region10: #{vdp_net_forward.4} parent=0 // pred_check
    _
  $region11: #{vdp_net_forward.4} parent=0 // pred_check_branch
    %17 = sbr.rel (0) target = $region13
  $region12: #{vdp_net_forward.4} parent=0 // pred_region
    _
  $region13: #{vdp_net_forward.4} parent=0 // pred_fallthru
    _
  // Predicated region
  $region14: #{vdp_net_forward.4} parent=0 // pred_check
    _
  $region15: #{vdp_net_forward.4} parent=0 // pred_check_branch
    %19 = sbr.rel (0) target = $region17
  $region16: #{vdp_net_forward.4} parent=0 // pred_region
    _
  $region17: #{vdp_net_forward.4} parent=0 // pred_fallthru
    _
  // Predicated region
  $region18: #{vdp_net_forward.4} parent=0 // pred_check
    _
  $region19: #{vdp_net_forward.4} parent=0 // pred_check_branch
    %21 = sbr.rel (0) target = $region21
  $region20: #{vdp_net_forward.4} parent=0 // pred_region
    _
  $region21: #{vdp_net_forward.4} parent=0 // pred_fallthru
    _
  %v23 = vld [vmem:[%s2] sm:$0xff]
  %v24 = vld [vmem:[%s2 + $0x8] sm:$0xff]
  %v25 = vld [vmem:[%s2 + $0x10] sm:$0xff]
  %v26 = vld [vmem:[%s2 + $0x18] sm:$0xff]
  %v27 = vld [vmem:[%s2 + $0x20] sm:$0xff]
  %v28 = vld [vmem:[%s2 + $0x28] sm:$0xff]
  %v29 = vld [vmem:[%s2 + $0x30] sm:$0xff]
  %v30 = vld [vmem:[%s2 + $0x38] sm:$0xff]
  %v31 = vld [vmem:[%s2 + $0x40] sm:$0xff]
  %v32 = vld [vmem:[%s2 + $0x48] sm:$0xff]
  %v33 = vld [vmem:[%s2 + $0x50] sm:$0xff]
  %v34 = vld [vmem:[%s2 + $0x58] sm:$0xff]
  %v35 = vld [vmem:[%s2 + $0x60] sm:$0xff]
  %v36 = vld [vmem:[%s2 + $0x68] sm:$0xff]
  %v37 = vld [vmem:[%s2 + $0x70] sm:$0xff]
  %v38 = vld [vmem:[%s2 + $0x78] sm:$0xff]
  %v39 = vld [vmem:[%s2 + $0x80] sm:$0xff]
  %v40 = vld [vmem:[%s2 + $0x88] sm:$0xff]
  %v41 = vld [vmem:[%s2 + $0x90] sm:$0xff]
  %v42 = vld [vmem:[%s2 + $0x98] sm:$0xff]
  %v43 = vld [vmem:[%s2 + $0xa0] sm:$0xff]
  %v44 = vld [vmem:[%s2 + $0xa8] sm:$0xff]
  %v45 = vld [vmem:[%s2 + $0xb0] sm:$0xff]
  %v46 = vld [vmem:[%s2 + $0xb8] sm:$0xff]
  %v47 = vld [vmem:[%s2 + $0xc0] sm:$0xff]
  %v48 = vld [vmem:[%s2 + $0xc8] sm:$0xff]
  %v49 = vld [vmem:[%s2 + $0xd0] sm:$0xff]
  %v50 = vld [vmem:[%s2 + $0xd8] sm:$0xff]
  %v51 = vld [vmem:[%s2 + $0xe0] sm:$0xff]
  %v52 = vld [vmem:[%s2 + $0xe8] sm:$0xff]
  %v53 = vld [vmem:[%s2 + $0xf0] sm:$0xff]
  %v54 = vld [vmem:[%s2 + $0xf8] sm:$0xff]
  %v55 = vld [vmem:[%s2 + $0x100] sm:$0xff]
  %v56 = vld [vmem:[%s2 + $0x108] sm:$0xff]
  %v57 = vld [vmem:[%s2 + $0x110] sm:$0xff]
  %v58 = vld [vmem:[%s2 + $0x118] sm:$0xff]
  %v59 = vld [vmem:[%s2 + $0x120] sm:$0xff]
  %v60 = vld [vmem:[%s2 + $0x128] sm:$0xff]
  %v61 = vld [vmem:[%s2 + $0x130] sm:$0xff]
  %v62 = vld [vmem:[%s2 + $0x138] sm:$0xff]
  %v63 = vld [vmem:[%s2 + $0x140] sm:$0xff]
  %v64 = vld [vmem:[%s2 + $0x148] sm:$0xff]
  %v65 = vld [vmem:[%s2 + $0x150] sm:$0xff]
  %v66 = vld [vmem:[%s2 + $0x158] sm:$0xff]
  %v67 = vld [vmem:[%s2 + $0x160] sm:$0xff]
  %v68 = vld [vmem:[%s2 + $0x168] sm:$0xff]
  %v69 = vld [vmem:[%s2 + $0x170] sm:$0xff]
  %v70 = vld [vmem:[%s2 + $0x178] sm:$0xff]
  %v71 = vld [vmem:[%s2 + $0x180] sm:$0xff]
  %v72 = vld [vmem:[%s2 + $0x188] sm:$0xff]
  %v73 = vld [vmem:[%s2 + $0x190] sm:$0xff]
  %v74 = vld [vmem:[%s2 + $0x198] sm:$0xff]
  %v75 = vld [vmem:[%s2 + $0x1a0] sm:$0xff]
  %v76 = vld [vmem:[%s2 + $0x1a8] sm:$0xff]
  %v77 = vld [vmem:[%s2 + $0x1b0] sm:$0xff]
  %v78 = vld [vmem:[%s2 + $0x1b8] sm:$0xff]
  %v79 = vld [vmem:[%s2 + $0x1c0] sm:$0xff]
  %v80 = vld [vmem:[%s2 + $0x1c8] sm:$0xff]
  %v81 = vld [vmem:[%s2 + $0x1d0] sm:$0xff]
  %v82 = vld [vmem:[%s2 + $0x1d8] sm:$0xff]
  %v83 = vld [vmem:[%s2 + $0x1e0] sm:$0xff]
  %v84 = vld [vmem:[%s2 + $0x1e8] sm:$0xff]
  %v85 = vld [vmem:[%s2 + $0x1f0] sm:$0xff]
  %v86 = vld [vmem:[%s2 + $0x1f8] sm:$0xff]
  %v87 = vld [vmem:[%s2 + $0x200] sm:$0xff]
  %v88 = vld [vmem:[%s2 + $0x208] sm:$0xff]
  %v89 = vld [vmem:[%s2 + $0x210] sm:$0xff]
  %v90 = vld [vmem:[%s2 + $0x218] sm:$0xff]
  %v91 = vld [vmem:[%s2 + $0x220] sm:$0xff]
  %v92 = vld [vmem:[%s2 + $0x228] sm:$0xff]
  %v93 = vld [vmem:[%s2 + $0x230] sm:$0xff]
  %v94 = vld [vmem:[%s2 + $0x238] sm:$0xff]
  %v95 = vld [vmem:[%s2 + $0x240] sm:$0xff]
  %v96 = vld [vmem:[%s2 + $0x248] sm:$0xff]
  %v97 = vld [vmem:[%s2 + $0x250] sm:$0xff]
  %v98 = vld [vmem:[%s2 + $0x258] sm:$0xff]
  %v99 = vld [vmem:[%s2 + $0x260] sm:$0xff]
  %v100 = vld [vmem:[%s2 + $0x268] sm:$0xff]
  %v101 = vld [vmem:[%s2 + $0x270] sm:$0xff]
  %v102 = vld [vmem:[%s2 + $0x278] sm:$0xff]
  %v103 = vld [vmem:[%s2 + $0x280] sm:$0xff]
  %v104 = vld [vmem:[%s2 + $0x288] sm:$0xff]
  %v105 = vld [vmem:[%s2 + $0x290] sm:$0xff]
  %v106 = vld [vmem:[%s2 + $0x298] sm:$0xff]
  %v107 = vld [vmem:[%s2 + $0x2a0] sm:$0xff]
  %v108 = vld [vmem:[%s2 + $0x2a8] sm:$0xff]
  %v109 = vld [vmem:[%s2 + $0x2b0] sm:$0xff]
  %v110 = vld [vmem:[%s2 + $0x2b8] sm:$0xff]
  %v111 = vld [vmem:[%s2 + $0x2c0] sm:$0xff]
  %v112 = vld [vmem:[%s2 + $0x2c8] sm:$0xff]
  %v113 = vld [vmem:[%s2 + $0x2d0] sm:$0xff]
  %v114 = vld [vmem:[%s2 + $0x2d8] sm:$0xff]
  %v115 = vld [vmem:[%s2 + $0x2e0] sm:$0xff]
  %v116 = vld [vmem:[%s2 + $0x2e8] sm:$0xff]
  %v117 = vld [vmem:[%s2 + $0x2f0] sm:$0xff]
  %v118 = vld [vmem:[%s2 + $0x2f8] sm:$0xff]
  %v119 = vld [vmem:[%s2 + $0x300] sm:$0xff]
  %v120 = vld [vmem:[%s2 + $0x308] sm:$0xff]
  %v121 = vld [vmem:[%s2 + $0x310] sm:$0xff]
  %v122 = vld [vmem:[%s2 + $0x318] sm:$0xff]
  %v123 = vpack.c.bf16 %v24, %v23
  %v124 = vpack.c.bf16 %v26, %v25
  %v125 = vpack.c.bf16 %v28, %v27
  %v126 = vpack.c.bf16 %v30, %v29
  %v127 = vpack.c.bf16 %v32, %v31
  %v128 = vpack.c.bf16 %v34, %v33
  %v129 = vpack.c.bf16 %v36, %v35
  %v130 = vpack.c.bf16 %v38, %v37
  %v131 = vpack.c.bf16 %v40, %v39
  %v132 = vpack.c.bf16 %v42, %v41
  %v133 = vpack.c.bf16 %v44, %v43
  %v134 = vpack.c.bf16 %v46, %v45
  %v135 = vpack.c.bf16 %v48, %v47
  %v136 = vpack.c.bf16 %v50, %v49
  %v137 = vpack.c.bf16 %v52, %v51
  %v138 = vpack.c.bf16 %v54, %v53
  %v139 = vpack.c.bf16 %v56, %v55
  %v140 = vpack.c.bf16 %v58, %v57
  %v141 = vpack.c.bf16 %v60, %v59
  %v142 = vpack.c.bf16 %v62, %v61
  %v143 = vpack.c.bf16 %v64, %v63
  %v144 = vpack.c.bf16 %v66, %v65
  %v145 = vpack.c.bf16 %v68, %v67
  %v146 = vpack.c.bf16 %v70, %v69
  %v147 = vpack.c.bf16 %v72, %v71
  %v148 = vpack.c.bf16 %v74, %v73
  %v149 = vpack.c.bf16 %v76, %v75
  %v150 = vpack.c.bf16 %v78, %v77
  %v151 = vpack.c.bf16 %v80, %v79
  %v152 = vpack.c.bf16 %v82, %v81
  %v153 = vpack.c.bf16 %v84, %v83
  %v154 = vpack.c.bf16 %v86, %v85
  %v155 = vpack.c.bf16 %v88, %v87
  %v156 = vpack.c.bf16 %v90, %v89
  %v157 = vpack.c.bf16 %v92, %v91
  %v158 = vpack.c.bf16 %v94, %v93
  %v159 = vpack.c.bf16 %v96, %v95
  %v160 = vpack.c.bf16 %v98, %v97
  %v161 = vpack.c.bf16 %v100, %v99
  %v162 = vpack.c.bf16 %v102, %v101
  %v163 = vpack.c.bf16 %v104, %v103
  %v164 = vpack.c.bf16 %v106, %v105
  %v165 = vpack.c.bf16 %v108, %v107
  %v166 = vpack.c.bf16 %v110, %v109
  %v167 = vpack.c.bf16 %v112, %v111
  %v168 = vpack.c.bf16 %v114, %v113
  %v169 = vpack.c.bf16 %v116, %v115
  %v170 = vpack.c.bf16 %v118, %v117
  %v171 = vpack.c.bf16 %v120, %v119
  %v172 = vpack.c.bf16 %v122, %v121
  %v173 = vmul.f32 %v23, %v23
  %v174 = vmul.f32 %v24, %v24
  %v175 = vmul.f32 %v25, %v25
  %v176 = vmul.f32 %v26, %v26
  %v177 = vmul.f32 %v27, %v27
  %v178 = vmul.f32 %v28, %v28
  %v179 = vmul.f32 %v29, %v29
  %v180 = vmul.f32 %v30, %v30
  %v181 = vmul.f32 %v31, %v31
  %v182 = vmul.f32 %v32, %v32
  %v183 = vmul.f32 %v33, %v33
  %v184 = vmul.f32 %v34, %v34
  %v185 = vmul.f32 %v35, %v35
  %v186 = vmul.f32 %v36, %v36
  %v187 = vmul.f32 %v37, %v37
  %v188 = vmul.f32 %v38, %v38
  %v189 = vmul.f32 %v39, %v39
  %v190 = vmul.f32 %v40, %v40
  %v191 = vmul.f32 %v41, %v41
  %v192 = vmul.f32 %v42, %v42
  %v193 = vmul.f32 %v43, %v43
  %v194 = vmul.f32 %v44, %v44
  %v195 = vmul.f32 %v45, %v45
  %v196 = vmul.f32 %v46, %v46
  %v197 = vmul.f32 %v47, %v47
  %v198 = vmul.f32 %v48, %v48
  %v199 = vmul.f32 %v49, %v49
  %v200 = vmul.f32 %v50, %v50
  %v201 = vmul.f32 %v51, %v51
  %v202 = vmul.f32 %v52, %v52
  %v203 = vmul.f32 %v53, %v53
  %v204 = vmul.f32 %v54, %v54
  %v205 = vmul.f32 %v55, %v55
  %v206 = vmul.f32 %v56, %v56
  %v207 = vmul.f32 %v57, %v57
  %v208 = vmul.f32 %v58, %v58
  %v209 = vmul.f32 %v59, %v59
  %v210 = vmul.f32 %v60, %v60
  %v211 = vmul.f32 %v61, %v61
  %v212 = vmul.f32 %v62, %v62
  %v213 = vmul.f32 %v63, %v63
  %v214 = vmul.f32 %v64, %v64
  %v215 = vmul.f32 %v65, %v65
  %v216 = vmul.f32 %v66, %v66
  %v217 = vmul.f32 %v67, %v67
  %v218 = vmul.f32 %v68, %v68
  %v219 = vmul.f32 %v69, %v69
  %v220 = vmul.f32 %v70, %v70
  %v221 = vmul.f32 %v71, %v71
  %v222 = vmul.f32 %v72, %v72
  %v223 = vmul.f32 %v73, %v73
  %v224 = vmul.f32 %v74, %v74
  %v225 = vmul.f32 %v75, %v75
  %v226 = vmul.f32 %v76, %v76
  %v227 = vmul.f32 %v77, %v77
  %v228 = vmul.f32 %v78, %v78
  %v229 = vmul.f32 %v79, %v79
  %v230 = vmul.f32 %v80, %v80
  %v231 = vmul.f32 %v81, %v81
  %v232 = vmul.f32 %v82, %v82
  %v233 = vmul.f32 %v83, %v83
  %v234 = vmul.f32 %v84, %v84
  %v235 = vmul.f32 %v85, %v85
  %v236 = vmul.f32 %v86, %v86
  %v237 = vmul.f32 %v87, %v87
  %v238 = vmul.f32 %v88, %v88
  %v239 = vmul.f32 %v89, %v89
  %v240 = vmul.f32 %v90, %v90
  %v241 = vmul.f32 %v91, %v91
  %v242 = vmul.f32 %v92, %v92
  %v243 = vmul.f32 %v93, %v93
  %v244 = vmul.f32 %v94, %v94
  %v245 = vmul.f32 %v95, %v95
  %v246 = vmul.f32 %v96, %v96
  %v247 = vmul.f32 %v97, %v97
  %v248 = vmul.f32 %v98, %v98
  %v249 = vmul.f32 %v99, %v99
  %v250 = vmul.f32 %v100, %v100
  %v251 = vmul.f32 %v101, %v101
  %v252 = vmul.f32 %v102, %v102
  %v253 = vmul.f32 %v103, %v103
  %v254 = vmul.f32 %v104, %v104
  %v255 = vmul.f32 %v105, %v105
  %v256 = vmul.f32 %v106, %v106
  %v257 = vmul.f32 %v107, %v107
  %v258 = vmul.f32 %v108, %v108
  %v259 = vmul.f32 %v109, %v109
  %v260 = vmul.f32 %v110, %v110
  %v261 = vmul.f32 %v111, %v111
  %v262 = vmul.f32 %v112, %v112
  %v263 = vmul.f32 %v113, %v113
  %v264 = vmul.f32 %v114, %v114
  %v265 = vmul.f32 %v115, %v115
  %v266 = vmul.f32 %v116, %v116
  %v267 = vmul.f32 %v117, %v117
  %v268 = vmul.f32 %v118, %v118
  %v269 = vmul.f32 %v119, %v119
  %v270 = vmul.f32 %v120, %v120
  %v271 = vmul.f32 %v121, %v121
  %v272 = vmul.f32 %v122, %v122
  %v273 = vpack.c.bf16 %v174, %v173
  %v274 = vpack.c.bf16 %v176, %v175
  %v275 = vpack.c.bf16 %v178, %v177
  %v276 = vpack.c.bf16 %v180, %v179
  %v277 = vpack.c.bf16 %v182, %v181
  %v278 = vpack.c.bf16 %v184, %v183
  %v279 = vpack.c.bf16 %v186, %v185
  %v280 = vpack.c.bf16 %v188, %v187
  %v281 = vpack.c.bf16 %v190, %v189
  %v282 = vpack.c.bf16 %v192, %v191
  %v283 = vpack.c.bf16 %v194, %v193
  %v284 = vpack.c.bf16 %v196, %v195
  %v285 = vpack.c.bf16 %v198, %v197
  %v286 = vpack.c.bf16 %v200, %v199
  %v287 = vpack.c.bf16 %v202, %v201
  %v288 = vpack.c.bf16 %v204, %v203
  %v289 = vpack.c.bf16 %v206, %v205
  %v290 = vpack.c.bf16 %v208, %v207
  %v291 = vpack.c.bf16 %v210, %v209
  %v292 = vpack.c.bf16 %v212, %v211
  %v293 = vpack.c.bf16 %v214, %v213
  %v294 = vpack.c.bf16 %v216, %v215
  %v295 = vpack.c.bf16 %v218, %v217
  %v296 = vpack.c.bf16 %v220, %v219
  %v297 = vpack.c.bf16 %v222, %v221
  %v298 = vpack.c.bf16 %v224, %v223
  %v299 = vpack.c.bf16 %v226, %v225
  %v300 = vpack.c.bf16 %v228, %v227
  %v301 = vpack.c.bf16 %v230, %v229
  %v302 = vpack.c.bf16 %v232, %v231
  %v303 = vpack.c.bf16 %v234, %v233
  %v304 = vpack.c.bf16 %v236, %v235
  %v305 = vpack.c.bf16 %v238, %v237
  %v306 = vpack.c.bf16 %v240, %v239
  %v307 = vpack.c.bf16 %v242, %v241
  %v308 = vpack.c.bf16 %v244, %v243
  %v309 = vpack.c.bf16 %v246, %v245
  %v310 = vpack.c.bf16 %v248, %v247
  %v311 = vpack.c.bf16 %v250, %v249
  %v312 = vpack.c.bf16 %v252, %v251
  %v313 = vpack.c.bf16 %v254, %v253
  %v314 = vpack.c.bf16 %v256, %v255
  %v315 = vpack.c.bf16 %v258, %v257
  %v316 = vpack.c.bf16 %v260, %v259
  %v317 = vpack.c.bf16 %v262, %v261
  %v318 = vpack.c.bf16 %v264, %v263
  %v319 = vpack.c.bf16 %v266, %v265
  %v320 = vpack.c.bf16 %v268, %v267
  %v321 = vpack.c.bf16 %v270, %v269
  %v322 = vpack.c.bf16 %v272, %v271
  %v323 = vld [vmem:[%s3] sm:$0x1]
  %v324 = vld [vmem:[%s4] sm:$0x1]
  %v325 = vld [vmem:[%s0] sm:$0xff]
  %v326 = vld [vmem:[%s0 + $0x8] sm:$0xff]
  %v327 = vld [vmem:[%s0 + $0x10] sm:$0xff]
  %v328 = vld [vmem:[%s0 + $0x18] sm:$0xff]
  %v329 = vld [vmem:[%s0 + $0x20] sm:$0xff]
  %v330 = vld [vmem:[%s0 + $0x28] sm:$0xff]
  %v331 = vld [vmem:[%s0 + $0x30] sm:$0xff]
  %v332 = vld [vmem:[%s0 + $0x38] sm:$0xff]
  %v333 = vld [vmem:[%s0 + $0x40] sm:$0xff]
  %v334 = vld [vmem:[%s0 + $0x48] sm:$0xff]
  %v335 = vld [vmem:[%s0 + $0x50] sm:$0xff]
  %v336 = vld [vmem:[%s0 + $0x58] sm:$0xff]
  %v337 = vld [vmem:[%s0 + $0x60] sm:$0xff]
  %v338 = vld [vmem:[%s0 + $0x68] sm:$0xff]
  %v339 = vld [vmem:[%s0 + $0x70] sm:$0xff]
  %v340 = vld [vmem:[%s0 + $0x78] sm:$0xff]
  %v341 = vld [vmem:[%s0 + $0x80] sm:$0xff]
  %v342 = vld [vmem:[%s0 + $0x88] sm:$0xff]
  %v343 = vld [vmem:[%s0 + $0x90] sm:$0xff]
  %v344 = vld [vmem:[%s0 + $0x98] sm:$0xff]
  %v345 = vld [vmem:[%s0 + $0xa0] sm:$0xff]
  %v346 = vld [vmem:[%s0 + $0xa8] sm:$0xff]
  %v347 = vld [vmem:[%s0 + $0xb0] sm:$0xff]
  %v348 = vld [vmem:[%s0 + $0xb8] sm:$0xff]
  %v349 = vld [vmem:[%s0 + $0xc0] sm:$0xff]
  %v350 = vld [vmem:[%s0 + $0xc8] sm:$0xff]
  %v351 = vld [vmem:[%s0 + $0xd0] sm:$0xff]
  %v352 = vld [vmem:[%s0 + $0xd8] sm:$0xff]
  %v353 = vld [vmem:[%s1] sm:$0xff]
  %v354 = vld [vmem:[%s1 + $0x8] sm:$0xff]
  %v355 = vld [vmem:[%s1 + $0x10] sm:$0xff]
  %v356 = vld [vmem:[%s1 + $0x18] sm:$0xff]
  %v357 = vld [vmem:[%s1 + $0x20] sm:$0xff]
  %v358 = vld [vmem:[%s1 + $0x28] sm:$0xff]
  %v359 = vld [vmem:[%s1 + $0x30] sm:$0xff]
  %v360 = vld [vmem:[%s1 + $0x38] sm:$0xff]
  %v361 = vld [vmem:[%s1 + $0x40] sm:$0xff]
  %v362 = vld [vmem:[%s1 + $0x48] sm:$0xff]
  %v363 = vld [vmem:[%s1 + $0x50] sm:$0xff]
  %v364 = vld [vmem:[%s1 + $0x58] sm:$0xff]
  %v365 = vld [vmem:[%s1 + $0x60] sm:$0xff]
  %v366 = vld [vmem:[%s1 + $0x68] sm:$0xff]
  %v367 = vld [vmem:[%s1 + $0x70] sm:$0xff]
  %v368 = vld [vmem:[%s1 + $0x78] sm:$0xff]
  %v369 = vld [vmem:[%s1 + $0x80] sm:$0xff]
  %v370 = vld [vmem:[%s1 + $0x88] sm:$0xff]
  %v371 = vld [vmem:[%s1 + $0x90] sm:$0xff]
  %v372 = vld [vmem:[%s1 + $0x98] sm:$0xff]
  %v373 = vld [vmem:[%s1 + $0xa0] sm:$0xff]
  %v374 = vld [vmem:[%s1 + $0xa8] sm:$0xff]
  %v375 = vld [vmem:[%s1 + $0xb0] sm:$0xff]
  %v376 = vld [vmem:[%s1 + $0xb8] sm:$0xff]
  %v377 = vld [vmem:[%s1 + $0xc0] sm:$0xff]
  %v378 = vld [vmem:[%s1 + $0xc8] sm:$0xff]
  %v379 = vld [vmem:[%s1 + $0xd0] sm:$0xff]
  %v380 = vld [vmem:[%s1 + $0xd8] sm:$0xff]
  %v381 = vpack.c.bf16 %v332, %v325
  %v382 = vpack.c.bf16 %v333, %v326
  %v383 = vpack.c.bf16 %v334, %v327
  %v384 = vpack.c.bf16 %v335, %v328
  %v385 = vpack.c.bf16 %v336, %v329
  %v386 = vpack.c.bf16 %v337, %v330
  %v387 = vpack.c.bf16 %v338, %v331
  %v388 = vpack.c.bf16 %v346, %v339
  %v389 = vpack.c.bf16 %v347, %v340
  %v390 = vpack.c.bf16 %v348, %v341
  %v391 = vpack.c.bf16 %v349, %v342
  %v392 = vpack.c.bf16 %v350, %v343
  %v393 = vpack.c.bf16 %v351, %v344
  %v394 = vpack.c.bf16 %v352, %v345
  %v396 = vlaneseq
  %v397 = vshrl.u32 %v396, 7
  %v398 = vsub.s32 0, %v397
  %v399 = vrot.slane %v323, %v398
  %vm401 = vcmask 261120
  %v403 = vsel %vm401, %v387, 0
  %v406 = vsel %vm401, %v394, 0
  %408 = vmatprep.subr.bf16.mxu0 0
  %409 = vmatpush1.bf16.msra.mxu0 %v123
  %410 = vmatprep.subr.bf16.mxu0 0
  %411 = vmatpush1.bf16.msra.mxu0 %v124
  %412 = vmatprep.subr.bf16.mxu0 0
  %413 = vmatpush1.bf16.msra.mxu0 %v125
  %414 = vmatprep.subr.bf16.mxu0 0
  %415 = vmatpush1.bf16.msra.mxu0 %v126
  %416 = vmatprep.subr.bf16.mxu0 0
  %417 = vmatpush1.bf16.msra.mxu0 %v127
  %418 = vmatprep.subr.bf16.mxu0 0
  %419 = vmatpush1.bf16.msra.mxu0 %v128
  %420 = vmatprep.subr.bf16.mxu0 0
  %421 = vmatpush1.bf16.msra.mxu0 %v129
  %422 = vmatprep.subr.bf16.mxu0 0
  %423 = vmatpush1.bf16.msra.mxu0 %v130
  %424 = vmatprep.subr.bf16.mxu0 0
  %425 = vmatpush1.bf16.msra.mxu0 %v131
  %426 = vmatprep.subr.bf16.mxu0 0
  %427 = vmatpush1.bf16.msra.mxu0 %v132
  %428 = vmatprep.subr.bf16.mxu0 0
  %429 = vmatpush1.bf16.msra.mxu0 %v133
  %430 = vmatprep.subr.bf16.mxu0 0
  %431 = vmatpush1.bf16.msra.mxu0 %v134
  %432 = vmatprep.subr.bf16.mxu0 0
  %433 = vmatpush1.bf16.msra.mxu0 %v135
  %434 = vmatprep.subr.bf16.mxu0 0
  %435 = vmatpush1.bf16.msra.mxu0 %v136
  %436 = vmatprep.subr.bf16.mxu0 0
  %437 = vmatpush1.bf16.msra.mxu0 %v137
  %438 = vmatprep.subr.bf16.mxu0 0
  %439 = vmatpush1.bf16.msra.mxu0 %v138
  %440 = vmatprep.mubr.bf16.mxu0 %v382
  %441 = vmatmul.mubr.bf16.gmra.mrb[0].mxu0 %v381
  %v442 = vpop.f32.mrb[0].mxu0
  %v443 = vadd.f32 %v399, %v442
  %v444 = vpop.f32.mrb[0].mxu0
  %v445 = vpop.f32.mrb[0].mxu0
  %v446 = vadd.f32 %v399, %v445
  %v447 = vpop.f32.mrb[0].mxu0
  %448 = vmatprep.mubr.bf16.mxu0 %v389
  %449 = vmatmul.mubr.bf16.gmra.mrb[0].mxu0 %v388
  %v450 = vpop.f32.mrb[0].mxu0
  %v451 = vadd.f32 %v399, %v450
  %v452 = vpop.f32.mrb[0].mxu0
  %v453 = vpop.f32.mrb[0].mxu0
  %v454 = vadd.f32 %v399, %v453
  %v455 = vpop.f32.mrb[0].mxu0
  %456 = vdwg.mxu0
  %457 = vmatprep.subr.bf16.mxu0 0
  %458 = vmatpush1.bf16.msra.mxu0 %v139
  %459 = vmatprep.subr.bf16.mxu0 0
  %460 = vmatpush1.bf16.msra.mxu0 %v140
  %461 = vmatprep.subr.bf16.mxu0 0
  %462 = vmatpush1.bf16.msra.mxu0 %v141
  %463 = vmatprep.subr.bf16.mxu0 0
  %464 = vmatpush1.bf16.msra.mxu0 %v142
  %465 = vmatprep.subr.bf16.mxu0 0
  %466 = vmatpush1.bf16.msra.mxu0 %v143
  %467 = vmatprep.subr.bf16.mxu0 0
  %468 = vmatpush1.bf16.msra.mxu0 %v144
  %469 = vmatprep.subr.bf16.mxu0 0
  %470 = vmatpush1.bf16.msra.mxu0 %v145
  %471 = vmatprep.subr.bf16.mxu0 0
  %472 = vmatpush1.bf16.msra.mxu0 %v146
  %473 = vmatprep.subr.bf16.mxu0 0
  %474 = vmatpush1.bf16.msra.mxu0 %v147
  %475 = vmatprep.subr.bf16.mxu0 0
  %476 = vmatpush1.bf16.msra.mxu0 %v148
  %477 = vmatprep.subr.bf16.mxu0 0
  %478 = vmatpush1.bf16.msra.mxu0 %v149
  %479 = vmatprep.subr.bf16.mxu0 0
  %480 = vmatpush1.bf16.msra.mxu0 %v150
  %481 = vmatprep.subr.bf16.mxu0 0
  %482 = vmatpush1.bf16.msra.mxu0 %v151
  %483 = vmatprep.subr.bf16.mxu0 0
  %484 = vmatpush1.bf16.msra.mxu0 %v152
  %485 = vmatprep.subr.bf16.mxu0 0
  %486 = vmatpush1.bf16.msra.mxu0 %v153
  %487 = vmatprep.subr.bf16.mxu0 0
  %488 = vmatpush1.bf16.msra.mxu0 %v154
  %489 = vmatprep.mubr.bf16.mxu0 %v384
  %490 = vmatmul.mubr.bf16.gmra.mrb[0].mxu0 %v383
  %v491 = vpop.f32.mrb[0].mxu0
  %v492 = vadd.f32 %v443, %v491
  %v493 = vpop.f32.mrb[0].mxu0
  %v494 = vpop.f32.mrb[0].mxu0
  %v495 = vadd.f32 %v446, %v494
  %v496 = vpop.f32.mrb[0].mxu0
  %497 = vmatprep.mubr.bf16.mxu0 %v391
  %498 = vmatmul.mubr.bf16.gmra.mrb[0].mxu0 %v390
  %v499 = vpop.f32.mrb[0].mxu0
  %v500 = vadd.f32 %v451, %v499
  %v501 = vpop.f32.mrb[0].mxu0
  %v502 = vpop.f32.mrb[0].mxu0
  %v503 = vadd.f32 %v454, %v502
  %v504 = vpop.f32.mrb[0].mxu0
  %505 = vdwg.mxu0
  %506 = vmatprep.subr.bf16.mxu0 0
  %507 = vmatpush1.bf16.msra.mxu0 %v155
  %508 = vmatprep.subr.bf16.mxu0 0
  %509 = vmatpush1.bf16.msra.mxu0 %v156
  %510 = vmatprep.subr.bf16.mxu0 0
  %511 = vmatpush1.bf16.msra.mxu0 %v157
  %512 = vmatprep.subr.bf16.mxu0 0
  %513 = vmatpush1.bf16.msra.mxu0 %v158
  %514 = vmatprep.subr.bf16.mxu0 0
  %515 = vmatpush1.bf16.msra.mxu0 %v159
  %516 = vmatprep.subr.bf16.mxu0 0
  %517 = vmatpush1.bf16.msra.mxu0 %v160
  %518 = vmatprep.subr.bf16.mxu0 0
  %519 = vmatpush1.bf16.msra.mxu0 %v161
  %520 = vmatprep.subr.bf16.mxu0 0
  %521 = vmatpush1.bf16.msra.mxu0 %v162
  %522 = vmatprep.subr.bf16.mxu0 0
  %523 = vmatpush1.bf16.msra.mxu0 %v163
  %524 = vmatprep.subr.bf16.mxu0 0
  %525 = vmatpush1.bf16.msra.mxu0 %v164
  %526 = vmatprep.subr.bf16.mxu0 0
  %527 = vmatpush1.bf16.msra.mxu0 %v165
  %528 = vmatprep.subr.bf16.mxu0 0
  %529 = vmatpush1.bf16.msra.mxu0 %v166
  %530 = vmatprep.subr.bf16.mxu0 0
  %531 = vmatpush1.bf16.msra.mxu0 %v167
  %532 = vmatprep.subr.bf16.mxu0 0
  %533 = vmatpush1.bf16.msra.mxu0 %v168
  %534 = vmatprep.subr.bf16.mxu0 0
  %535 = vmatpush1.bf16.msra.mxu0 %v169
  %536 = vmatprep.subr.bf16.mxu0 0
  %537 = vmatpush1.bf16.msra.mxu0 %v170
  %538 = vmatprep.mubr.bf16.mxu0 %v386
  %539 = vmatmul.mubr.bf16.gmra.mrb[0].mxu0 %v385
  %v540 = vpop.f32.mrb[0].mxu0
  %v541 = vadd.f32 %v492, %v540
  %v542 = vpop.f32.mrb[0].mxu0
  %v543 = vpop.f32.mrb[0].mxu0
  %v544 = vadd.f32 %v495, %v543
  %v545 = vpop.f32.mrb[0].mxu0
  %546 = vmatprep.mubr.bf16.mxu0 %v393
  %547 = vmatmul.mubr.bf16.gmra.mrb[0].mxu0 %v392
  %v548 = vpop.f32.mrb[0].mxu0
  %v549 = vadd.f32 %v500, %v548
  %v550 = vpop.f32.mrb[0].mxu0
  %v551 = vpop.f32.mrb[0].mxu0
  %v552 = vadd.f32 %v503, %v551
  %v553 = vpop.f32.mrb[0].mxu0
  %554 = vdwg.mxu0
  %555 = vmatprep.subr.bf16.mxu0 0
  %556 = vmatpush1.bf16.msra.mxu0 %v171
  %557 = vmatprep.subr.bf16.mxu0 0
  %558 = vmatpush1.bf16.msra.mxu0 %v172
  %559 = vmatprep.subr.bf16.mxu0 0
  %560 = vmatpush1.bf16.msra.mxu0 0
  %561 = vmatprep.subr.bf16.mxu0 0
  %562 = vmatpush1.bf16.msra.mxu0 0
  %563 = vmatprep.subr.bf16.mxu0 0
  %564 = vmatpush1.bf16.msra.mxu0 0
  %565 = vmatprep.subr.bf16.mxu0 0
  %566 = vmatpush1.bf16.msra.mxu0 0
  %567 = vmatprep.subr.bf16.mxu0 0
  %568 = vmatpush1.bf16.msra.mxu0 0
  %569 = vmatprep.subr.bf16.mxu0 0
  %570 = vmatpush1.bf16.msra.mxu0 0
  %571 = vmatprep.subr.bf16.mxu0 0
  %572 = vmatpush1.bf16.msra.mxu0 0
  %573 = vmatprep.subr.bf16.mxu0 0
  %574 = vmatpush1.bf16.msra.mxu0 0
  %575 = vmatprep.subr.bf16.mxu0 0
  %576 = vmatpush1.bf16.msra.mxu0 0
  %577 = vmatprep.subr.bf16.mxu0 0
  %578 = vmatpush1.bf16.msra.mxu0 0
  %579 = vmatprep.subr.bf16.mxu0 0
  %580 = vmatpush1.bf16.msra.mxu0 0
  %581 = vmatprep.subr.bf16.mxu0 0
  %582 = vmatpush1.bf16.msra.mxu0 0
  %583 = vmatprep.subr.bf16.mxu0 0
  %584 = vmatpush1.bf16.msra.mxu0 0
  %585 = vmatprep.subr.bf16.mxu0 0
  %586 = vmatpush1.bf16.msra.mxu0 0
  %587 = vmatprep.mubr.bf16.mxu0 0
  %588 = vmatmul.mubr.bf16.gmra.mrb[0].mxu0 %v403
  %v589 = vpop.f32.mrb[0].mxu0
  %v590 = vadd.f32 %v541, %v589
  %v591 = vpop.f32.mrb[0].mxu0
  %v592 = vpop.f32.mrb[0].mxu0
  %v593 = vadd.f32 %v544, %v592
  %v594 = vpop.f32.mrb[0].mxu0
  %595 = vmatprep.mubr.bf16.mxu0 0
  %596 = vmatmul.mubr.bf16.gmra.mrb[0].mxu0 %v406
  %v597 = vpop.f32.mrb[0].mxu0
  %v598 = vadd.f32 %v549, %v597
  %v599 = vpop.f32.mrb[0].mxu0
  %v600 = vpop.f32.mrb[0].mxu0
  %v601 = vadd.f32 %v552, %v600
  %v602 = vpop.f32.mrb[0].mxu0
  %603 = vdwg.mxu0
  %v604 = vmul.f32 %v325, %v325
  %v605 = vmul.f32 %v326, %v326
  %v606 = vmul.f32 %v327, %v327
  %v607 = vmul.f32 %v328, %v328
  %v608 = vmul.f32 %v329, %v329
  %v609 = vmul.f32 %v330, %v330
  %v610 = vmul.f32 %v331, %v331
  %v611 = vmul.f32 %v332, %v332
  %v612 = vmul.f32 %v333, %v333
  %v613 = vmul.f32 %v334, %v334
  %v614 = vmul.f32 %v335, %v335
  %v615 = vmul.f32 %v336, %v336
  %v616 = vmul.f32 %v337, %v337
  %v617 = vmul.f32 %v338, %v338
  %v618 = vmul.f32 %v339, %v339
  %v619 = vmul.f32 %v340, %v340
  %v620 = vmul.f32 %v341, %v341
  %v621 = vmul.f32 %v342, %v342
  %v622 = vmul.f32 %v343, %v343
  %v623 = vmul.f32 %v344, %v344
  %v624 = vmul.f32 %v345, %v345
  %v625 = vmul.f32 %v346, %v346
  %v626 = vmul.f32 %v347, %v347
  %v627 = vmul.f32 %v348, %v348
  %v628 = vmul.f32 %v349, %v349
  %v629 = vmul.f32 %v350, %v350
  %v630 = vmul.f32 %v351, %v351
  %v631 = vmul.f32 %v352, %v352
  %v632 = vadd.f32 %v353, %v604
  %v633 = vadd.f32 %v354, %v605
  %v634 = vadd.f32 %v355, %v606
  %v635 = vadd.f32 %v356, %v607
  %v636 = vadd.f32 %v357, %v608
  %v637 = vadd.f32 %v358, %v609
  %v638 = vadd.f32 %v359, %v610
  %v639 = vadd.f32 %v360, %v611
  %v640 = vadd.f32 %v361, %v612
  %v641 = vadd.f32 %v362, %v613
  %v642 = vadd.f32 %v363, %v614
  %v643 = vadd.f32 %v364, %v615
  %v644 = vadd.f32 %v365, %v616
  %v645 = vadd.f32 %v366, %v617
  %v646 = vadd.f32 %v367, %v618
  %v647 = vadd.f32 %v368, %v619
  %v648 = vadd.f32 %v369, %v620
  %v649 = vadd.f32 %v370, %v621
  %v650 = vadd.f32 %v371, %v622
  %v651 = vadd.f32 %v372, %v623
  %v652 = vadd.f32 %v373, %v624
  %v653 = vadd.f32 %v374, %v625
  %v654 = vadd.f32 %v375, %v626
  %v655 = vadd.f32 %v376, %v627
  %v656 = vadd.f32 %v377, %v628
  %v657 = vadd.f32 %v378, %v629
  %v658 = vadd.f32 %v379, %v630
  %v659 = vadd.f32 %v380, %v631
  %v660 = vadd.f32 %v632, %v633
  %v661 = vadd.f32 %v660, %v634
  %v662 = vadd.f32 %v661, %v635
  %v663 = vadd.f32 %v662, %v636
  %v664 = vadd.f32 %v663, %v637
  %v665 = vsel %vm401, %v638, 0.0
  %v666 = vadd.f32 %v664, %v665
  %667 = vadd.xlane.f32.xlu0 %v666
  %v668 = vpop.xlane.xlu0 %667
  %v669 = vadd.f32 %v639, %v640
  %v670 = vadd.f32 %v669, %v641
  %v671 = vadd.f32 %v670, %v642
  %v672 = vadd.f32 %v671, %v643
  %v673 = vadd.f32 %v672, %v644
  %v674 = vsel %vm401, %v645, 0.0
  %v675 = vadd.f32 %v673, %v674
  %676 = vadd.xlane.f32.xlu0 %v675
  %v677 = vpop.xlane.xlu0 %676
  %v678 = vadd.f32 %v646, %v647
  %v679 = vadd.f32 %v678, %v648
  %v680 = vadd.f32 %v679, %v649
  %v681 = vadd.f32 %v680, %v650
  %v682 = vadd.f32 %v681, %v651
  %v683 = vsel %vm401, %v652, 0.0
  %v684 = vadd.f32 %v682, %v683
  %685 = vadd.xlane.f32.xlu0 %v684
  %v686 = vpop.xlane.xlu0 %685
  %v687 = vadd.f32 %v653, %v654
  %v688 = vadd.f32 %v687, %v655
  %v689 = vadd.f32 %v688, %v656
  %v690 = vadd.f32 %v689, %v657
  %v691 = vadd.f32 %v690, %v658
  %v692 = vsel %vm401, %v659, 0.0
  %v693 = vadd.f32 %v691, %v692
  %694 = vadd.xlane.f32.xlu0 %v693
  %v695 = vpop.xlane.xlu0 %694
  %v696 = vpack.c.bf16 %v360, %v353
  %v697 = vpack.c.bf16 %v361, %v354
  %v698 = vpack.c.bf16 %v362, %v355
  %v699 = vpack.c.bf16 %v363, %v356
  %v700 = vpack.c.bf16 %v364, %v357
  %v701 = vpack.c.bf16 %v365, %v358
  %v702 = vpack.c.bf16 %v366, %v359
  %v703 = vpack.c.bf16 %v374, %v367
  %v704 = vpack.c.bf16 %v375, %v368
  %v705 = vpack.c.bf16 %v376, %v369
  %v706 = vpack.c.bf16 %v377, %v370
  %v707 = vpack.c.bf16 %v378, %v371
  %v708 = vpack.c.bf16 %v379, %v372
  %v709 = vpack.c.bf16 %v380, %v373
  %v711 = vlaneseq
  %v712 = vshrl.u32 %v711, 7
  %v713 = vsub.s32 0, %v712
  %v714 = vrot.slane %v324, %v713
  %v716 = vmul.f32 %v668, %v714
  %v717 = vmul.f32 %v677, %v714
  %v718 = vmul.f32 %v686, %v714
  %v719 = vmul.f32 %v695, %v714
  %v721 = vsel %vm401, %v702, 0
  %v724 = vsel %vm401, %v709, 0
  %726 = vmatprep.subr.bf16.mxu0 0
  %727 = vmatpush1.bf16.msra.mxu0 %v273
  %728 = vmatprep.subr.bf16.mxu0 0
  %729 = vmatpush1.bf16.msra.mxu0 %v274
  %730 = vmatprep.subr.bf16.mxu0 0
  %731 = vmatpush1.bf16.msra.mxu0 %v275
  %732 = vmatprep.subr.bf16.mxu0 0
  %733 = vmatpush1.bf16.msra.mxu0 %v276
  %734 = vmatprep.subr.bf16.mxu0 0
  %735 = vmatpush1.bf16.msra.mxu0 %v277
  %736 = vmatprep.subr.bf16.mxu0 0
  %737 = vmatpush1.bf16.msra.mxu0 %v278
  %738 = vmatprep.subr.bf16.mxu0 0
  %739 = vmatpush1.bf16.msra.mxu0 %v279
  %740 = vmatprep.subr.bf16.mxu0 0
  %741 = vmatpush1.bf16.msra.mxu0 %v280
  %742 = vmatprep.subr.bf16.mxu0 0
  %743 = vmatpush1.bf16.msra.mxu0 %v281
  %744 = vmatprep.subr.bf16.mxu0 0
  %745 = vmatpush1.bf16.msra.mxu0 %v282
  %746 = vmatprep.subr.bf16.mxu0 0
  %747 = vmatpush1.bf16.msra.mxu0 %v283
  %748 = vmatprep.subr.bf16.mxu0 0
  %749 = vmatpush1.bf16.msra.mxu0 %v284
  %750 = vmatprep.subr.bf16.mxu0 0
  %751 = vmatpush1.bf16.msra.mxu0 %v285
  %752 = vmatprep.subr.bf16.mxu0 0
  %753 = vmatpush1.bf16.msra.mxu0 %v286
  %754 = vmatprep.subr.bf16.mxu0 0
  %755 = vmatpush1.bf16.msra.mxu0 %v287
  %756 = vmatprep.subr.bf16.mxu0 0
  %757 = vmatpush1.bf16.msra.mxu0 %v288
  %758 = vmatprep.mubr.bf16.mxu0 %v697
  %759 = vmatmul.mubr.bf16.gmra.mrb[0].mxu0 %v696
  %v760 = vpop.f32.mrb[0].mxu0
  %v761 = vadd.f32 %v716, %v760
  %v762 = vpop.f32.mrb[0].mxu0
  %v763 = vpop.f32.mrb[0].mxu0
  %v764 = vadd.f32 %v717, %v763
  %v765 = vpop.f32.mrb[0].mxu0
  %766 = vmatprep.mubr.bf16.mxu0 %v704
  %767 = vmatmul.mubr.bf16.gmra.mrb[0].mxu0 %v703
  %v768 = vpop.f32.mrb[0].mxu0
  %v769 = vadd.f32 %v718, %v768
  %v770 = vpop.f32.mrb[0].mxu0
  %v771 = vpop.f32.mrb[0].mxu0
  %v772 = vadd.f32 %v719, %v771
  %v773 = vpop.f32.mrb[0].mxu0
  %774 = vdwg.mxu0
  %775 = vmatprep.subr.bf16.mxu0 0
  %776 = vmatpush1.bf16.msra.mxu0 %v289
  %777 = vmatprep.subr.bf16.mxu0 0
  %778 = vmatpush1.bf16.msra.mxu0 %v290
  %779 = vmatprep.subr.bf16.mxu0 0
  %780 = vmatpush1.bf16.msra.mxu0 %v291
  %781 = vmatprep.subr.bf16.mxu0 0
  %782 = vmatpush1.bf16.msra.mxu0 %v292
  %783 = vmatprep.subr.bf16.mxu0 0
  %784 = vmatpush1.bf16.msra.mxu0 %v293
  %785 = vmatprep.subr.bf16.mxu0 0
  %786 = vmatpush1.bf16.msra.mxu0 %v294
  %787 = vmatprep.subr.bf16.mxu0 0
  %788 = vmatpush1.bf16.msra.mxu0 %v295
  %789 = vmatprep.subr.bf16.mxu0 0
  %790 = vmatpush1.bf16.msra.mxu0 %v296
  %791 = vmatprep.subr.bf16.mxu0 0
  %792 = vmatpush1.bf16.msra.mxu0 %v297
  %793 = vmatprep.subr.bf16.mxu0 0
  %794 = vmatpush1.bf16.msra.mxu0 %v298
  %795 = vmatprep.subr.bf16.mxu0 0
  %796 = vmatpush1.bf16.msra.mxu0 %v299
  %797 = vmatprep.subr.bf16.mxu0 0
  %798 = vmatpush1.bf16.msra.mxu0 %v300
  %799 = vmatprep.subr.bf16.mxu0 0
  %800 = vmatpush1.bf16.msra.mxu0 %v301
  %801 = vmatprep.subr.bf16.mxu0 0
  %802 = vmatpush1.bf16.msra.mxu0 %v302
  %803 = vmatprep.subr.bf16.mxu0 0
  %804 = vmatpush1.bf16.msra.mxu0 %v303
  %805 = vmatprep.subr.bf16.mxu0 0
  %806 = vmatpush1.bf16.msra.mxu0 %v304
  %807 = vmatprep.mubr.bf16.mxu0 %v699
  %808 = vmatmul.mubr.bf16.gmra.mrb[0].mxu0 %v698
  %v809 = vpop.f32.mrb[0].mxu0
  %v810 = vadd.f32 %v761, %v809
  %v811 = vpop.f32.mrb[0].mxu0
  %v812 = vpop.f32.mrb[0].mxu0
  %v813 = vadd.f32 %v764, %v812
  %v814 = vpop.f32.mrb[0].mxu0
  %815 = vmatprep.mubr.bf16.mxu0 %v706
  %816 = vmatmul.mubr.bf16.gmra.mrb[0].mxu0 %v705
  %v817 = vpop.f32.mrb[0].mxu0
  %v818 = vadd.f32 %v769, %v817
  %v819 = vpop.f32.mrb[0].mxu0
  %v820 = vpop.f32.mrb[0].mxu0
  %v821 = vadd.f32 %v772, %v820
  %v822 = vpop.f32.mrb[0].mxu0
  %823 = vdwg.mxu0
  %824 = vmatprep.subr.bf16.mxu0 0
  %825 = vmatpush1.bf16.msra.mxu0 %v305
  %826 = vmatprep.subr.bf16.mxu0 0
  %827 = vmatpush1.bf16.msra.mxu0 %v306
  %828 = vmatprep.subr.bf16.mxu0 0
  %829 = vmatpush1.bf16.msra.mxu0 %v307
  %830 = vmatprep.subr.bf16.mxu0 0
  %831 = vmatpush1.bf16.msra.mxu0 %v308
  %832 = vmatprep.subr.bf16.mxu0 0
  %833 = vmatpush1.bf16.msra.mxu0 %v309
  %834 = vmatprep.subr.bf16.mxu0 0
  %835 = vmatpush1.bf16.msra.mxu0 %v310
  %836 = vmatprep.subr.bf16.mxu0 0
  %837 = vmatpush1.bf16.msra.mxu0 %v311
  %838 = vmatprep.subr.bf16.mxu0 0
  %839 = vmatpush1.bf16.msra.mxu0 %v312
  %840 = vmatprep.subr.bf16.mxu0 0
  %841 = vmatpush1.bf16.msra.mxu0 %v313
  %842 = vmatprep.subr.bf16.mxu0 0
  %843 = vmatpush1.bf16.msra.mxu0 %v314
  %844 = vmatprep.subr.bf16.mxu0 0
  %845 = vmatpush1.bf16.msra.mxu0 %v315
  %846 = vmatprep.subr.bf16.mxu0 0
  %847 = vmatpush1.bf16.msra.mxu0 %v316
  %848 = vmatprep.subr.bf16.mxu0 0
  %849 = vmatpush1.bf16.msra.mxu0 %v317
  %850 = vmatprep.subr.bf16.mxu0 0
  %851 = vmatpush1.bf16.msra.mxu0 %v318
  %852 = vmatprep.subr.bf16.mxu0 0
  %853 = vmatpush1.bf16.msra.mxu0 %v319
  %854 = vmatprep.subr.bf16.mxu0 0
  %855 = vmatpush1.bf16.msra.mxu0 %v320
  %856 = vmatprep.mubr.bf16.mxu0 %v701
  %857 = vmatmul.mubr.bf16.gmra.mrb[0].mxu0 %v700
  %v858 = vpop.f32.mrb[0].mxu0
  %v859 = vadd.f32 %v810, %v858
  %v860 = vpop.f32.mrb[0].mxu0
  %v861 = vpop.f32.mrb[0].mxu0
  %v862 = vadd.f32 %v813, %v861
  %v863 = vpop.f32.mrb[0].mxu0
  %864 = vmatprep.mubr.bf16.mxu0 %v708
  %865 = vmatmul.mubr.bf16.gmra.mrb[0].mxu0 %v707
  %v866 = vpop.f32.mrb[0].mxu0
  %v867 = vadd.f32 %v818, %v866
  %v868 = vpop.f32.mrb[0].mxu0
  %v869 = vpop.f32.mrb[0].mxu0
  %v870 = vadd.f32 %v821, %v869
  %v871 = vpop.f32.mrb[0].mxu0
  %872 = vdwg.mxu0
  %873 = vmatprep.subr.bf16.mxu0 0
  %874 = vmatpush1.bf16.msra.mxu0 %v321
  %875 = vmatprep.subr.bf16.mxu0 0
  %876 = vmatpush1.bf16.msra.mxu0 %v322
  %877 = vmatprep.subr.bf16.mxu0 0
  %878 = vmatpush1.bf16.msra.mxu0 0
  %879 = vmatprep.subr.bf16.mxu0 0
  %880 = vmatpush1.bf16.msra.mxu0 0
  %881 = vmatprep.subr.bf16.mxu0 0
  %882 = vmatpush1.bf16.msra.mxu0 0
  %883 = vmatprep.subr.bf16.mxu0 0
  %884 = vmatpush1.bf16.msra.mxu0 0
  %885 = vmatprep.subr.bf16.mxu0 0
  %886 = vmatpush1.bf16.msra.mxu0 0
  %887 = vmatprep.subr.bf16.mxu0 0
  %888 = vmatpush1.bf16.msra.mxu0 0
  %889 = vmatprep.subr.bf16.mxu0 0
  %890 = vmatpush1.bf16.msra.mxu0 0
  %891 = vmatprep.subr.bf16.mxu0 0
  %892 = vmatpush1.bf16.msra.mxu0 0
  %893 = vmatprep.subr.bf16.mxu0 0
  %894 = vmatpush1.bf16.msra.mxu0 0
  %895 = vmatprep.subr.bf16.mxu0 0
  %896 = vmatpush1.bf16.msra.mxu0 0
  %897 = vmatprep.subr.bf16.mxu0 0
  %898 = vmatpush1.bf16.msra.mxu0 0
  %899 = vmatprep.subr.bf16.mxu0 0
  %900 = vmatpush1.bf16.msra.mxu0 0
  %901 = vmatprep.subr.bf16.mxu0 0
  %902 = vmatpush1.bf16.msra.mxu0 0
  %903 = vmatprep.subr.bf16.mxu0 0
  %904 = vmatpush1.bf16.msra.mxu0 0
  %905 = vmatprep.mubr.bf16.mxu0 0
  %906 = vmatmul.mubr.bf16.gmra.mrb[0].mxu0 %v721
  %v907 = vpop.f32.mrb[0].mxu0
  %v908 = vadd.f32 %v859, %v907
  %v909 = vpop.f32.mrb[0].mxu0
  %v910 = vpop.f32.mrb[0].mxu0
  %v911 = vadd.f32 %v862, %v910
  %v912 = vpop.f32.mrb[0].mxu0
  %913 = vmatprep.mubr.bf16.mxu0 0
  %914 = vmatmul.mubr.bf16.gmra.mrb[0].mxu0 %v724
  %v915 = vpop.f32.mrb[0].mxu0
  %v916 = vadd.f32 %v867, %v915
  %v917 = vpop.f32.mrb[0].mxu0
  %v918 = vpop.f32.mrb[0].mxu0
  %v919 = vadd.f32 %v870, %v918
  %v920 = vpop.f32.mrb[0].mxu0
  %921 = vdwg.mxu0
  %vm922 = vcmp.gt.f32.partialorder %v590, 0.0
  %vm923 = vcmp.gt.f32.partialorder %v593, 0.0
  %vm924 = vcmp.gt.f32.partialorder %v598, 0.0
  %vm925 = vcmp.gt.f32.partialorder %v601, 0.0
  %v926 = vsel %vm922, %v590, 0.0
  %v927 = vsel %vm923, %v593, 0.0
  %v928 = vsel %vm924, %v598, 0.0
  %v929 = vsel %vm925, %v601, 0.0
  %v930 = vsel %vm922, %v908, 0.0
  %v931 = vsel %vm923, %v911, 0.0
  %v932 = vsel %vm924, %v916, 0.0
  %v933 = vsel %vm925, %v919, 0.0
  %s934 = scalar_lea.vmem %s0, 224
  %v935 = vld [vmem:[%s934] sm:$0xff]
  %v936 = vld [vmem:[%s934 + $0x8] sm:$0xff]
  %v937 = vld [vmem:[%s934 + $0x10] sm:$0xff]
  %v938 = vld [vmem:[%s934 + $0x18] sm:$0xff]
  %v939 = vld [vmem:[%s934 + $0x20] sm:$0xff]
  %v940 = vld [vmem:[%s934 + $0x28] sm:$0xff]
  %v941 = vld [vmem:[%s934 + $0x30] sm:$0xff]
  %v942 = vld [vmem:[%s934 + $0x38] sm:$0xff]
  %v943 = vld [vmem:[%s934 + $0x40] sm:$0xff]
  %v944 = vld [vmem:[%s934 + $0x48] sm:$0xff]
  %v945 = vld [vmem:[%s934 + $0x50] sm:$0xff]
  %v946 = vld [vmem:[%s934 + $0x58] sm:$0xff]
  %v947 = vld [vmem:[%s934 + $0x60] sm:$0xff]
  %v948 = vld [vmem:[%s934 + $0x68] sm:$0xff]
  %v949 = vld [vmem:[%s934 + $0x70] sm:$0xff]
  %v950 = vld [vmem:[%s934 + $0x78] sm:$0xff]
  %v951 = vld [vmem:[%s934 + $0x80] sm:$0xff]
  %v952 = vld [vmem:[%s934 + $0x88] sm:$0xff]
  %v953 = vld [vmem:[%s934 + $0x90] sm:$0xff]
  %v954 = vld [vmem:[%s934 + $0x98] sm:$0xff]
  %v955 = vld [vmem:[%s934 + $0xa0] sm:$0xff]
  %v956 = vld [vmem:[%s934 + $0xa8] sm:$0xff]
  %v957 = vld [vmem:[%s934 + $0xb0] sm:$0xff]
  %v958 = vld [vmem:[%s934 + $0xb8] sm:$0xff]
  %v959 = vld [vmem:[%s934 + $0xc0] sm:$0xff]
  %v960 = vld [vmem:[%s934 + $0xc8] sm:$0xff]
  %v961 = vld [vmem:[%s934 + $0xd0] sm:$0xff]
  %v962 = vld [vmem:[%s934 + $0xd8] sm:$0xff]
  %s963 = scalar_lea.vmem %s1, 224
  %v964 = vld [vmem:[%s963] sm:$0xff]
  %v965 = vld [vmem:[%s963 + $0x8] sm:$0xff]
  %v966 = vld [vmem:[%s963 + $0x10] sm:$0xff]
  %v967 = vld [vmem:[%s963 + $0x18] sm:$0xff]
  %v968 = vld [vmem:[%s963 + $0x20] sm:$0xff]
  %v969 = vld [vmem:[%s963 + $0x28] sm:$0xff]
  %v970 = vld [vmem:[%s963 + $0x30] sm:$0xff]
  %v971 = vld [vmem:[%s963 + $0x38] sm:$0xff]
  %v972 = vld [vmem:[%s963 + $0x40] sm:$0xff]
  %v973 = vld [vmem:[%s963 + $0x48] sm:$0xff]
  %v974 = vld [vmem:[%s963 + $0x50] sm:$0xff]
  %v975 = vld [vmem:[%s963 + $0x58] sm:$0xff]
  %v976 = vld [vmem:[%s963 + $0x60] sm:$0xff]
  %v977 = vld [vmem:[%s963 + $0x68] sm:$0xff]
  %v978 = vld [vmem:[%s963 + $0x70] sm:$0xff]
  %v979 = vld [vmem:[%s963 + $0x78] sm:$0xff]
  %v980 = vld [vmem:[%s963 + $0x80] sm:$0xff]
  %v981 = vld [vmem:[%s963 + $0x88] sm:$0xff]
  %v982 = vld [vmem:[%s963 + $0x90] sm:$0xff]
  %v983 = vld [vmem:[%s963 + $0x98] sm:$0xff]
  %v984 = vld [vmem:[%s963 + $0xa0] sm:$0xff]
  %v985 = vld [vmem:[%s963 + $0xa8] sm:$0xff]
  %v986 = vld [vmem:[%s963 + $0xb0] sm:$0xff]
  %v987 = vld [vmem:[%s963 + $0xb8] sm:$0xff]
  %v988 = vld [vmem:[%s963 + $0xc0] sm:$0xff]
  %v989 = vld [vmem:[%s963 + $0xc8] sm:$0xff]
  %v990 = vld [vmem:[%s963 + $0xd0] sm:$0xff]
  %v991 = vld [vmem:[%s963 + $0xd8] sm:$0xff]
  %v992 = vpack.c.bf16 %v942, %v935
  %v993 = vpack.c.bf16 %v943, %v936
  %v994 = vpack.c.bf16 %v944, %v937
  %v995 = vpack.c.bf16 %v945, %v938
  %v996 = vpack.c.bf16 %v946, %v939
  %v997 = vpack.c.bf16 %v947, %v940
  %v998 = vpack.c.bf16 %v948, %v941
  %v999 = vpack.c.bf16 %v956, %v949
  %v1000 = vpack.c.bf16 %v957, %v950
  %v1001 = vpack.c.bf16 %v958, %v951
  %v1002 = vpack.c.bf16 %v959, %v952
  %v1003 = vpack.c.bf16 %v960, %v953
  %v1004 = vpack.c.bf16 %v961, %v954
  %v1005 = vpack.c.bf16 %v962, %v955
  %v1007 = vsel %vm401, %v998, 0
  %v1010 = vsel %vm401, %v1005, 0
  %1012 = vmatprep.subr.bf16.mxu0 0
  %1013 = vmatpush1.bf16.msra.mxu0 %v123
  %1014 = vmatprep.subr.bf16.mxu0 0
  %1015 = vmatpush1.bf16.msra.mxu0 %v124
  %1016 = vmatprep.subr.bf16.mxu0 0
  %1017 = vmatpush1.bf16.msra.mxu0 %v125
  %1018 = vmatprep.subr.bf16.mxu0 0
  %1019 = vmatpush1.bf16.msra.mxu0 %v126
  %1020 = vmatprep.subr.bf16.mxu0 0
  %1021 = vmatpush1.bf16.msra.mxu0 %v127
  %1022 = vmatprep.subr.bf16.mxu0 0
  %1023 = vmatpush1.bf16.msra.mxu0 %v128
  %1024 = vmatprep.subr.bf16.mxu0 0
  %1025 = vmatpush1.bf16.msra.mxu0 %v129
  %1026 = vmatprep.subr.bf16.mxu0 0
  %1027 = vmatpush1.bf16.msra.mxu0 %v130
  %1028 = vmatprep.subr.bf16.mxu0 0
  %1029 = vmatpush1.bf16.msra.mxu0 %v131
  %1030 = vmatprep.subr.bf16.mxu0 0
  %1031 = vmatpush1.bf16.msra.mxu0 %v132
  %1032 = vmatprep.subr.bf16.mxu0 0
  %1033 = vmatpush1.bf16.msra.mxu0 %v133
  %1034 = vmatprep.subr.bf16.mxu0 0
  %1035 = vmatpush1.bf16.msra.mxu0 %v134
  %1036 = vmatprep.subr.bf16.mxu0 0
  %1037 = vmatpush1.bf16.msra.mxu0 %v135
  %1038 = vmatprep.subr.bf16.mxu0 0
  %1039 = vmatpush1.bf16.msra.mxu0 %v136
  %1040 = vmatprep.subr.bf16.mxu0 0
  %1041 = vmatpush1.bf16.msra.mxu0 %v137
  %1042 = vmatprep.subr.bf16.mxu0 0
  %1043 = vmatpush1.bf16.msra.mxu0 %v138
  %1044 = vmatprep.mubr.bf16.mxu0 %v993
  %1045 = vmatmul.mubr.bf16.gmra.mrb[0].mxu0 %v992
  %v1046 = vpop.f32.mrb[0].mxu0
  %v1047 = vadd.f32 %v399, %v1046
  %v1048 = vpop.f32.mrb[0].mxu0
  %v1049 = vpop.f32.mrb[0].mxu0
  %v1050 = vadd.f32 %v399, %v1049
  %v1051 = vpop.f32.mrb[0].mxu0
  %1052 = vmatprep.mubr.bf16.mxu0 %v1000
  %1053 = vmatmul.mubr.bf16.gmra.mrb[0].mxu0 %v999
  %v1054 = vpop.f32.mrb[0].mxu0
  %v1055 = vadd.f32 %v399, %v1054
  %v1056 = vpop.f32.mrb[0].mxu0
  %v1057 = vpop.f32.mrb[0].mxu0
  %v1058 = vadd.f32 %v399, %v1057
  %v1059 = vpop.f32.mrb[0].mxu0
  %1060 = vdwg.mxu0
  %1061 = vmatprep.subr.bf16.mxu0 0
  %1062 = vmatpush1.bf16.msra.mxu0 %v139
  %1063 = vmatprep.subr.bf16.mxu0 0
  %1064 = vmatpush1.bf16.msra.mxu0 %v140
  %1065 = vmatprep.subr.bf16.mxu0 0
  %1066 = vmatpush1.bf16.msra.mxu0 %v141
  %1067 = vmatprep.subr.bf16.mxu0 0
  %1068 = vmatpush1.bf16.msra.mxu0 %v142
  %1069 = vmatprep.subr.bf16.mxu0 0
  %1070 = vmatpush1.bf16.msra.mxu0 %v143
  %1071 = vmatprep.subr.bf16.mxu0 0
  %1072 = vmatpush1.bf16.msra.mxu0 %v144
  %1073 = vmatprep.subr.bf16.mxu0 0
  %1074 = vmatpush1.bf16.msra.mxu0 %v145
  %1075 = vmatprep.subr.bf16.mxu0 0
  %1076 = vmatpush1.bf16.msra.mxu0 %v146
  %1077 = vmatprep.subr.bf16.mxu0 0
  %1078 = vmatpush1.bf16.msra.mxu0 %v147
  %1079 = vmatprep.subr.bf16.mxu0 0
  %1080 = vmatpush1.bf16.msra.mxu0 %v148
  %1081 = vmatprep.subr.bf16.mxu0 0
  %1082 = vmatpush1.bf16.msra.mxu0 %v149
  %1083 = vmatprep.subr.bf16.mxu0 0
  %1084 = vmatpush1.bf16.msra.mxu0 %v150
  %1085 = vmatprep.subr.bf16.mxu0 0
  %1086 = vmatpush1.bf16.msra.mxu0 %v151
  %1087 = vmatprep.subr.bf16.mxu0 0
  %1088 = vmatpush1.bf16.msra.mxu0 %v152
  %1089 = vmatprep.subr.bf16.mxu0 0
  %1090 = vmatpush1.bf16.msra.mxu0 %v153
  %1091 = vmatprep.subr.bf16.mxu0 0
  %1092 = vmatpush1.bf16.msra.mxu0 %v154
  %1093 = vmatprep.mubr.bf16.mxu0 %v995
  %1094 = vmatmul.mubr.bf16.gmra.mrb[0].mxu0 %v994
  %v1095 = vpop.f32.mrb[0].mxu0
  %v1096 = vadd.f32 %v1047, %v1095
  %v1097 = vpop.f32.mrb[0].mxu0
  %v1098 = vpop.f32.mrb[0].mxu0
  %v1099 = vadd.f32 %v1050, %v1098
  %v1100 = vpop.f32.mrb[0].mxu0
  %1101 = vmatprep.mubr.bf16.mxu0 %v1002
  %1102 = vmatmul.mubr.bf16.gmra.mrb[0].mxu0 %v1001
  %v1103 = vpop.f32.mrb[0].mxu0
  %v1104 = vadd.f32 %v1055, %v1103
  %v1105 = vpop.f32.mrb[0].mxu0
  %v1106 = vpop.f32.mrb[0].mxu0
  %v1107 = vadd.f32 %v1058, %v1106
  %v1108 = vpop.f32.mrb[0].mxu0
  %1109 = vdwg.mxu0
  %1110 = vmatprep.subr.bf16.mxu0 0
  %1111 = vmatpush1.bf16.msra.mxu0 %v155
  %1112 = vmatprep.subr.bf16.mxu0 0
  %1113 = vmatpush1.bf16.msra.mxu0 %v156
  %1114 = vmatprep.subr.bf16.mxu0 0
  %1115 = vmatpush1.bf16.msra.mxu0 %v157
  %1116 = vmatprep.subr.bf16.mxu0 0
  %1117 = vmatpush1.bf16.msra.mxu0 %v158
  %1118 = vmatprep.subr.bf16.mxu0 0
  %1119 = vmatpush1.bf16.msra.mxu0 %v159
  %1120 = vmatprep.subr.bf16.mxu0 0
  %1121 = vmatpush1.bf16.msra.mxu0 %v160
  %1122 = vmatprep.subr.bf16.mxu0 0
  %1123 = vmatpush1.bf16.msra.mxu0 %v161
  %1124 = vmatprep.subr.bf16.mxu0 0
  %1125 = vmatpush1.bf16.msra.mxu0 %v162
  %1126 = vmatprep.subr.bf16.mxu0 0
  %1127 = vmatpush1.bf16.msra.mxu0 %v163
  %1128 = vmatprep.subr.bf16.mxu0 0
  %1129 = vmatpush1.bf16.msra.mxu0 %v164
  %1130 = vmatprep.subr.bf16.mxu0 0
  %1131 = vmatpush1.bf16.msra.mxu0 %v165
  %1132 = vmatprep.subr.bf16.mxu0 0
  %1133 = vmatpush1.bf16.msra.mxu0 %v166
  %1134 = vmatprep.subr.bf16.mxu0 0
  %1135 = vmatpush1.bf16.msra.mxu0 %v167
  %1136 = vmatprep.subr.bf16.mxu0 0
  %1137 = vmatpush1.bf16.msra.mxu0 %v168
  %1138 = vmatprep.subr.bf16.mxu0 0
  %1139 = vmatpush1.bf16.msra.mxu0 %v169
  %1140 = vmatprep.subr.bf16.mxu0 0
  %1141 = vmatpush1.bf16.msra.mxu0 %v170
  %1142 = vmatprep.mubr.bf16.mxu0 %v997
  %1143 = vmatmul.mubr.bf16.gmra.mrb[0].mxu0 %v996
  %v1144 = vpop.f32.mrb[0].mxu0
  %v1145 = vadd.f32 %v1096, %v1144
  %v1146 = vpop.f32.mrb[0].mxu0
  %v1147 = vpop.f32.mrb[0].mxu0
  %v1148 = vadd.f32 %v1099, %v1147
  %v1149 = vpop.f32.mrb[0].mxu0
  %1150 = vmatprep.mubr.bf16.mxu0 %v1004
  %1151 = vmatmul.mubr.bf16.gmra.mrb[0].mxu0 %v1003
  %v1152 = vpop.f32.mrb[0].mxu0
  %v1153 = vadd.f32 %v1104, %v1152
  %v1154 = vpop.f32.mrb[0].mxu0
  %v1155 = vpop.f32.mrb[0].mxu0
  %v1156 = vadd.f32 %v1107, %v1155
  %v1157 = vpop.f32.mrb[0].mxu0
  %1158 = vdwg.mxu0
  %1159 = vmatprep.subr.bf16.mxu0 0
  %1160 = vmatpush1.bf16.msra.mxu0 %v171
  %1161 = vmatprep.subr.bf16.mxu0 0
  %1162 = vmatpush1.bf16.msra.mxu0 %v172
  %1163 = vmatprep.subr.bf16.mxu0 0
  %1164 = vmatpush1.bf16.msra.mxu0 0
  %1165 = vmatprep.subr.bf16.mxu0 0
  %1166 = vmatpush1.bf16.msra.mxu0 0
  %1167 = vmatprep.subr.bf16.mxu0 0
  %1168 = vmatpush1.bf16.msra.mxu0 0
  %1169 = vmatprep.subr.bf16.mxu0 0
  %1170 = vmatpush1.bf16.msra.mxu0 0
  %1171 = vmatprep.subr.bf16.mxu0 0
  %1172 = vmatpush1.bf16.msra.mxu0 0
  %1173 = vmatprep.subr.bf16.mxu0 0
  %1174 = vmatpush1.bf16.msra.mxu0 0
  %1175 = vmatprep.subr.bf16.mxu0 0
  %1176 = vmatpush1.bf16.msra.mxu0 0
  %1177 = vmatprep.subr.bf16.mxu0 0
  %1178 = vmatpush1.bf16.msra.mxu0 0
  %1179 = vmatprep.subr.bf16.mxu0 0
  %1180 = vmatpush1.bf16.msra.mxu0 0
  %1181 = vmatprep.subr.bf16.mxu0 0
  %1182 = vmatpush1.bf16.msra.mxu0 0
  %1183 = vmatprep.subr.bf16.mxu0 0
  %1184 = vmatpush1.bf16.msra.mxu0 0
  %1185 = vmatprep.subr.bf16.mxu0 0
  %1186 = vmatpush1.bf16.msra.mxu0 0
  %1187 = vmatprep.subr.bf16.mxu0 0
  %1188 = vmatpush1.bf16.msra.mxu0 0
  %1189 = vmatprep.subr.bf16.mxu0 0
  %1190 = vmatpush1.bf16.msra.mxu0 0
  %1191 = vmatprep.mubr.bf16.mxu0 0
  %1192 = vmatmul.mubr.bf16.gmra.mrb[0].mxu0 %v1007
  %v1193 = vpop.f32.mrb[0].mxu0
  %v1194 = vadd.f32 %v1145, %v1193
  %v1195 = vpop.f32.mrb[0].mxu0
  %v1196 = vpop.f32.mrb[0].mxu0
  %v1197 = vadd.f32 %v1148, %v1196
  %v1198 = vpop.f32.mrb[0].mxu0
  %1199 = vmatprep.mubr.bf16.mxu0 0
  %1200 = vmatmul.mubr.bf16.gmra.mrb[0].mxu0 %v1010
  %v1201 = vpop.f32.mrb[0].mxu0
  %v1202 = vadd.f32 %v1153, %v1201
  %v1203 = vpop.f32.mrb[0].mxu0
  %v1204 = vpop.f32.mrb[0].mxu0
  %v1205 = vadd.f32 %v1156, %v1204
  %v1206 = vpop.f32.mrb[0].mxu0
  %1207 = vdwg.mxu0
  %v1208 = vmul.f32 %v935, %v935
  %v1209 = vmul.f32 %v936, %v936
  %v1210 = vmul.f32 %v937, %v937
  %v1211 = vmul.f32 %v938, %v938
  %v1212 = vmul.f32 %v939, %v939
  %v1213 = vmul.f32 %v940, %v940
  %v1214 = vmul.f32 %v941, %v941
  %v1215 = vmul.f32 %v942, %v942
  %v1216 = vmul.f32 %v943, %v943
  %v1217 = vmul.f32 %v944, %v944
  %v1218 = vmul.f32 %v945, %v945
  %v1219 = vmul.f32 %v946, %v946
  %v1220 = vmul.f32 %v947, %v947
  %v1221 = vmul.f32 %v948, %v948
  %v1222 = vmul.f32 %v949, %v949
  %v1223 = vmul.f32 %v950, %v950
  %v1224 = vmul.f32 %v951, %v951
  %v1225 = vmul.f32 %v952, %v952
  %v1226 = vmul.f32 %v953, %v953
  %v1227 = vmul.f32 %v954, %v954
  %v1228 = vmul.f32 %v955, %v955
  %v1229 = vmul.f32 %v956, %v956
  %v1230 = vmul.f32 %v957, %v957
  %v1231 = vmul.f32 %v958, %v958
  %v1232 = vmul.f32 %v959, %v959
  %v1233 = vmul.f32 %v960, %v960
  %v1234 = vmul.f32 %v961, %v961
  %v1235 = vmul.f32 %v962, %v962
  %v1236 = vadd.f32 %v964, %v1208
  %v1237 = vadd.f32 %v965, %v1209
  %v1238 = vadd.f32 %v966, %v1210
  %v1239 = vadd.f32 %v967, %v1211
  %v1240 = vadd.f32 %v968, %v1212
  %v1241 = vadd.f32 %v969, %v1213
  %v1242 = vadd.f32 %v970, %v1214
  %v1243 = vadd.f32 %v971, %v1215
  %v1244 = vadd.f32 %v972, %v1216
  %v1245 = vadd.f32 %v973, %v1217
  %v1246 = vadd.f32 %v974, %v1218
  %v1247 = vadd.f32 %v975, %v1219
  %v1248 = vadd.f32 %v976, %v1220
  %v1249 = vadd.f32 %v977, %v1221
  %v1250 = vadd.f32 %v978, %v1222
  %v1251 = vadd.f32 %v979, %v1223
  %v1252 = vadd.f32 %v980, %v1224
  %v1253 = vadd.f32 %v981, %v1225
  %v1254 = vadd.f32 %v982, %v1226
  %v1255 = vadd.f32 %v983, %v1227
  %v1256 = vadd.f32 %v984, %v1228
  %v1257 = vadd.f32 %v985, %v1229
  %v1258 = vadd.f32 %v986, %v1230
  %v1259 = vadd.f32 %v987, %v1231
  %v1260 = vadd.f32 %v988, %v1232
  %v1261 = vadd.f32 %v989, %v1233
  %v1262 = vadd.f32 %v990, %v1234
  %v1263 = vadd.f32 %v991, %v1235
  %v1264 = vadd.f32 %v1236, %v1237
  %v1265 = vadd.f32 %v1264, %v1238
  %v1266 = vadd.f32 %v1265, %v1239
  %v1267 = vadd.f32 %v1266, %v1240
  %v1268 = vadd.f32 %v1267, %v1241
  %v1269 = vsel %vm401, %v1242, 0.0
  %v1270 = vadd.f32 %v1268, %v1269
  %1271 = vadd.xlane.f32.xlu0 %v1270
  %v1272 = vpop.xlane.xlu0 %1271
  %v1273 = vadd.f32 %v1243, %v1244
  %v1274 = vadd.f32 %v1273, %v1245
  %v1275 = vadd.f32 %v1274, %v1246
  %v1276 = vadd.f32 %v1275, %v1247
  %v1277 = vadd.f32 %v1276, %v1248
  %v1278 = vsel %vm401, %v1249, 0.0
  %v1279 = vadd.f32 %v1277, %v1278
  %1280 = vadd.xlane.f32.xlu0 %v1279
  %v1281 = vpop.xlane.xlu0 %1280
  %v1282 = vadd.f32 %v1250, %v1251
  %v1283 = vadd.f32 %v1282, %v1252
  %v1284 = vadd.f32 %v1283, %v1253
  %v1285 = vadd.f32 %v1284, %v1254
  %v1286 = vadd.f32 %v1285, %v1255
  %v1287 = vsel %vm401, %v1256, 0.0
  %v1288 = vadd.f32 %v1286, %v1287
  %1289 = vadd.xlane.f32.xlu0 %v1288
  %v1290 = vpop.xlane.xlu0 %1289
  %v1291 = vadd.f32 %v1257, %v1258
  %v1292 = vadd.f32 %v1291, %v1259
  %v1293 = vadd.f32 %v1292, %v1260
  %v1294 = vadd.f32 %v1293, %v1261
  %v1295 = vadd.f32 %v1294, %v1262
  %v1296 = vsel %vm401, %v1263, 0.0
  %v1297 = vadd.f32 %v1295, %v1296
  %1298 = vadd.xlane.f32.xlu0 %v1297
  %v1299 = vpop.xlane.xlu0 %1298
  %v1300 = vpack.c.bf16 %v971, %v964
  %v1301 = vpack.c.bf16 %v972, %v965
  %v1302 = vpack.c.bf16 %v973, %v966
  %v1303 = vpack.c.bf16 %v974, %v967
  %v1304 = vpack.c.bf16 %v975, %v968
  %v1305 = vpack.c.bf16 %v976, %v969
  %v1306 = vpack.c.bf16 %v977, %v970
  %v1307 = vpack.c.bf16 %v985, %v978
  %v1308 = vpack.c.bf16 %v986, %v979
  %v1309 = vpack.c.bf16 %v987, %v980
  %v1310 = vpack.c.bf16 %v988, %v981
  %v1311 = vpack.c.bf16 %v989, %v982
  %v1312 = vpack.c.bf16 %v990, %v983
  %v1313 = vpack.c.bf16 %v991, %v984
  %v1314 = vmul.f32 %v1272, %v714
  %v1315 = vmul.f32 %v1281, %v714
  %v1316 = vmul.f32 %v1290, %v714
  %v1317 = vmul.f32 %v1299, %v714
  %v1319 = vsel %vm401, %v1306, 0
  %v1322 = vsel %vm401, %v1313, 0
  %1324 = vmatprep.subr.bf16.mxu0 0
  %1325 = vmatpush1.bf16.msra.mxu0 %v273
  %1326 = vmatprep.subr.bf16.mxu0 0
  %1327 = vmatpush1.bf16.msra.mxu0 %v274
  %1328 = vmatprep.subr.bf16.mxu0 0
  %1329 = vmatpush1.bf16.msra.mxu0 %v275
  %1330 = vmatprep.subr.bf16.mxu0 0
  %1331 = vmatpush1.bf16.msra.mxu0 %v276
  %1332 = vmatprep.subr.bf16.mxu0 0
  %1333 = vmatpush1.bf16.msra.mxu0 %v277
  %1334 = vmatprep.subr.bf16.mxu0 0
  %1335 = vmatpush1.bf16.msra.mxu0 %v278
  %1336 = vmatprep.subr.bf16.mxu0 0
  %1337 = vmatpush1.bf16.msra.mxu0 %v279
  %1338 = vmatprep.subr.bf16.mxu0 0
  %1339 = vmatpush1.bf16.msra.mxu0 %v280
  %1340 = vmatprep.subr.bf16.mxu0 0
  %1341 = vmatpush1.bf16.msra.mxu0 %v281
  %1342 = vmatprep.subr.bf16.mxu0 0
  %1343 = vmatpush1.bf16.msra.mxu0 %v282
  %1344 = vmatprep.subr.bf16.mxu0 0
  %1345 = vmatpush1.bf16.msra.mxu0 %v283
  %1346 = vmatprep.subr.bf16.mxu0 0
  %1347 = vmatpush1.bf16.msra.mxu0 %v284
  %1348 = vmatprep.subr.bf16.mxu0 0
  %1349 = vmatpush1.bf16.msra.mxu0 %v285
  %1350 = vmatprep.subr.bf16.mxu0 0
  %1351 = vmatpush1.bf16.msra.mxu0 %v286
  %1352 = vmatprep.subr.bf16.mxu0 0
  %1353 = vmatpush1.bf16.msra.mxu0 %v287
  %1354 = vmatprep.subr.bf16.mxu0 0
  %1355 = vmatpush1.bf16.msra.mxu0 %v288
  %1356 = vmatprep.mubr.bf16.mxu0 %v1301
  %1357 = vmatmul.mubr.bf16.gmra.mrb[0].mxu0 %v1300
  %v1358 = vpop.f32.mrb[0].mxu0
  %v1359 = vadd.f32 %v1314, %v1358
  %v1360 = vpop.f32.mrb[0].mxu0
  %v1361 = vpop.f32.mrb[0].mxu0
  %v1362 = vadd.f32 %v1315, %v1361
  %v1363 = vpop.f32.mrb[0].mxu0
  %1364 = vmatprep.mubr.bf16.mxu0 %v1308
  %1365 = vmatmul.mubr.bf16.gmra.mrb[0].mxu0 %v1307
  %v1366 = vpop.f32.mrb[0].mxu0
  %v1367 = vadd.f32 %v1316, %v1366
  %v1368 = vpop.f32.mrb[0].mxu0
  %v1369 = vpop.f32.mrb[0].mxu0
  %v1370 = vadd.f32 %v1317, %v1369
  %v1371 = vpop.f32.mrb[0].mxu0
  %1372 = vdwg.mxu0
  %1373 = vmatprep.subr.bf16.mxu0 0
  %1374 = vmatpush1.bf16.msra.mxu0 %v289
  %1375 = vmatprep.subr.bf16.mxu0 0
  %1376 = vmatpush1.bf16.msra.mxu0 %v290
  %1377 = vmatprep.subr.bf16.mxu0 0
  %1378 = vmatpush1.bf16.msra.mxu0 %v291
  %1379 = vmatprep.subr.bf16.mxu0 0
  %1380 = vmatpush1.bf16.msra.mxu0 %v292
  %1381 = vmatprep.subr.bf16.mxu0 0
  %1382 = vmatpush1.bf16.msra.mxu0 %v293
  %1383 = vmatprep.subr.bf16.mxu0 0
  %1384 = vmatpush1.bf16.msra.mxu0 %v294
  %1385 = vmatprep.subr.bf16.mxu0 0
  %1386 = vmatpush1.bf16.msra.mxu0 %v295
  %1387 = vmatprep.subr.bf16.mxu0 0
  %1388 = vmatpush1.bf16.msra.mxu0 %v296
  %1389 = vmatprep.subr.bf16.mxu0 0
  %1390 = vmatpush1.bf16.msra.mxu0 %v297
  %1391 = vmatprep.subr.bf16.mxu0 0
  %1392 = vmatpush1.bf16.msra.mxu0 %v298
  %1393 = vmatprep.subr.bf16.mxu0 0
  %1394 = vmatpush1.bf16.msra.mxu0 %v299
  %1395 = vmatprep.subr.bf16.mxu0 0
  %1396 = vmatpush1.bf16.msra.mxu0 %v300
  %1397 = vmatprep.subr.bf16.mxu0 0
  %1398 = vmatpush1.bf16.msra.mxu0 %v301
  %1399 = vmatprep.subr.bf16.mxu0 0
  %1400 = vmatpush1.bf16.msra.mxu0 %v302
  %1401 = vmatprep.subr.bf16.mxu0 0
  %1402 = vmatpush1.bf16.msra.mxu0 %v303
  %1403 = vmatprep.subr.bf16.mxu0 0
  %1404 = vmatpush1.bf16.msra.mxu0 %v304
  %1405 = vmatprep.mubr.bf16.mxu0 %v1303
  %1406 = vmatmul.mubr.bf16.gmra.mrb[0].mxu0 %v1302
  %v1407 = vpop.f32.mrb[0].mxu0
  %v1408 = vadd.f32 %v1359, %v1407
  %v1409 = vpop.f32.mrb[0].mxu0
  %v1410 = vpop.f32.mrb[0].mxu0
  %v1411 = vadd.f32 %v1362, %v1410
  %v1412 = vpop.f32.mrb[0].mxu0
  %1413 = vmatprep.mubr.bf16.mxu0 %v1310
  %1414 = vmatmul.mubr.bf16.gmra.mrb[0].mxu0 %v1309
  %v1415 = vpop.f32.mrb[0].mxu0
  %v1416 = vadd.f32 %v1367, %v1415
  %v1417 = vpop.f32.mrb[0].mxu0
  %v1418 = vpop.f32.mrb[0].mxu0
  %v1419 = vadd.f32 %v1370, %v1418
  %v1420 = vpop.f32.mrb[0].mxu0
  %1421 = vdwg.mxu0
  %1422 = vmatprep.subr.bf16.mxu0 0
  %1423 = vmatpush1.bf16.msra.mxu0 %v305
  %1424 = vmatprep.subr.bf16.mxu0 0
  %1425 = vmatpush1.bf16.msra.mxu0 %v306
  %1426 = vmatprep.subr.bf16.mxu0 0
  %1427 = vmatpush1.bf16.msra.mxu0 %v307
  %1428 = vmatprep.subr.bf16.mxu0 0
  %1429 = vmatpush1.bf16.msra.mxu0 %v308
  %1430 = vmatprep.subr.bf16.mxu0 0
  %1431 = vmatpush1.bf16.msra.mxu0 %v309
  %1432 = vmatprep.subr.bf16.mxu0 0
  %1433 = vmatpush1.bf16.msra.mxu0 %v310
  %1434 = vmatprep.subr.bf16.mxu0 0
  %1435 = vmatpush1.bf16.msra.mxu0 %v311
  %1436 = vmatprep.subr.bf16.mxu0 0
  %1437 = vmatpush1.bf16.msra.mxu0 %v312
  %1438 = vmatprep.subr.bf16.mxu0 0
  %1439 = vmatpush1.bf16.msra.mxu0 %v313
  %1440 = vmatprep.subr.bf16.mxu0 0
  %1441 = vmatpush1.bf16.msra.mxu0 %v314
  %1442 = vmatprep.subr.bf16.mxu0 0
  %1443 = vmatpush1.bf16.msra.mxu0 %v315
  %1444 = vmatprep.subr.bf16.mxu0 0
  %1445 = vmatpush1.bf16.msra.mxu0 %v316
  %1446 = vmatprep.subr.bf16.mxu0 0
  %1447 = vmatpush1.bf16.msra.mxu0 %v317
  %1448 = vmatprep.subr.bf16.mxu0 0
  %1449 = vmatpush1.bf16.msra.mxu0 %v318
  %1450 = vmatprep.subr.bf16.mxu0 0
  %1451 = vmatpush1.bf16.msra.mxu0 %v319
  %1452 = vmatprep.subr.bf16.mxu0 0
  %1453 = vmatpush1.bf16.msra.mxu0 %v320
  %1454 = vmatprep.mubr.bf16.mxu0 %v1305
  %1455 = vmatmul.mubr.bf16.gmra.mrb[0].mxu0 %v1304
  %v1456 = vpop.f32.mrb[0].mxu0
  %v1457 = vadd.f32 %v1408, %v1456
  %v1458 = vpop.f32.mrb[0].mxu0
  %v1459 = vpop.f32.mrb[0].mxu0
  %v1460 = vadd.f32 %v1411, %v1459
  %v1461 = vpop.f32.mrb[0].mxu0
  %1462 = vmatprep.mubr.bf16.mxu0 %v1312
  %1463 = vmatmul.mubr.bf16.gmra.mrb[0].mxu0 %v1311
  %v1464 = vpop.f32.mrb[0].mxu0
  %v1465 = vadd.f32 %v1416, %v1464
  %v1466 = vpop.f32.mrb[0].mxu0
  %v1467 = vpop.f32.mrb[0].mxu0
  %v1468 = vadd.f32 %v1419, %v1467
  %v1469 = vpop.f32.mrb[0].mxu0
  %1470 = vdwg.mxu0
  %1471 = vmatprep.subr.bf16.mxu0 0
  %1472 = vmatpush1.bf16.msra.mxu0 %v321
  %1473 = vmatprep.subr.bf16.mxu0 0
  %1474 = vmatpush1.bf16.msra.mxu0 %v322
  %1475 = vmatprep.subr.bf16.mxu0 0
  %1476 = vmatpush1.bf16.msra.mxu0 0
  %1477 = vmatprep.subr.bf16.mxu0 0
  %1478 = vmatpush1.bf16.msra.mxu0 0
  %1479 = vmatprep.subr.bf16.mxu0 0
  %1480 = vmatpush1.bf16.msra.mxu0 0
  %1481 = vmatprep.subr.bf16.mxu0 0
  %1482 = vmatpush1.bf16.msra.mxu0 0
  %1483 = vmatprep.subr.bf16.mxu0 0
  %1484 = vmatpush1.bf16.msra.mxu0 0
  %1485 = vmatprep.subr.bf16.mxu0 0
  %1486 = vmatpush1.bf16.msra.mxu0 0
  %1487 = vmatprep.subr.bf16.mxu0 0
  %1488 = vmatpush1.bf16.msra.mxu0 0
  %1489 = vmatprep.subr.bf16.mxu0 0
  %1490 = vmatpush1.bf16.msra.mxu0 0
  %1491 = vmatprep.subr.bf16.mxu0 0
  %1492 = vmatpush1.bf16.msra.mxu0 0
  %1493 = vmatprep.subr.bf16.mxu0 0
  %1494 = vmatpush1.bf16.msra.mxu0 0
  %1495 = vmatprep.subr.bf16.mxu0 0
  %1496 = vmatpush1.bf16.msra.mxu0 0
  %1497 = vmatprep.subr.bf16.mxu0 0
  %1498 = vmatpush1.bf16.msra.mxu0 0
  %1499 = vmatprep.subr.bf16.mxu0 0
  %1500 = vmatpush1.bf16.msra.mxu0 0
  %1501 = vmatprep.subr.bf16.mxu0 0
  %1502 = vmatpush1.bf16.msra.mxu0 0
  %1503 = vmatprep.mubr.bf16.mxu0 0
  %1504 = vmatmul.mubr.bf16.gmra.mrb[0].mxu0 %v1319
  %v1505 = vpop.f32.mrb[0].mxu0
  %v1506 = vadd.f32 %v1457, %v1505
  %v1507 = vpop.f32.mrb[0].mxu0
  %v1508 = vpop.f32.mrb[0].mxu0
  %v1509 = vadd.f32 %v1460, %v1508
  %v1510 = vpop.f32.mrb[0].mxu0
  %1511 = vmatprep.mubr.bf16.mxu0 0
  %1512 = vmatmul.mubr.bf16.gmra.mrb[0].mxu0 %v1322
  %v1513 = vpop.f32.mrb[0].mxu0
  %v1514 = vadd.f32 %v1465, %v1513
  %v1515 = vpop.f32.mrb[0].mxu0
  %v1516 = vpop.f32.mrb[0].mxu0
  %v1517 = vadd.f32 %v1468, %v1516
  %v1518 = vpop.f32.mrb[0].mxu0
  %1519 = vdwg.mxu0
  %vm1520 = vcmp.gt.f32.partialorder %v1194, 0.0
  %vm1521 = vcmp.gt.f32.partialorder %v1197, 0.0
  %vm1522 = vcmp.gt.f32.partialorder %v1202, 0.0
  %vm1523 = vcmp.gt.f32.partialorder %v1205, 0.0
  %v1524 = vsel %vm1520, %v1194, 0.0
  %v1525 = vsel %vm1521, %v1197, 0.0
  %v1526 = vsel %vm1522, %v1202, 0.0
  %v1527 = vsel %vm1523, %v1205, 0.0
  %v1528 = vsel %vm1520, %v1506, 0.0
  %v1529 = vsel %vm1521, %v1509, 0.0
  %v1530 = vsel %vm1522, %v1514, 0.0
  %v1531 = vsel %vm1523, %v1517, 0.0
  %vm1532 = vcmp.gt.f32.partialorder %v1524, %v926
  %vm1533 = vcmp.gt.f32.partialorder %v1525, %v927
  %vm1534 = vcmp.gt.f32.partialorder %v1526, %v928
  %vm1535 = vcmp.gt.f32.partialorder %v1527, %v929
  %v1536 = vsel %vm1532, %v1524, %v926
  %v1537 = vsel %vm1533, %v1525, %v927
  %v1538 = vsel %vm1534, %v1526, %v928
  %v1539 = vsel %vm1535, %v1527, %v929
  %v1540 = vsel %vm1532, %v1528, %v930
  %v1541 = vsel %vm1533, %v1529, %v931
  %v1542 = vsel %vm1534, %v1530, %v932
  %v1543 = vsel %vm1535, %v1531, %v933
  %s1544 = scalar_lea.vmem %s0, 448
  %v1545 = vld [vmem:[%s1544] sm:$0xff]
  %v1546 = vld [vmem:[%s1544 + $0x8] sm:$0xff]
  %v1547 = vld [vmem:[%s1544 + $0x10] sm:$0xff]
  %v1548 = vld [vmem:[%s1544 + $0x18] sm:$0xff]
  %v1549 = vld [vmem:[%s1544 + $0x20] sm:$0xff]
  %v1550 = vld [vmem:[%s1544 + $0x28] sm:$0xff]
  %v1551 = vld [vmem:[%s1544 + $0x30] sm:$0xff]
  %v1552 = vld [vmem:[%s1544 + $0x38] sm:$0xff]
  %v1553 = vld [vmem:[%s1544 + $0x40] sm:$0xff]
  %v1554 = vld [vmem:[%s1544 + $0x48] sm:$0xff]
  %v1555 = vld [vmem:[%s1544 + $0x50] sm:$0xff]
  %v1556 = vld [vmem:[%s1544 + $0x58] sm:$0xff]
  %v1557 = vld [vmem:[%s1544 + $0x60] sm:$0xff]
  %v1558 = vld [vmem:[%s1544 + $0x68] sm:$0xff]
  %v1559 = vld [vmem:[%s1544 + $0x70] sm:$0xff]
  %v1560 = vld [vmem:[%s1544 + $0x78] sm:$0xff]
  %v1561 = vld [vmem:[%s1544 + $0x80] sm:$0xff]
  %v1562 = vld [vmem:[%s1544 + $0x88] sm:$0xff]
  %v1563 = vld [vmem:[%s1544 + $0x90] sm:$0xff]
  %v1564 = vld [vmem:[%s1544 + $0x98] sm:$0xff]
  %v1565 = vld [vmem:[%s1544 + $0xa0] sm:$0xff]
  %v1566 = vld [vmem:[%s1544 + $0xa8] sm:$0xff]
  %v1567 = vld [vmem:[%s1544 + $0xb0] sm:$0xff]
  %v1568 = vld [vmem:[%s1544 + $0xb8] sm:$0xff]
  %v1569 = vld [vmem:[%s1544 + $0xc0] sm:$0xff]
  %v1570 = vld [vmem:[%s1544 + $0xc8] sm:$0xff]
  %v1571 = vld [vmem:[%s1544 + $0xd0] sm:$0xff]
  %v1572 = vld [vmem:[%s1544 + $0xd8] sm:$0xff]
  %s1573 = scalar_lea.vmem %s1, 448
  %v1574 = vld [vmem:[%s1573] sm:$0xff]
  %v1575 = vld [vmem:[%s1573 + $0x8] sm:$0xff]
  %v1576 = vld [vmem:[%s1573 + $0x10] sm:$0xff]
  %v1577 = vld [vmem:[%s1573 + $0x18] sm:$0xff]
  %v1578 = vld [vmem:[%s1573 + $0x20] sm:$0xff]
  %v1579 = vld [vmem:[%s1573 + $0x28] sm:$0xff]
  %v1580 = vld [vmem:[%s1573 + $0x30] sm:$0xff]
  %v1581 = vld [vmem:[%s1573 + $0x38] sm:$0xff]
  %v1582 = vld [vmem:[%s1573 + $0x40] sm:$0xff]
  %v1583 = vld [vmem:[%s1573 + $0x48] sm:$0xff]
  %v1584 = vld [vmem:[%s1573 + $0x50] sm:$0xff]
  %v1585 = vld [vmem:[%s1573 + $0x58] sm:$0xff]
  %v1586 = vld [vmem:[%s1573 + $0x60] sm:$0xff]
  %v1587 = vld [vmem:[%s1573 + $0x68] sm:$0xff]
  %v1588 = vld [vmem:[%s1573 + $0x70] sm:$0xff]
  %v1589 = vld [vmem:[%s1573 + $0x78] sm:$0xff]
  %v1590 = vld [vmem:[%s1573 + $0x80] sm:$0xff]
  %v1591 = vld [vmem:[%s1573 + $0x88] sm:$0xff]
  %v1592 = vld [vmem:[%s1573 + $0x90] sm:$0xff]
  %v1593 = vld [vmem:[%s1573 + $0x98] sm:$0xff]
  %v1594 = vld [vmem:[%s1573 + $0xa0] sm:$0xff]
  %v1595 = vld [vmem:[%s1573 + $0xa8] sm:$0xff]
  %v1596 = vld [vmem:[%s1573 + $0xb0] sm:$0xff]
  %v1597 = vld [vmem:[%s1573 + $0xb8] sm:$0xff]
  %v1598 = vld [vmem:[%s1573 + $0xc0] sm:$0xff]
  %v1599 = vld [vmem:[%s1573 + $0xc8] sm:$0xff]
  %v1600 = vld [vmem:[%s1573 + $0xd0] sm:$0xff]
  %v1601 = vld [vmem:[%s1573 + $0xd8] sm:$0xff]
  %v1602 = vpack.c.bf16 %v1552, %v1545
  %v1603 = vpack.c.bf16 %v1553, %v1546
  %v1604 = vpack.c.bf16 %v1554, %v1547
  %v1605 = vpack.c.bf16 %v1555, %v1548
  %v1606 = vpack.c.bf16 %v1556, %v1549
  %v1607 = vpack.c.bf16 %v1557, %v1550
  %v1608 = vpack.c.bf16 %v1558, %v1551
  %v1609 = vpack.c.bf16 %v1566, %v1559
  %v1610 = vpack.c.bf16 %v1567, %v1560
  %v1611 = vpack.c.bf16 %v1568, %v1561
  %v1612 = vpack.c.bf16 %v1569, %v1562
  %v1613 = vpack.c.bf16 %v1570, %v1563
  %v1614 = vpack.c.bf16 %v1571, %v1564
  %v1615 = vpack.c.bf16 %v1572, %v1565
  %v1617 = vsel %vm401, %v1608, 0
  %v1620 = vsel %vm401, %v1615, 0
  %1622 = vmatprep.subr.bf16.mxu0 0
  %1623 = vmatpush1.bf16.msra.mxu0 %v123
  %1624 = vmatprep.subr.bf16.mxu0 0
  %1625 = vmatpush1.bf16.msra.mxu0 %v124
  %1626 = vmatprep.subr.bf16.mxu0 0
  %1627 = vmatpush1.bf16.msra.mxu0 %v125
  %1628 = vmatprep.subr.bf16.mxu0 0
  %1629 = vmatpush1.bf16.msra.mxu0 %v126
  %1630 = vmatprep.subr.bf16.mxu0 0
  %1631 = vmatpush1.bf16.msra.mxu0 %v127
  %1632 = vmatprep.subr.bf16.mxu0 0
  %1633 = vmatpush1.bf16.msra.mxu0 %v128
  %1634 = vmatprep.subr.bf16.mxu0 0
  %1635 = vmatpush1.bf16.msra.mxu0 %v129
  %1636 = vmatprep.subr.bf16.mxu0 0
  %1637 = vmatpush1.bf16.msra.mxu0 %v130
  %1638 = vmatprep.subr.bf16.mxu0 0
  %1639 = vmatpush1.bf16.msra.mxu0 %v131
  %1640 = vmatprep.subr.bf16.mxu0 0
  %1641 = vmatpush1.bf16.msra.mxu0 %v132
  %1642 = vmatprep.subr.bf16.mxu0 0
  %1643 = vmatpush1.bf16.msra.mxu0 %v133
  %1644 = vmatprep.subr.bf16.mxu0 0
  %1645 = vmatpush1.bf16.msra.mxu0 %v134
  %1646 = vmatprep.subr.bf16.mxu0 0
  %1647 = vmatpush1.bf16.msra.mxu0 %v135
  %1648 = vmatprep.subr.bf16.mxu0 0
  %1649 = vmatpush1.bf16.msra.mxu0 %v136
  %1650 = vmatprep.subr.bf16.mxu0 0
  %1651 = vmatpush1.bf16.msra.mxu0 %v137
  %1652 = vmatprep.subr.bf16.mxu0 0
  %1653 = vmatpush1.bf16.msra.mxu0 %v138
  %1654 = vmatprep.mubr.bf16.mxu0 %v1603
  %1655 = vmatmul.mubr.bf16.gmra.mrb[0].mxu0 %v1602
  %v1656 = vpop.f32.mrb[0].mxu0
  %v1657 = vadd.f32 %v399, %v1656
  %v1658 = vpop.f32.mrb[0].mxu0
  %v1659 = vpop.f32.mrb[0].mxu0
  %v1660 = vadd.f32 %v399, %v1659
  %v1661 = vpop.f32.mrb[0].mxu0
  %1662 = vmatprep.mubr.bf16.mxu0 %v1610
  %1663 = vmatmul.mubr.bf16.gmra.mrb[0].mxu0 %v1609
  %v1664 = vpop.f32.mrb[0].mxu0
  %v1665 = vadd.f32 %v399, %v1664
  %v1666 = vpop.f32.mrb[0].mxu0
  %v1667 = vpop.f32.mrb[0].mxu0
  %v1668 = vadd.f32 %v399, %v1667
  %v1669 = vpop.f32.mrb[0].mxu0
  %1670 = vdwg.mxu0
  %1671 = vmatprep.subr.bf16.mxu0 0
  %1672 = vmatpush1.bf16.msra.mxu0 %v139
  %1673 = vmatprep.subr.bf16.mxu0 0
  %1674 = vmatpush1.bf16.msra.mxu0 %v140
  %1675 = vmatprep.subr.bf16.mxu0 0
  %1676 = vmatpush1.bf16.msra.mxu0 %v141
  %1677 = vmatprep.subr.bf16.mxu0 0
  %1678 = vmatpush1.bf16.msra.mxu0 %v142
  %1679 = vmatprep.subr.bf16.mxu0 0
  %1680 = vmatpush1.bf16.msra.mxu0 %v143
  %1681 = vmatprep.subr.bf16.mxu0 0
  %1682 = vmatpush1.bf16.msra.mxu0 %v144
  %1683 = vmatprep.subr.bf16.mxu0 0
  %1684 = vmatpush1.bf16.msra.mxu0 %v145
  %1685 = vmatprep.subr.bf16.mxu0 0
  %1686 = vmatpush1.bf16.msra.mxu0 %v146
  %1687 = vmatprep.subr.bf16.mxu0 0
  %1688 = vmatpush1.bf16.msra.mxu0 %v147
  %1689 = vmatprep.subr.bf16.mxu0 0
  %1690 = vmatpush1.bf16.msra.mxu0 %v148
  %1691 = vmatprep.subr.bf16.mxu0 0
  %1692 = vmatpush1.bf16.msra.mxu0 %v149
  %1693 = vmatprep.subr.bf16.mxu0 0
  %1694 = vmatpush1.bf16.msra.mxu0 %v150
  %1695 = vmatprep.subr.bf16.mxu0 0
  %1696 = vmatpush1.bf16.msra.mxu0 %v151
  %1697 = vmatprep.subr.bf16.mxu0 0
  %1698 = vmatpush1.bf16.msra.mxu0 %v152
  %1699 = vmatprep.subr.bf16.mxu0 0
  %1700 = vmatpush1.bf16.msra.mxu0 %v153
  %1701 = vmatprep.subr.bf16.mxu0 0
  %1702 = vmatpush1.bf16.msra.mxu0 %v154
  %1703 = vmatprep.mubr.bf16.mxu0 %v1605
  %1704 = vmatmul.mubr.bf16.gmra.mrb[0].mxu0 %v1604
  %v1705 = vpop.f32.mrb[0].mxu0
  %v1706 = vadd.f32 %v1657, %v1705
  %v1707 = vpop.f32.mrb[0].mxu0
  %v1708 = vpop.f32.mrb[0].mxu0
  %v1709 = vadd.f32 %v1660, %v1708
  %v1710 = vpop.f32.mrb[0].mxu0
  %1711 = vmatprep.mubr.bf16.mxu0 %v1612
  %1712 = vmatmul.mubr.bf16.gmra.mrb[0].mxu0 %v1611
  %v1713 = vpop.f32.mrb[0].mxu0
  %v1714 = vadd.f32 %v1665, %v1713
  %v1715 = vpop.f32.mrb[0].mxu0
  %v1716 = vpop.f32.mrb[0].mxu0
  %v1717 = vadd.f32 %v1668, %v1716
  %v1718 = vpop.f32.mrb[0].mxu0
  %1719 = vdwg.mxu0
  %1720 = vmatprep.subr.bf16.mxu0 0
  %1721 = vmatpush1.bf16.msra.mxu0 %v155
  %1722 = vmatprep.subr.bf16.mxu0 0
  %1723 = vmatpush1.bf16.msra.mxu0 %v156
  %1724 = vmatprep.subr.bf16.mxu0 0
  %1725 = vmatpush1.bf16.msra.mxu0 %v157
  %1726 = vmatprep.subr.bf16.mxu0 0
  %1727 = vmatpush1.bf16.msra.mxu0 %v158
  %1728 = vmatprep.subr.bf16.mxu0 0
  %1729 = vmatpush1.bf16.msra.mxu0 %v159
  %1730 = vmatprep.subr.bf16.mxu0 0
  %1731 = vmatpush1.bf16.msra.mxu0 %v160
  %1732 = vmatprep.subr.bf16.mxu0 0
  %1733 = vmatpush1.bf16.msra.mxu0 %v161
  %1734 = vmatprep.subr.bf16.mxu0 0
  %1735 = vmatpush1.bf16.msra.mxu0 %v162
  %1736 = vmatprep.subr.bf16.mxu0 0
  %1737 = vmatpush1.bf16.msra.mxu0 %v163
  %1738 = vmatprep.subr.bf16.mxu0 0
  %1739 = vmatpush1.bf16.msra.mxu0 %v164
  %1740 = vmatprep.subr.bf16.mxu0 0
  %1741 = vmatpush1.bf16.msra.mxu0 %v165
  %1742 = vmatprep.subr.bf16.mxu0 0
  %1743 = vmatpush1.bf16.msra.mxu0 %v166
  %1744 = vmatprep.subr.bf16.mxu0 0
  %1745 = vmatpush1.bf16.msra.mxu0 %v167
  %1746 = vmatprep.subr.bf16.mxu0 0
  %1747 = vmatpush1.bf16.msra.mxu0 %v168
  %1748 = vmatprep.subr.bf16.mxu0 0
  %1749 = vmatpush1.bf16.msra.mxu0 %v169
  %1750 = vmatprep.subr.bf16.mxu0 0
  %1751 = vmatpush1.bf16.msra.mxu0 %v170
  %1752 = vmatprep.mubr.bf16.mxu0 %v1607
  %1753 = vmatmul.mubr.bf16.gmra.mrb[0].mxu0 %v1606
  %v1754 = vpop.f32.mrb[0].mxu0
  %v1755 = vadd.f32 %v1706, %v1754
  %v1756 = vpop.f32.mrb[0].mxu0
  %v1757 = vpop.f32.mrb[0].mxu0
  %v1758 = vadd.f32 %v1709, %v1757
  %v1759 = vpop.f32.mrb[0].mxu0
  %1760 = vmatprep.mubr.bf16.mxu0 %v1614
  %1761 = vmatmul.mubr.bf16.gmra.mrb[0].mxu0 %v1613
  %v1762 = vpop.f32.mrb[0].mxu0
  %v1763 = vadd.f32 %v1714, %v1762
  %v1764 = vpop.f32.mrb[0].mxu0
  %v1765 = vpop.f32.mrb[0].mxu0
  %v1766 = vadd.f32 %v1717, %v1765
  %v1767 = vpop.f32.mrb[0].mxu0
  %1768 = vdwg.mxu0
  %1769 = vmatprep.subr.bf16.mxu0 0
  %1770 = vmatpush1.bf16.msra.mxu0 %v171
  %1771 = vmatprep.subr.bf16.mxu0 0
  %1772 = vmatpush1.bf16.msra.mxu0 %v172
  %1773 = vmatprep.subr.bf16.mxu0 0
  %1774 = vmatpush1.bf16.msra.mxu0 0
  %1775 = vmatprep.subr.bf16.mxu0 0
  %1776 = vmatpush1.bf16.msra.mxu0 0
  %1777 = vmatprep.subr.bf16.mxu0 0
  %1778 = vmatpush1.bf16.msra.mxu0 0
  %1779 = vmatprep.subr.bf16.mxu0 0
  %1780 = vmatpush1.bf16.msra.mxu0 0
  %1781 = vmatprep.subr.bf16.mxu0 0
  %1782 = vmatpush1.bf16.msra.mxu0 0
  %1783 = vmatprep.subr.bf16.mxu0 0
  %1784 = vmatpush1.bf16.msra.mxu0 0
  %1785 = vmatprep.subr.bf16.mxu0 0
  %1786 = vmatpush1.bf16.msra.mxu0 0
  %1787 = vmatprep.subr.bf16.mxu0 0
  %1788 = vmatpush1.bf16.msra.mxu0 0
  %1789 = vmatprep.subr.bf16.mxu0 0
  %1790 = vmatpush1.bf16.msra.mxu0 0
  %1791 = vmatprep.subr.bf16.mxu0 0
  %1792 = vmatpush1.bf16.msra.mxu0 0
  %1793 = vmatprep.subr.bf16.mxu0 0
  %1794 = vmatpush1.bf16.msra.mxu0 0
  %1795 = vmatprep.subr.bf16.mxu0 0
  %1796 = vmatpush1.bf16.msra.mxu0 0
  %1797 = vmatprep.subr.bf16.mxu0 0
  %1798 = vmatpush1.bf16.msra.mxu0 0
  %1799 = vmatprep.subr.bf16.mxu0 0
  %1800 = vmatpush1.bf16.msra.mxu0 0
  %1801 = vmatprep.mubr.bf16.mxu0 0
  %1802 = vmatmul.mubr.bf16.gmra.mrb[0].mxu0 %v1617
  %v1803 = vpop.f32.mrb[0].mxu0
  %v1804 = vadd.f32 %v1755, %v1803
  %v1805 = vpop.f32.mrb[0].mxu0
  %v1806 = vpop.f32.mrb[0].mxu0
  %v1807 = vadd.f32 %v1758, %v1806
  %v1808 = vpop.f32.mrb[0].mxu0
  %1809 = vmatprep.mubr.bf16.mxu0 0
  %1810 = vmatmul.mubr.bf16.gmra.mrb[0].mxu0 %v1620
  %v1811 = vpop.f32.mrb[0].mxu0
  %v1812 = vadd.f32 %v1763, %v1811
  %v1813 = vpop.f32.mrb[0].mxu0
  %v1814 = vpop.f32.mrb[0].mxu0
  %v1815 = vadd.f32 %v1766, %v1814
  %v1816 = vpop.f32.mrb[0].mxu0
  %1817 = vdwg.mxu0
  %v1818 = vmul.f32 %v1545, %v1545
  %v1819 = vmul.f32 %v1546, %v1546
  %v1820 = vmul.f32 %v1547, %v1547
  %v1821 = vmul.f32 %v1548, %v1548
  %v1822 = vmul.f32 %v1549, %v1549
  %v1823 = vmul.f32 %v1550, %v1550
  %v1824 = vmul.f32 %v1551, %v1551
  %v1825 = vmul.f32 %v1552, %v1552
  %v1826 = vmul.f32 %v1553, %v1553
  %v1827 = vmul.f32 %v1554, %v1554
  %v1828 = vmul.f32 %v1555, %v1555
  %v1829 = vmul.f32 %v1556, %v1556
  %v1830 = vmul.f32 %v1557, %v1557
  %v1831 = vmul.f32 %v1558, %v1558
  %v1832 = vmul.f32 %v1559, %v1559
  %v1833 = vmul.f32 %v1560, %v1560
  %v1834 = vmul.f32 %v1561, %v1561
  %v1835 = vmul.f32 %v1562, %v1562
  %v1836 = vmul.f32 %v1563, %v1563
  %v1837 = vmul.f32 %v1564, %v1564
  %v1838 = vmul.f32 %v1565, %v1565
  %v1839 = vmul.f32 %v1566, %v1566
  %v1840 = vmul.f32 %v1567, %v1567
  %v1841 = vmul.f32 %v1568, %v1568
  %v1842 = vmul.f32 %v1569, %v1569
  %v1843 = vmul.f32 %v1570, %v1570
  %v1844 = vmul.f32 %v1571, %v1571
  %v1845 = vmul.f32 %v1572, %v1572
  %v1846 = vadd.f32 %v1574, %v1818
  %v1847 = vadd.f32 %v1575, %v1819
  %v1848 = vadd.f32 %v1576, %v1820
  %v1849 = vadd.f32 %v1577, %v1821
  %v1850 = vadd.f32 %v1578, %v1822
  %v1851 = vadd.f32 %v1579, %v1823
  %v1852 = vadd.f32 %v1580, %v1824
  %v1853 = vadd.f32 %v1581, %v1825
  %v1854 = vadd.f32 %v1582, %v1826
  %v1855 = vadd.f32 %v1583, %v1827
  %v1856 = vadd.f32 %v1584, %v1828
  %v1857 = vadd.f32 %v1585, %v1829
  %v1858 = vadd.f32 %v1586, %v1830
  %v1859 = vadd.f32 %v1587, %v1831
  %v1860 = vadd.f32 %v1588, %v1832
  %v1861 = vadd.f32 %v1589, %v1833
  %v1862 = vadd.f32 %v1590, %v1834
  %v1863 = vadd.f32 %v1591, %v1835
  %v1864 = vadd.f32 %v1592, %v1836
  %v1865 = vadd.f32 %v1593, %v1837
  %v1866 = vadd.f32 %v1594, %v1838
  %v1867 = vadd.f32 %v1595, %v1839
  %v1868 = vadd.f32 %v1596, %v1840
  %v1869 = vadd.f32 %v1597, %v1841
  %v1870 = vadd.f32 %v1598, %v1842
  %v1871 = vadd.f32 %v1599, %v1843
  %v1872 = vadd.f32 %v1600, %v1844
  %v1873 = vadd.f32 %v1601, %v1845
  %v1874 = vadd.f32 %v1846, %v1847
  %v1875 = vadd.f32 %v1874, %v1848
  %v1876 = vadd.f32 %v1875, %v1849
  %v1877 = vadd.f32 %v1876, %v1850
  %v1878 = vadd.f32 %v1877, %v1851
  %v1879 = vsel %vm401, %v1852, 0.0
  %v1880 = vadd.f32 %v1878, %v1879
  %1881 = vadd.xlane.f32.xlu0 %v1880
  %v1882 = vpop.xlane.xlu0 %1881
  %v1883 = vadd.f32 %v1853, %v1854
  %v1884 = vadd.f32 %v1883, %v1855
  %v1885 = vadd.f32 %v1884, %v1856
  %v1886 = vadd.f32 %v1885, %v1857
  %v1887 = vadd.f32 %v1886, %v1858
  %v1888 = vsel %vm401, %v1859, 0.0
  %v1889 = vadd.f32 %v1887, %v1888
  %1890 = vadd.xlane.f32.xlu0 %v1889
  %v1891 = vpop.xlane.xlu0 %1890
  %v1892 = vadd.f32 %v1860, %v1861
  %v1893 = vadd.f32 %v1892, %v1862
  %v1894 = vadd.f32 %v1893, %v1863
  %v1895 = vadd.f32 %v1894, %v1864
  %v1896 = vadd.f32 %v1895, %v1865
  %v1897 = vsel %vm401, %v1866, 0.0
  %v1898 = vadd.f32 %v1896, %v1897
  %1899 = vadd.xlane.f32.xlu0 %v1898
  %v1900 = vpop.xlane.xlu0 %1899
  %v1901 = vadd.f32 %v1867, %v1868
  %v1902 = vadd.f32 %v1901, %v1869
  %v1903 = vadd.f32 %v1902, %v1870
  %v1904 = vadd.f32 %v1903, %v1871
  %v1905 = vadd.f32 %v1904, %v1872
  %v1906 = vsel %vm401, %v1873, 0.0
  %v1907 = vadd.f32 %v1905, %v1906
  %1908 = vadd.xlane.f32.xlu0 %v1907
  %v1909 = vpop.xlane.xlu0 %1908
  %v1910 = vpack.c.bf16 %v1581, %v1574
  %v1911 = vpack.c.bf16 %v1582, %v1575
  %v1912 = vpack.c.bf16 %v1583, %v1576
  %v1913 = vpack.c.bf16 %v1584, %v1577
  %v1914 = vpack.c.bf16 %v1585, %v1578
  %v1915 = vpack.c.bf16 %v1586, %v1579
  %v1916 = vpack.c.bf16 %v1587, %v1580
  %v1917 = vpack.c.bf16 %v1595, %v1588
  %v1918 = vpack.c.bf16 %v1596, %v1589
  %v1919 = vpack.c.bf16 %v1597, %v1590
  %v1920 = vpack.c.bf16 %v1598, %v1591
  %v1921 = vpack.c.bf16 %v1599, %v1592
  %v1922 = vpack.c.bf16 %v1600, %v1593
  %v1923 = vpack.c.bf16 %v1601, %v1594
  %v1924 = vmul.f32 %v1882, %v714
  %v1925 = vmul.f32 %v1891, %v714
  %v1926 = vmul.f32 %v1900, %v714
  %v1927 = vmul.f32 %v1909, %v714
  %v1929 = vsel %vm401, %v1916, 0
  %v1932 = vsel %vm401, %v1923, 0
  %1934 = vmatprep.subr.bf16.mxu0 0
  %1935 = vmatpush1.bf16.msra.mxu0 %v273
  %1936 = vmatprep.subr.bf16.mxu0 0
  %1937 = vmatpush1.bf16.msra.mxu0 %v274
  %1938 = vmatprep.subr.bf16.mxu0 0
  %1939 = vmatpush1.bf16.msra.mxu0 %v275
  %1940 = vmatprep.subr.bf16.mxu0 0
  %1941 = vmatpush1.bf16.msra.mxu0 %v276
  %1942 = vmatprep.subr.bf16.mxu0 0
  %1943 = vmatpush1.bf16.msra.mxu0 %v277
  %1944 = vmatprep.subr.bf16.mxu0 0
  %1945 = vmatpush1.bf16.msra.mxu0 %v278
  %1946 = vmatprep.subr.bf16.mxu0 0
  %1947 = vmatpush1.bf16.msra.mxu0 %v279
  %1948 = vmatprep.subr.bf16.mxu0 0
  %1949 = vmatpush1.bf16.msra.mxu0 %v280
  %1950 = vmatprep.subr.bf16.mxu0 0
  %1951 = vmatpush1.bf16.msra.mxu0 %v281
  %1952 = vmatprep.subr.bf16.mxu0 0
  %1953 = vmatpush1.bf16.msra.mxu0 %v282
  %1954 = vmatprep.subr.bf16.mxu0 0
  %1955 = vmatpush1.bf16.msra.mxu0 %v283
  %1956 = vmatprep.subr.bf16.mxu0 0
  %1957 = vmatpush1.bf16.msra.mxu0 %v284
  %1958 = vmatprep.subr.bf16.mxu0 0
  %1959 = vmatpush1.bf16.msra.mxu0 %v285
  %1960 = vmatprep.subr.bf16.mxu0 0
  %1961 = vmatpush1.bf16.msra.mxu0 %v286
  %1962 = vmatprep.subr.bf16.mxu0 0
  %1963 = vmatpush1.bf16.msra.mxu0 %v287
  %1964 = vmatprep.subr.bf16.mxu0 0
  %1965 = vmatpush1.bf16.msra.mxu0 %v288
  %1966 = vmatprep.mubr.bf16.mxu0 %v1911
  %1967 = vmatmul.mubr.bf16.gmra.mrb[0].mxu0 %v1910
  %v1968 = vpop.f32.mrb[0].mxu0
  %v1969 = vadd.f32 %v1924, %v1968
  %v1970 = vpop.f32.mrb[0].mxu0
  %v1971 = vpop.f32.mrb[0].mxu0
  %v1972 = vadd.f32 %v1925, %v1971
  %v1973 = vpop.f32.mrb[0].mxu0
  %1974 = vmatprep.mubr.bf16.mxu0 %v1918
  %1975 = vmatmul.mubr.bf16.gmra.mrb[0].mxu0 %v1917
  %v1976 = vpop.f32.mrb[0].mxu0
  %v1977 = vadd.f32 %v1926, %v1976
  %v1978 = vpop.f32.mrb[0].mxu0
  %v1979 = vpop.f32.mrb[0].mxu0
  %v1980 = vadd.f32 %v1927, %v1979
  %v1981 = vpop.f32.mrb[0].mxu0
  %1982 = vdwg.mxu0
  %1983 = vmatprep.subr.bf16.mxu0 0
  %1984 = vmatpush1.bf16.msra.mxu0 %v289
  %1985 = vmatprep.subr.bf16.mxu0 0
  %1986 = vmatpush1.bf16.msra.mxu0 %v290
  %1987 = vmatprep.subr.bf16.mxu0 0
  %1988 = vmatpush1.bf16.msra.mxu0 %v291
  %1989 = vmatprep.subr.bf16.mxu0 0
  %1990 = vmatpush1.bf16.msra.mxu0 %v292
  %1991 = vmatprep.subr.bf16.mxu0 0
  %1992 = vmatpush1.bf16.msra.mxu0 %v293
  %1993 = vmatprep.subr.bf16.mxu0 0
  %1994 = vmatpush1.bf16.msra.mxu0 %v294
  %1995 = vmatprep.subr.bf16.mxu0 0
  %1996 = vmatpush1.bf16.msra.mxu0 %v295
  %1997 = vmatprep.subr.bf16.mxu0 0
  %1998 = vmatpush1.bf16.msra.mxu0 %v296
  %1999 = vmatprep.subr.bf16.mxu0 0
  %2000 = vmatpush1.bf16.msra.mxu0 %v297
  %2001 = vmatprep.subr.bf16.mxu0 0
  %2002 = vmatpush1.bf16.msra.mxu0 %v298
  %2003 = vmatprep.subr.bf16.mxu0 0
  %2004 = vmatpush1.bf16.msra.mxu0 %v299
  %2005 = vmatprep.subr.bf16.mxu0 0
  %2006 = vmatpush1.bf16.msra.mxu0 %v300
  %2007 = vmatprep.subr.bf16.mxu0 0
  %2008 = vmatpush1.bf16.msra.mxu0 %v301
  %2009 = vmatprep.subr.bf16.mxu0 0
  %2010 = vmatpush1.bf16.msra.mxu0 %v302
  %2011 = vmatprep.subr.bf16.mxu0 0
  %2012 = vmatpush1.bf16.msra.mxu0 %v303
  %2013 = vmatprep.subr.bf16.mxu0 0
  %2014 = vmatpush1.bf16.msra.mxu0 %v304
  %2015 = vmatprep.mubr.bf16.mxu0 %v1913
  %2016 = vmatmul.mubr.bf16.gmra.mrb[0].mxu0 %v1912
  %v2017 = vpop.f32.mrb[0].mxu0
  %v2018 = vadd.f32 %v1969, %v2017
  %v2019 = vpop.f32.mrb[0].mxu0
  %v2020 = vpop.f32.mrb[0].mxu0
  %v2021 = vadd.f32 %v1972, %v2020
  %v2022 = vpop.f32.mrb[0].mxu0
  %2023 = vmatprep.mubr.bf16.mxu0 %v1920
  %2024 = vmatmul.mubr.bf16.gmra.mrb[0].mxu0 %v1919
  %v2025 = vpop.f32.mrb[0].mxu0
  %v2026 = vadd.f32 %v1977, %v2025
  %v2027 = vpop.f32.mrb[0].mxu0
  %v2028 = vpop.f32.mrb[0].mxu0
  %v2029 = vadd.f32 %v1980, %v2028
  %v2030 = vpop.f32.mrb[0].mxu0
  %2031 = vdwg.mxu0
  %2032 = vmatprep.subr.bf16.mxu0 0
  %2033 = vmatpush1.bf16.msra.mxu0 %v305
  %2034 = vmatprep.subr.bf16.mxu0 0
  %2035 = vmatpush1.bf16.msra.mxu0 %v306
  %2036 = vmatprep.subr.bf16.mxu0 0
  %2037 = vmatpush1.bf16.msra.mxu0 %v307
  %2038 = vmatprep.subr.bf16.mxu0 0
  %2039 = vmatpush1.bf16.msra.mxu0 %v308
  %2040 = vmatprep.subr.bf16.mxu0 0
  %2041 = vmatpush1.bf16.msra.mxu0 %v309
  %2042 = vmatprep.subr.bf16.mxu0 0
  %2043 = vmatpush1.bf16.msra.mxu0 %v310
  %2044 = vmatprep.subr.bf16.mxu0 0
  %2045 = vmatpush1.bf16.msra.mxu0 %v311
  %2046 = vmatprep.subr.bf16.mxu0 0
  %2047 = vmatpush1.bf16.msra.mxu0 %v312
  %2048 = vmatprep.subr.bf16.mxu0 0
  %2049 = vmatpush1.bf16.msra.mxu0 %v313
  %2050 = vmatprep.subr.bf16.mxu0 0
  %2051 = vmatpush1.bf16.msra.mxu0 %v314
  %2052 = vmatprep.subr.bf16.mxu0 0
  %2053 = vmatpush1.bf16.msra.mxu0 %v315
  %2054 = vmatprep.subr.bf16.mxu0 0
  %2055 = vmatpush1.bf16.msra.mxu0 %v316
  %2056 = vmatprep.subr.bf16.mxu0 0
  %2057 = vmatpush1.bf16.msra.mxu0 %v317
  %2058 = vmatprep.subr.bf16.mxu0 0
  %2059 = vmatpush1.bf16.msra.mxu0 %v318
  %2060 = vmatprep.subr.bf16.mxu0 0
  %2061 = vmatpush1.bf16.msra.mxu0 %v319
  %2062 = vmatprep.subr.bf16.mxu0 0
  %2063 = vmatpush1.bf16.msra.mxu0 %v320
  %2064 = vmatprep.mubr.bf16.mxu0 %v1915
  %2065 = vmatmul.mubr.bf16.gmra.mrb[0].mxu0 %v1914
  %v2066 = vpop.f32.mrb[0].mxu0
  %v2067 = vadd.f32 %v2018, %v2066
  %v2068 = vpop.f32.mrb[0].mxu0
  %v2069 = vpop.f32.mrb[0].mxu0
  %v2070 = vadd.f32 %v2021, %v2069
  %v2071 = vpop.f32.mrb[0].mxu0
  %2072 = vmatprep.mubr.bf16.mxu0 %v1922
  %2073 = vmatmul.mubr.bf16.gmra.mrb[0].mxu0 %v1921
  %v2074 = vpop.f32.mrb[0].mxu0
  %v2075 = vadd.f32 %v2026, %v2074
  %v2076 = vpop.f32.mrb[0].mxu0
  %v2077 = vpop.f32.mrb[0].mxu0
  %v2078 = vadd.f32 %v2029, %v2077
  %v2079 = vpop.f32.mrb[0].mxu0
  %2080 = vdwg.mxu0
  %2081 = vmatprep.subr.bf16.mxu0 0
  %2082 = vmatpush1.bf16.msra.mxu0 %v321
  %2083 = vmatprep.subr.bf16.mxu0 0
  %2084 = vmatpush1.bf16.msra.mxu0 %v322
  %2085 = vmatprep.subr.bf16.mxu0 0
  %2086 = vmatpush1.bf16.msra.mxu0 0
  %2087 = vmatprep.subr.bf16.mxu0 0
  %2088 = vmatpush1.bf16.msra.mxu0 0
  %2089 = vmatprep.subr.bf16.mxu0 0
  %2090 = vmatpush1.bf16.msra.mxu0 0
  %2091 = vmatprep.subr.bf16.mxu0 0
  %2092 = vmatpush1.bf16.msra.mxu0 0
  %2093 = vmatprep.subr.bf16.mxu0 0
  %2094 = vmatpush1.bf16.msra.mxu0 0
  %2095 = vmatprep.subr.bf16.mxu0 0
  %2096 = vmatpush1.bf16.msra.mxu0 0
  %2097 = vmatprep.subr.bf16.mxu0 0
  %2098 = vmatpush1.bf16.msra.mxu0 0
  %2099 = vmatprep.subr.bf16.mxu0 0
  %2100 = vmatpush1.bf16.msra.mxu0 0
  %2101 = vmatprep.subr.bf16.mxu0 0
  %2102 = vmatpush1.bf16.msra.mxu0 0
  %2103 = vmatprep.subr.bf16.mxu0 0
  %2104 = vmatpush1.bf16.msra.mxu0 0
  %2105 = vmatprep.subr.bf16.mxu0 0
  %2106 = vmatpush1.bf16.msra.mxu0 0
  %2107 = vmatprep.subr.bf16.mxu0 0
  %2108 = vmatpush1.bf16.msra.mxu0 0
  %2109 = vmatprep.subr.bf16.mxu0 0
  %2110 = vmatpush1.bf16.msra.mxu0 0
  %2111 = vmatprep.subr.bf16.mxu0 0
  %2112 = vmatpush1.bf16.msra.mxu0 0
  %2113 = vmatprep.mubr.bf16.mxu0 0
  %2114 = vmatmul.mubr.bf16.gmra.mrb[0].mxu0 %v1929
  %v2115 = vpop.f32.mrb[0].mxu0
  %v2116 = vadd.f32 %v2067, %v2115
  %v2117 = vpop.f32.mrb[0].mxu0
  %v2118 = vpop.f32.mrb[0].mxu0
  %v2119 = vadd.f32 %v2070, %v2118
  %v2120 = vpop.f32.mrb[0].mxu0
  %2121 = vmatprep.mubr.bf16.mxu0 0
  %2122 = vmatmul.mubr.bf16.gmra.mrb[0].mxu0 %v1932
  %v2123 = vpop.f32.mrb[0].mxu0
  %v2124 = vadd.f32 %v2075, %v2123
  %v2125 = vpop.f32.mrb[0].mxu0
  %v2126 = vpop.f32.mrb[0].mxu0
  %v2127 = vadd.f32 %v2078, %v2126
  %v2128 = vpop.f32.mrb[0].mxu0
  %2129 = vdwg.mxu0
  %vm2130 = vcmp.gt.f32.partialorder %v1804, 0.0
  %vm2131 = vcmp.gt.f32.partialorder %v1807, 0.0
  %vm2132 = vcmp.gt.f32.partialorder %v1812, 0.0
  %vm2133 = vcmp.gt.f32.partialorder %v1815, 0.0
  %v2134 = vsel %vm2130, %v1804, 0.0
  %v2135 = vsel %vm2131, %v1807, 0.0
  %v2136 = vsel %vm2132, %v1812, 0.0
  %v2137 = vsel %vm2133, %v1815, 0.0
  %v2138 = vsel %vm2130, %v2116, 0.0
  %v2139 = vsel %vm2131, %v2119, 0.0
  %v2140 = vsel %vm2132, %v2124, 0.0
  %v2141 = vsel %vm2133, %v2127, 0.0
  %vm2142 = vcmp.gt.f32.partialorder %v2134, %v1536
  %vm2143 = vcmp.gt.f32.partialorder %v2135, %v1537
  %vm2144 = vcmp.gt.f32.partialorder %v2136, %v1538
  %vm2145 = vcmp.gt.f32.partialorder %v2137, %v1539
  %v2146 = vsel %vm2142, %v2134, %v1536
  %v2147 = vsel %vm2143, %v2135, %v1537
  %v2148 = vsel %vm2144, %v2136, %v1538
  %v2149 = vsel %vm2145, %v2137, %v1539
  %v2150 = vsel %vm2142, %v2138, %v1540
  %v2151 = vsel %vm2143, %v2139, %v1541
  %v2152 = vsel %vm2144, %v2140, %v1542
  %v2153 = vsel %vm2145, %v2141, %v1543
  %s2154 = scalar_lea.vmem %s0, 672
  %v2155 = vld [vmem:[%s2154] sm:$0xff]
  %v2156 = vld [vmem:[%s2154 + $0x8] sm:$0xff]
  %v2157 = vld [vmem:[%s2154 + $0x10] sm:$0xff]
  %v2158 = vld [vmem:[%s2154 + $0x18] sm:$0xff]
  %v2159 = vld [vmem:[%s2154 + $0x20] sm:$0xff]
  %v2160 = vld [vmem:[%s2154 + $0x28] sm:$0xff]
  %v2161 = vld [vmem:[%s2154 + $0x30] sm:$0xff]
  %v2162 = vld [vmem:[%s2154 + $0x38] sm:$0xff]
  %v2163 = vld [vmem:[%s2154 + $0x40] sm:$0xff]
  %v2164 = vld [vmem:[%s2154 + $0x48] sm:$0xff]
  %v2165 = vld [vmem:[%s2154 + $0x50] sm:$0xff]
  %v2166 = vld [vmem:[%s2154 + $0x58] sm:$0xff]
  %v2167 = vld [vmem:[%s2154 + $0x60] sm:$0xff]
  %v2168 = vld [vmem:[%s2154 + $0x68] sm:$0xff]
  %v2169 = vld [vmem:[%s2154 + $0x70] sm:$0xff]
  %v2170 = vld [vmem:[%s2154 + $0x78] sm:$0xff]
  %v2171 = vld [vmem:[%s2154 + $0x80] sm:$0xff]
  %v2172 = vld [vmem:[%s2154 + $0x88] sm:$0xff]
  %v2173 = vld [vmem:[%s2154 + $0x90] sm:$0xff]
  %v2174 = vld [vmem:[%s2154 + $0x98] sm:$0xff]
  %v2175 = vld [vmem:[%s2154 + $0xa0] sm:$0xff]
  %v2176 = vld [vmem:[%s2154 + $0xa8] sm:$0xff]
  %v2177 = vld [vmem:[%s2154 + $0xb0] sm:$0xff]
  %v2178 = vld [vmem:[%s2154 + $0xb8] sm:$0xff]
  %v2179 = vld [vmem:[%s2154 + $0xc0] sm:$0xff]
  %v2180 = vld [vmem:[%s2154 + $0xc8] sm:$0xff]
  %v2181 = vld [vmem:[%s2154 + $0xd0] sm:$0xff]
  %v2182 = vld [vmem:[%s2154 + $0xd8] sm:$0xff]
  %s2183 = scalar_lea.vmem %s1, 672
  %v2184 = vld [vmem:[%s2183] sm:$0xff]
  %v2185 = vld [vmem:[%s2183 + $0x8] sm:$0xff]
  %v2186 = vld [vmem:[%s2183 + $0x10] sm:$0xff]
  %v2187 = vld [vmem:[%s2183 + $0x18] sm:$0xff]
  %v2188 = vld [vmem:[%s2183 + $0x20] sm:$0xff]
  %v2189 = vld [vmem:[%s2183 + $0x28] sm:$0xff]
  %v2190 = vld [vmem:[%s2183 + $0x30] sm:$0xff]
  %v2191 = vld [vmem:[%s2183 + $0x38] sm:$0xff]
  %v2192 = vld [vmem:[%s2183 + $0x40] sm:$0xff]
  %v2193 = vld [vmem:[%s2183 + $0x48] sm:$0xff]
  %v2194 = vld [vmem:[%s2183 + $0x50] sm:$0xff]
  %v2195 = vld [vmem:[%s2183 + $0x58] sm:$0xff]
  %v2196 = vld [vmem:[%s2183 + $0x60] sm:$0xff]
  %v2197 = vld [vmem:[%s2183 + $0x68] sm:$0xff]
  %v2198 = vld [vmem:[%s2183 + $0x70] sm:$0xff]
  %v2199 = vld [vmem:[%s2183 + $0x78] sm:$0xff]
  %v2200 = vld [vmem:[%s2183 + $0x80] sm:$0xff]
  %v2201 = vld [vmem:[%s2183 + $0x88] sm:$0xff]
  %v2202 = vld [vmem:[%s2183 + $0x90] sm:$0xff]
  %v2203 = vld [vmem:[%s2183 + $0x98] sm:$0xff]
  %v2204 = vld [vmem:[%s2183 + $0xa0] sm:$0xff]
  %v2205 = vld [vmem:[%s2183 + $0xa8] sm:$0xff]
  %v2206 = vld [vmem:[%s2183 + $0xb0] sm:$0xff]
  %v2207 = vld [vmem:[%s2183 + $0xb8] sm:$0xff]
  %v2208 = vld [vmem:[%s2183 + $0xc0] sm:$0xff]
  %v2209 = vld [vmem:[%s2183 + $0xc8] sm:$0xff]
  %v2210 = vld [vmem:[%s2183 + $0xd0] sm:$0xff]
  %v2211 = vld [vmem:[%s2183 + $0xd8] sm:$0xff]
  %v2212 = vpack.c.bf16 %v2162, %v2155
  %v2213 = vpack.c.bf16 %v2163, %v2156
  %v2214 = vpack.c.bf16 %v2164, %v2157
  %v2215 = vpack.c.bf16 %v2165, %v2158
  %v2216 = vpack.c.bf16 %v2166, %v2159
  %v2217 = vpack.c.bf16 %v2167, %v2160
  %v2218 = vpack.c.bf16 %v2168, %v2161
  %v2219 = vpack.c.bf16 %v2176, %v2169
  %v2220 = vpack.c.bf16 %v2177, %v2170
  %v2221 = vpack.c.bf16 %v2178, %v2171
  %v2222 = vpack.c.bf16 %v2179, %v2172
  %v2223 = vpack.c.bf16 %v2180, %v2173
  %v2224 = vpack.c.bf16 %v2181, %v2174
  %v2225 = vpack.c.bf16 %v2182, %v2175
  %v2227 = vsel %vm401, %v2218, 0
  %v2230 = vsel %vm401, %v2225, 0
  %2232 = vmatprep.subr.bf16.mxu0 0
  %2233 = vmatpush1.bf16.msra.mxu0 %v123
  %2234 = vmatprep.subr.bf16.mxu0 0
  %2235 = vmatpush1.bf16.msra.mxu0 %v124
  %2236 = vmatprep.subr.bf16.mxu0 0
  %2237 = vmatpush1.bf16.msra.mxu0 %v125
  %2238 = vmatprep.subr.bf16.mxu0 0
  %2239 = vmatpush1.bf16.msra.mxu0 %v126
  %2240 = vmatprep.subr.bf16.mxu0 0
  %2241 = vmatpush1.bf16.msra.mxu0 %v127
  %2242 = vmatprep.subr.bf16.mxu0 0
  %2243 = vmatpush1.bf16.msra.mxu0 %v128
  %2244 = vmatprep.subr.bf16.mxu0 0
  %2245 = vmatpush1.bf16.msra.mxu0 %v129
  %2246 = vmatprep.subr.bf16.mxu0 0
  %2247 = vmatpush1.bf16.msra.mxu0 %v130
  %2248 = vmatprep.subr.bf16.mxu0 0
  %2249 = vmatpush1.bf16.msra.mxu0 %v131
  %2250 = vmatprep.subr.bf16.mxu0 0
  %2251 = vmatpush1.bf16.msra.mxu0 %v132
  %2252 = vmatprep.subr.bf16.mxu0 0
  %2253 = vmatpush1.bf16.msra.mxu0 %v133
  %2254 = vmatprep.subr.bf16.mxu0 0
  %2255 = vmatpush1.bf16.msra.mxu0 %v134
  %2256 = vmatprep.subr.bf16.mxu0 0
  %2257 = vmatpush1.bf16.msra.mxu0 %v135
  %2258 = vmatprep.subr.bf16.mxu0 0
  %2259 = vmatpush1.bf16.msra.mxu0 %v136
  %2260 = vmatprep.subr.bf16.mxu0 0
  %2261 = vmatpush1.bf16.msra.mxu0 %v137
  %2262 = vmatprep.subr.bf16.mxu0 0
  %2263 = vmatpush1.bf16.msra.mxu0 %v138
  %2264 = vmatprep.mubr.bf16.mxu0 %v2213
  %2265 = vmatmul.mubr.bf16.gmra.mrb[0].mxu0 %v2212
  %v2266 = vpop.f32.mrb[0].mxu0
  %v2267 = vadd.f32 %v399, %v2266
  %v2268 = vpop.f32.mrb[0].mxu0
  %v2269 = vpop.f32.mrb[0].mxu0
  %v2270 = vadd.f32 %v399, %v2269
  %v2271 = vpop.f32.mrb[0].mxu0
  %2272 = vmatprep.mubr.bf16.mxu0 %v2220
  %2273 = vmatmul.mubr.bf16.gmra.mrb[0].mxu0 %v2219
  %v2274 = vpop.f32.mrb[0].mxu0
  %v2275 = vadd.f32 %v399, %v2274
  %v2276 = vpop.f32.mrb[0].mxu0
  %v2277 = vpop.f32.mrb[0].mxu0
  %v2278 = vadd.f32 %v399, %v2277
  %v2279 = vpop.f32.mrb[0].mxu0
  %2280 = vdwg.mxu0
  %2281 = vmatprep.subr.bf16.mxu0 0
  %2282 = vmatpush1.bf16.msra.mxu0 %v139
  %2283 = vmatprep.subr.bf16.mxu0 0
  %2284 = vmatpush1.bf16.msra.mxu0 %v140
  %2285 = vmatprep.subr.bf16.mxu0 0
  %2286 = vmatpush1.bf16.msra.mxu0 %v141
  %2287 = vmatprep.subr.bf16.mxu0 0
  %2288 = vmatpush1.bf16.msra.mxu0 %v142
  %2289 = vmatprep.subr.bf16.mxu0 0
  %2290 = vmatpush1.bf16.msra.mxu0 %v143
  %2291 = vmatprep.subr.bf16.mxu0 0
  %2292 = vmatpush1.bf16.msra.mxu0 %v144
  %2293 = vmatprep.subr.bf16.mxu0 0
  %2294 = vmatpush1.bf16.msra.mxu0 %v145
  %2295 = vmatprep.subr.bf16.mxu0 0
  %2296 = vmatpush1.bf16.msra.mxu0 %v146
  %2297 = vmatprep.subr.bf16.mxu0 0
  %2298 = vmatpush1.bf16.msra.mxu0 %v147
  %2299 = vmatprep.subr.bf16.mxu0 0
  %2300 = vmatpush1.bf16.msra.mxu0 %v148
  %2301 = vmatprep.subr.bf16.mxu0 0
  %2302 = vmatpush1.bf16.msra.mxu0 %v149
  %2303 = vmatprep.subr.bf16.mxu0 0
  %2304 = vmatpush1.bf16.msra.mxu0 %v150
  %2305 = vmatprep.subr.bf16.mxu0 0
  %2306 = vmatpush1.bf16.msra.mxu0 %v151
  %2307 = vmatprep.subr.bf16.mxu0 0
  %2308 = vmatpush1.bf16.msra.mxu0 %v152
  %2309 = vmatprep.subr.bf16.mxu0 0
  %2310 = vmatpush1.bf16.msra.mxu0 %v153
  %2311 = vmatprep.subr.bf16.mxu0 0
  %2312 = vmatpush1.bf16.msra.mxu0 %v154
  %2313 = vmatprep.mubr.bf16.mxu0 %v2215
  %2314 = vmatmul.mubr.bf16.gmra.mrb[0].mxu0 %v2214
  %v2315 = vpop.f32.mrb[0].mxu0
  %v2316 = vadd.f32 %v2267, %v2315
  %v2317 = vpop.f32.mrb[0].mxu0
  %v2318 = vpop.f32.mrb[0].mxu0
  %v2319 = vadd.f32 %v2270, %v2318
  %v2320 = vpop.f32.mrb[0].mxu0
  %2321 = vmatprep.mubr.bf16.mxu0 %v2222
  %2322 = vmatmul.mubr.bf16.gmra.mrb[0].mxu0 %v2221
  %v2323 = vpop.f32.mrb[0].mxu0
  %v2324 = vadd.f32 %v2275, %v2323
  %v2325 = vpop.f32.mrb[0].mxu0
  %v2326 = vpop.f32.mrb[0].mxu0
  %v2327 = vadd.f32 %v2278, %v2326
  %v2328 = vpop.f32.mrb[0].mxu0
  %2329 = vdwg.mxu0
  %2330 = vmatprep.subr.bf16.mxu0 0
  %2331 = vmatpush1.bf16.msra.mxu0 %v155
  %2332 = vmatprep.subr.bf16.mxu0 0
  %2333 = vmatpush1.bf16.msra.mxu0 %v156
  %2334 = vmatprep.subr.bf16.mxu0 0
  %2335 = vmatpush1.bf16.msra.mxu0 %v157
  %2336 = vmatprep.subr.bf16.mxu0 0
  %2337 = vmatpush1.bf16.msra.mxu0 %v158
  %2338 = vmatprep.subr.bf16.mxu0 0
  %2339 = vmatpush1.bf16.msra.mxu0 %v159
  %2340 = vmatprep.subr.bf16.mxu0 0
  %2341 = vmatpush1.bf16.msra.mxu0 %v160
  %2342 = vmatprep.subr.bf16.mxu0 0
  %2343 = vmatpush1.bf16.msra.mxu0 %v161
  %2344 = vmatprep.subr.bf16.mxu0 0
  %2345 = vmatpush1.bf16.msra.mxu0 %v162
  %2346 = vmatprep.subr.bf16.mxu0 0
  %2347 = vmatpush1.bf16.msra.mxu0 %v163
  %2348 = vmatprep.subr.bf16.mxu0 0
  %2349 = vmatpush1.bf16.msra.mxu0 %v164
  %2350 = vmatprep.subr.bf16.mxu0 0
  %2351 = vmatpush1.bf16.msra.mxu0 %v165
  %2352 = vmatprep.subr.bf16.mxu0 0
  %2353 = vmatpush1.bf16.msra.mxu0 %v166
  %2354 = vmatprep.subr.bf16.mxu0 0
  %2355 = vmatpush1.bf16.msra.mxu0 %v167
  %2356 = vmatprep.subr.bf16.mxu0 0
  %2357 = vmatpush1.bf16.msra.mxu0 %v168
  %2358 = vmatprep.subr.bf16.mxu0 0
  %2359 = vmatpush1.bf16.msra.mxu0 %v169
  %2360 = vmatprep.subr.bf16.mxu0 0
  %2361 = vmatpush1.bf16.msra.mxu0 %v170
  %2362 = vmatprep.mubr.bf16.mxu0 %v2217
  %2363 = vmatmul.mubr.bf16.gmra.mrb[0].mxu0 %v2216
  %v2364 = vpop.f32.mrb[0].mxu0
  %v2365 = vadd.f32 %v2316, %v2364
  %v2366 = vpop.f32.mrb[0].mxu0
  %v2367 = vpop.f32.mrb[0].mxu0
  %v2368 = vadd.f32 %v2319, %v2367
  %v2369 = vpop.f32.mrb[0].mxu0
  %2370 = vmatprep.mubr.bf16.mxu0 %v2224
  %2371 = vmatmul.mubr.bf16.gmra.mrb[0].mxu0 %v2223
  %v2372 = vpop.f32.mrb[0].mxu0
  %v2373 = vadd.f32 %v2324, %v2372
  %v2374 = vpop.f32.mrb[0].mxu0
  %v2375 = vpop.f32.mrb[0].mxu0
  %v2376 = vadd.f32 %v2327, %v2375
  %v2377 = vpop.f32.mrb[0].mxu0
  %2378 = vdwg.mxu0
  %2379 = vmatprep.subr.bf16.mxu0 0
  %2380 = vmatpush1.bf16.msra.mxu0 %v171
  %2381 = vmatprep.subr.bf16.mxu0 0
  %2382 = vmatpush1.bf16.msra.mxu0 %v172
  %2383 = vmatprep.subr.bf16.mxu0 0
  %2384 = vmatpush1.bf16.msra.mxu0 0
  %2385 = vmatprep.subr.bf16.mxu0 0
  %2386 = vmatpush1.bf16.msra.mxu0 0
  %2387 = vmatprep.subr.bf16.mxu0 0
  %2388 = vmatpush1.bf16.msra.mxu0 0
  %2389 = vmatprep.subr.bf16.mxu0 0
  %2390 = vmatpush1.bf16.msra.mxu0 0
  %2391 = vmatprep.subr.bf16.mxu0 0
  %2392 = vmatpush1.bf16.msra.mxu0 0
  %2393 = vmatprep.subr.bf16.mxu0 0
  %2394 = vmatpush1.bf16.msra.mxu0 0
  %2395 = vmatprep.subr.bf16.mxu0 0
  %2396 = vmatpush1.bf16.msra.mxu0 0
  %2397 = vmatprep.subr.bf16.mxu0 0
  %2398 = vmatpush1.bf16.msra.mxu0 0
  %2399 = vmatprep.subr.bf16.mxu0 0
  %2400 = vmatpush1.bf16.msra.mxu0 0
  %2401 = vmatprep.subr.bf16.mxu0 0
  %2402 = vmatpush1.bf16.msra.mxu0 0
  %2403 = vmatprep.subr.bf16.mxu0 0
  %2404 = vmatpush1.bf16.msra.mxu0 0
  %2405 = vmatprep.subr.bf16.mxu0 0
  %2406 = vmatpush1.bf16.msra.mxu0 0
  %2407 = vmatprep.subr.bf16.mxu0 0
  %2408 = vmatpush1.bf16.msra.mxu0 0
  %2409 = vmatprep.subr.bf16.mxu0 0
  %2410 = vmatpush1.bf16.msra.mxu0 0
  %2411 = vmatprep.mubr.bf16.mxu0 0
  %2412 = vmatmul.mubr.bf16.gmra.mrb[0].mxu0 %v2227
  %v2413 = vpop.f32.mrb[0].mxu0
  %v2414 = vadd.f32 %v2365, %v2413
  %v2415 = vpop.f32.mrb[0].mxu0
  %v2416 = vpop.f32.mrb[0].mxu0
  %v2417 = vadd.f32 %v2368, %v2416
  %v2418 = vpop.f32.mrb[0].mxu0
  %2419 = vmatprep.mubr.bf16.mxu0 0
  %2420 = vmatmul.mubr.bf16.gmra.mrb[0].mxu0 %v2230
  %v2421 = vpop.f32.mrb[0].mxu0
  %v2422 = vadd.f32 %v2373, %v2421
  %v2423 = vpop.f32.mrb[0].mxu0
  %v2424 = vpop.f32.mrb[0].mxu0
  %v2425 = vadd.f32 %v2376, %v2424
  %v2426 = vpop.f32.mrb[0].mxu0
  %2427 = vdwg.mxu0
  %v2428 = vmul.f32 %v2155, %v2155
  %v2429 = vmul.f32 %v2156, %v2156
  %v2430 = vmul.f32 %v2157, %v2157
  %v2431 = vmul.f32 %v2158, %v2158
  %v2432 = vmul.f32 %v2159, %v2159
  %v2433 = vmul.f32 %v2160, %v2160
  %v2434 = vmul.f32 %v2161, %v2161
  %v2435 = vmul.f32 %v2162, %v2162
  %v2436 = vmul.f32 %v2163, %v2163
  %v2437 = vmul.f32 %v2164, %v2164
  %v2438 = vmul.f32 %v2165, %v2165
  %v2439 = vmul.f32 %v2166, %v2166
  %v2440 = vmul.f32 %v2167, %v2167
  %v2441 = vmul.f32 %v2168, %v2168
  %v2442 = vmul.f32 %v2169, %v2169
  %v2443 = vmul.f32 %v2170, %v2170
  %v2444 = vmul.f32 %v2171, %v2171
  %v2445 = vmul.f32 %v2172, %v2172
  %v2446 = vmul.f32 %v2173, %v2173
  %v2447 = vmul.f32 %v2174, %v2174
  %v2448 = vmul.f32 %v2175, %v2175
  %v2449 = vmul.f32 %v2176, %v2176
  %v2450 = vmul.f32 %v2177, %v2177
  %v2451 = vmul.f32 %v2178, %v2178
  %v2452 = vmul.f32 %v2179, %v2179
  %v2453 = vmul.f32 %v2180, %v2180
  %v2454 = vmul.f32 %v2181, %v2181
  %v2455 = vmul.f32 %v2182, %v2182
  %v2456 = vadd.f32 %v2184, %v2428
  %v2457 = vadd.f32 %v2185, %v2429
  %v2458 = vadd.f32 %v2186, %v2430
  %v2459 = vadd.f32 %v2187, %v2431
  %v2460 = vadd.f32 %v2188, %v2432
  %v2461 = vadd.f32 %v2189, %v2433
  %v2462 = vadd.f32 %v2190, %v2434
  %v2463 = vadd.f32 %v2191, %v2435
  %v2464 = vadd.f32 %v2192, %v2436
  %v2465 = vadd.f32 %v2193, %v2437
  %v2466 = vadd.f32 %v2194, %v2438
  %v2467 = vadd.f32 %v2195, %v2439
  %v2468 = vadd.f32 %v2196, %v2440
  %v2469 = vadd.f32 %v2197, %v2441
  %v2470 = vadd.f32 %v2198, %v2442
  %v2471 = vadd.f32 %v2199, %v2443
  %v2472 = vadd.f32 %v2200, %v2444
  %v2473 = vadd.f32 %v2201, %v2445
  %v2474 = vadd.f32 %v2202, %v2446
  %v2475 = vadd.f32 %v2203, %v2447
  %v2476 = vadd.f32 %v2204, %v2448
  %v2477 = vadd.f32 %v2205, %v2449
  %v2478 = vadd.f32 %v2206, %v2450
  %v2479 = vadd.f32 %v2207, %v2451
  %v2480 = vadd.f32 %v2208, %v2452
  %v2481 = vadd.f32 %v2209, %v2453
  %v2482 = vadd.f32 %v2210, %v2454
  %v2483 = vadd.f32 %v2211, %v2455
  %v2484 = vadd.f32 %v2456, %v2457
  %v2485 = vadd.f32 %v2484, %v2458
  %v2486 = vadd.f32 %v2485, %v2459
  %v2487 = vadd.f32 %v2486, %v2460
  %v2488 = vadd.f32 %v2487, %v2461
  %v2489 = vsel %vm401, %v2462, 0.0
  %v2490 = vadd.f32 %v2488, %v2489
  %2491 = vadd.xlane.f32.xlu0 %v2490
  %v2492 = vpop.xlane.xlu0 %2491
  %v2493 = vadd.f32 %v2463, %v2464
  %v2494 = vadd.f32 %v2493, %v2465
  %v2495 = vadd.f32 %v2494, %v2466
  %v2496 = vadd.f32 %v2495, %v2467
  %v2497 = vadd.f32 %v2496, %v2468
  %v2498 = vsel %vm401, %v2469, 0.0
  %v2499 = vadd.f32 %v2497, %v2498
  %2500 = vadd.xlane.f32.xlu0 %v2499
  %v2501 = vpop.xlane.xlu0 %2500
  %v2502 = vadd.f32 %v2470, %v2471
  %v2503 = vadd.f32 %v2502, %v2472
  %v2504 = vadd.f32 %v2503, %v2473
  %v2505 = vadd.f32 %v2504, %v2474
  %v2506 = vadd.f32 %v2505, %v2475
  %v2507 = vsel %vm401, %v2476, 0.0
  %v2508 = vadd.f32 %v2506, %v2507
  %2509 = vadd.xlane.f32.xlu0 %v2508
  %v2510 = vpop.xlane.xlu0 %2509
  %v2511 = vadd.f32 %v2477, %v2478
  %v2512 = vadd.f32 %v2511, %v2479
  %v2513 = vadd.f32 %v2512, %v2480
  %v2514 = vadd.f32 %v2513, %v2481
  %v2515 = vadd.f32 %v2514, %v2482
  %v2516 = vsel %vm401, %v2483, 0.0
  %v2517 = vadd.f32 %v2515, %v2516
  %2518 = vadd.xlane.f32.xlu0 %v2517
  %v2519 = vpop.xlane.xlu0 %2518
  %v2520 = vpack.c.bf16 %v2191, %v2184
  %v2521 = vpack.c.bf16 %v2192, %v2185
  %v2522 = vpack.c.bf16 %v2193, %v2186
  %v2523 = vpack.c.bf16 %v2194, %v2187
  %v2524 = vpack.c.bf16 %v2195, %v2188
  %v2525 = vpack.c.bf16 %v2196, %v2189
  %v2526 = vpack.c.bf16 %v2197, %v2190
  %v2527 = vpack.c.bf16 %v2205, %v2198
  %v2528 = vpack.c.bf16 %v2206, %v2199
  %v2529 = vpack.c.bf16 %v2207, %v2200
  %v2530 = vpack.c.bf16 %v2208, %v2201
  %v2531 = vpack.c.bf16 %v2209, %v2202
  %v2532 = vpack.c.bf16 %v2210, %v2203
  %v2533 = vpack.c.bf16 %v2211, %v2204
  %v2534 = vmul.f32 %v2492, %v714
  %v2535 = vmul.f32 %v2501, %v714
  %v2536 = vmul.f32 %v2510, %v714
  %v2537 = vmul.f32 %v2519, %v714
  %v2539 = vsel %vm401, %v2526, 0
  %v2542 = vsel %vm401, %v2533, 0
  %2544 = vmatprep.subr.bf16.mxu0 0
  %2545 = vmatpush1.bf16.msra.mxu0 %v273
  %2546 = vmatprep.subr.bf16.mxu0 0
  %2547 = vmatpush1.bf16.msra.mxu0 %v274
  %2548 = vmatprep.subr.bf16.mxu0 0
  %2549 = vmatpush1.bf16.msra.mxu0 %v275
  %2550 = vmatprep.subr.bf16.mxu0 0
  %2551 = vmatpush1.bf16.msra.mxu0 %v276
  %2552 = vmatprep.subr.bf16.mxu0 0
  %2553 = vmatpush1.bf16.msra.mxu0 %v277
  %2554 = vmatprep.subr.bf16.mxu0 0
  %2555 = vmatpush1.bf16.msra.mxu0 %v278
  %2556 = vmatprep.subr.bf16.mxu0 0
  %2557 = vmatpush1.bf16.msra.mxu0 %v279
  %2558 = vmatprep.subr.bf16.mxu0 0
  %2559 = vmatpush1.bf16.msra.mxu0 %v280
  %2560 = vmatprep.subr.bf16.mxu0 0
  %2561 = vmatpush1.bf16.msra.mxu0 %v281
  %2562 = vmatprep.subr.bf16.mxu0 0
  %2563 = vmatpush1.bf16.msra.mxu0 %v282
  %2564 = vmatprep.subr.bf16.mxu0 0
  %2565 = vmatpush1.bf16.msra.mxu0 %v283
  %2566 = vmatprep.subr.bf16.mxu0 0
  %2567 = vmatpush1.bf16.msra.mxu0 %v284
  %2568 = vmatprep.subr.bf16.mxu0 0
  %2569 = vmatpush1.bf16.msra.mxu0 %v285
  %2570 = vmatprep.subr.bf16.mxu0 0
  %2571 = vmatpush1.bf16.msra.mxu0 %v286
  %2572 = vmatprep.subr.bf16.mxu0 0
  %2573 = vmatpush1.bf16.msra.mxu0 %v287
  %2574 = vmatprep.subr.bf16.mxu0 0
  %2575 = vmatpush1.bf16.msra.mxu0 %v288
  %2576 = vmatprep.mubr.bf16.mxu0 %v2521
  %2577 = vmatmul.mubr.bf16.gmra.mrb[0].mxu0 %v2520
  %v2578 = vpop.f32.mrb[0].mxu0
  %v2579 = vadd.f32 %v2534, %v2578
  %v2580 = vpop.f32.mrb[0].mxu0
  %v2581 = vpop.f32.mrb[0].mxu0
  %v2582 = vadd.f32 %v2535, %v2581
  %v2583 = vpop.f32.mrb[0].mxu0
  %2584 = vmatprep.mubr.bf16.mxu0 %v2528
  %2585 = vmatmul.mubr.bf16.gmra.mrb[0].mxu0 %v2527
  %v2586 = vpop.f32.mrb[0].mxu0
  %v2587 = vadd.f32 %v2536, %v2586
  %v2588 = vpop.f32.mrb[0].mxu0
  %v2589 = vpop.f32.mrb[0].mxu0
  %v2590 = vadd.f32 %v2537, %v2589
  %v2591 = vpop.f32.mrb[0].mxu0
  %2592 = vdwg.mxu0
  %2593 = vmatprep.subr.bf16.mxu0 0
  %2594 = vmatpush1.bf16.msra.mxu0 %v289
  %2595 = vmatprep.subr.bf16.mxu0 0
  %2596 = vmatpush1.bf16.msra.mxu0 %v290
  %2597 = vmatprep.subr.bf16.mxu0 0
  %2598 = vmatpush1.bf16.msra.mxu0 %v291
  %2599 = vmatprep.subr.bf16.mxu0 0
  %2600 = vmatpush1.bf16.msra.mxu0 %v292
  %2601 = vmatprep.subr.bf16.mxu0 0
  %2602 = vmatpush1.bf16.msra.mxu0 %v293
  %2603 = vmatprep.subr.bf16.mxu0 0
  %2604 = vmatpush1.bf16.msra.mxu0 %v294
  %2605 = vmatprep.subr.bf16.mxu0 0
  %2606 = vmatpush1.bf16.msra.mxu0 %v295
  %2607 = vmatprep.subr.bf16.mxu0 0
  %2608 = vmatpush1.bf16.msra.mxu0 %v296
  %2609 = vmatprep.subr.bf16.mxu0 0
  %2610 = vmatpush1.bf16.msra.mxu0 %v297
  %2611 = vmatprep.subr.bf16.mxu0 0
  %2612 = vmatpush1.bf16.msra.mxu0 %v298
  %2613 = vmatprep.subr.bf16.mxu0 0
  %2614 = vmatpush1.bf16.msra.mxu0 %v299
  %2615 = vmatprep.subr.bf16.mxu0 0
  %2616 = vmatpush1.bf16.msra.mxu0 %v300
  %2617 = vmatprep.subr.bf16.mxu0 0
  %2618 = vmatpush1.bf16.msra.mxu0 %v301
  %2619 = vmatprep.subr.bf16.mxu0 0
  %2620 = vmatpush1.bf16.msra.mxu0 %v302
  %2621 = vmatprep.subr.bf16.mxu0 0
  %2622 = vmatpush1.bf16.msra.mxu0 %v303
  %2623 = vmatprep.subr.bf16.mxu0 0
  %2624 = vmatpush1.bf16.msra.mxu0 %v304
  %2625 = vmatprep.mubr.bf16.mxu0 %v2523
  %2626 = vmatmul.mubr.bf16.gmra.mrb[0].mxu0 %v2522
  %v2627 = vpop.f32.mrb[0].mxu0
  %v2628 = vadd.f32 %v2579, %v2627
  %v2629 = vpop.f32.mrb[0].mxu0
  %v2630 = vpop.f32.mrb[0].mxu0
  %v2631 = vadd.f32 %v2582, %v2630
  %v2632 = vpop.f32.mrb[0].mxu0
  %2633 = vmatprep.mubr.bf16.mxu0 %v2530
  %2634 = vmatmul.mubr.bf16.gmra.mrb[0].mxu0 %v2529
  %v2635 = vpop.f32.mrb[0].mxu0
  %v2636 = vadd.f32 %v2587, %v2635
  %v2637 = vpop.f32.mrb[0].mxu0
  %v2638 = vpop.f32.mrb[0].mxu0
  %v2639 = vadd.f32 %v2590, %v2638
  %v2640 = vpop.f32.mrb[0].mxu0
  %2641 = vdwg.mxu0
  %2642 = vmatprep.subr.bf16.mxu0 0
  %2643 = vmatpush1.bf16.msra.mxu0 %v305
  %2644 = vmatprep.subr.bf16.mxu0 0
  %2645 = vmatpush1.bf16.msra.mxu0 %v306
  %2646 = vmatprep.subr.bf16.mxu0 0
  %2647 = vmatpush1.bf16.msra.mxu0 %v307
  %2648 = vmatprep.subr.bf16.mxu0 0
  %2649 = vmatpush1.bf16.msra.mxu0 %v308
  %2650 = vmatprep.subr.bf16.mxu0 0
  %2651 = vmatpush1.bf16.msra.mxu0 %v309
  %2652 = vmatprep.subr.bf16.mxu0 0
  %2653 = vmatpush1.bf16.msra.mxu0 %v310
  %2654 = vmatprep.subr.bf16.mxu0 0
  %2655 = vmatpush1.bf16.msra.mxu0 %v311
  %2656 = vmatprep.subr.bf16.mxu0 0
  %2657 = vmatpush1.bf16.msra.mxu0 %v312
  %2658 = vmatprep.subr.bf16.mxu0 0
  %2659 = vmatpush1.bf16.msra.mxu0 %v313
  %2660 = vmatprep.subr.bf16.mxu0 0
  %2661 = vmatpush1.bf16.msra.mxu0 %v314
  %2662 = vmatprep.subr.bf16.mxu0 0
  %2663 = vmatpush1.bf16.msra.mxu0 %v315
  %2664 = vmatprep.subr.bf16.mxu0 0
  %2665 = vmatpush1.bf16.msra.mxu0 %v316
  %2666 = vmatprep.subr.bf16.mxu0 0
  %2667 = vmatpush1.bf16.msra.mxu0 %v317
  %2668 = vmatprep.subr.bf16.mxu0 0
  %2669 = vmatpush1.bf16.msra.mxu0 %v318
  %2670 = vmatprep.subr.bf16.mxu0 0
  %2671 = vmatpush1.bf16.msra.mxu0 %v319
  %2672 = vmatprep.subr.bf16.mxu0 0
  %2673 = vmatpush1.bf16.msra.mxu0 %v320
  %2674 = vmatprep.mubr.bf16.mxu0 %v2525
  %2675 = vmatmul.mubr.bf16.gmra.mrb[0].mxu0 %v2524
  %v2676 = vpop.f32.mrb[0].mxu0
  %v2677 = vadd.f32 %v2628, %v2676
  %v2678 = vpop.f32.mrb[0].mxu0
  %v2679 = vpop.f32.mrb[0].mxu0
  %v2680 = vadd.f32 %v2631, %v2679
  %v2681 = vpop.f32.mrb[0].mxu0
  %2682 = vmatprep.mubr.bf16.mxu0 %v2532
  %2683 = vmatmul.mubr.bf16.gmra.mrb[0].mxu0 %v2531
  %v2684 = vpop.f32.mrb[0].mxu0
  %v2685 = vadd.f32 %v2636, %v2684
  %v2686 = vpop.f32.mrb[0].mxu0
  %v2687 = vpop.f32.mrb[0].mxu0
  %v2688 = vadd.f32 %v2639, %v2687
  %v2689 = vpop.f32.mrb[0].mxu0
  %2690 = vdwg.mxu0
  %2691 = vmatprep.subr.bf16.mxu0 0
  %2692 = vmatpush1.bf16.msra.mxu0 %v321
  %2693 = vmatprep.subr.bf16.mxu0 0
  %2694 = vmatpush1.bf16.msra.mxu0 %v322
  %2695 = vmatprep.subr.bf16.mxu0 0
  %2696 = vmatpush1.bf16.msra.mxu0 0
  %2697 = vmatprep.subr.bf16.mxu0 0
  %2698 = vmatpush1.bf16.msra.mxu0 0
  %2699 = vmatprep.subr.bf16.mxu0 0
  %2700 = vmatpush1.bf16.msra.mxu0 0
  %2701 = vmatprep.subr.bf16.mxu0 0
  %2702 = vmatpush1.bf16.msra.mxu0 0
  %2703 = vmatprep.subr.bf16.mxu0 0
  %2704 = vmatpush1.bf16.msra.mxu0 0
  %2705 = vmatprep.subr.bf16.mxu0 0
  %2706 = vmatpush1.bf16.msra.mxu0 0
  %2707 = vmatprep.subr.bf16.mxu0 0
  %2708 = vmatpush1.bf16.msra.mxu0 0
  %2709 = vmatprep.subr.bf16.mxu0 0
  %2710 = vmatpush1.bf16.msra.mxu0 0
  %2711 = vmatprep.subr.bf16.mxu0 0
  %2712 = vmatpush1.bf16.msra.mxu0 0
  %2713 = vmatprep.subr.bf16.mxu0 0
  %2714 = vmatpush1.bf16.msra.mxu0 0
  %2715 = vmatprep.subr.bf16.mxu0 0
  %2716 = vmatpush1.bf16.msra.mxu0 0
  %2717 = vmatprep.subr.bf16.mxu0 0
  %2718 = vmatpush1.bf16.msra.mxu0 0
  %2719 = vmatprep.subr.bf16.mxu0 0
  %2720 = vmatpush1.bf16.msra.mxu0 0
  %2721 = vmatprep.subr.bf16.mxu0 0
  %2722 = vmatpush1.bf16.msra.mxu0 0
  %2723 = vmatprep.mubr.bf16.mxu0 0
  %2724 = vmatmul.mubr.bf16.gmra.mrb[0].mxu0 %v2539
  %v2725 = vpop.f32.mrb[0].mxu0
  %v2726 = vadd.f32 %v2677, %v2725
  %v2727 = vpop.f32.mrb[0].mxu0
  %v2728 = vpop.f32.mrb[0].mxu0
  %v2729 = vadd.f32 %v2680, %v2728
  %v2730 = vpop.f32.mrb[0].mxu0
  %2731 = vmatprep.mubr.bf16.mxu0 0
  %2732 = vmatmul.mubr.bf16.gmra.mrb[0].mxu0 %v2542
  %v2733 = vpop.f32.mrb[0].mxu0
  %v2734 = vadd.f32 %v2685, %v2733
  %v2735 = vpop.f32.mrb[0].mxu0
  %v2736 = vpop.f32.mrb[0].mxu0
  %v2737 = vadd.f32 %v2688, %v2736
  %v2738 = vpop.f32.mrb[0].mxu0
  %2739 = vdwg.mxu0
  %vm2740 = vcmp.gt.f32.partialorder %v2414, 0.0
  %vm2741 = vcmp.gt.f32.partialorder %v2417, 0.0
  %vm2742 = vcmp.gt.f32.partialorder %v2422, 0.0
  %vm2743 = vcmp.gt.f32.partialorder %v2425, 0.0
  %v2744 = vsel %vm2740, %v2414, 0.0
  %v2745 = vsel %vm2741, %v2417, 0.0
  %v2746 = vsel %vm2742, %v2422, 0.0
  %v2747 = vsel %vm2743, %v2425, 0.0
  %v2748 = vsel %vm2740, %v2726, 0.0
  %v2749 = vsel %vm2741, %v2729, 0.0
  %v2750 = vsel %vm2742, %v2734, 0.0
  %v2751 = vsel %vm2743, %v2737, 0.0
  %vm2752 = vcmp.gt.f32.partialorder %v2744, %v2146
  %vm2753 = vcmp.gt.f32.partialorder %v2745, %v2147
  %vm2754 = vcmp.gt.f32.partialorder %v2746, %v2148
  %vm2755 = vcmp.gt.f32.partialorder %v2747, %v2149
  %v2756 = vsel %vm2752, %v2744, %v2146
  %v2757 = vsel %vm2753, %v2745, %v2147
  %v2758 = vsel %vm2754, %v2746, %v2148
  %v2759 = vsel %vm2755, %v2747, %v2149
  %v2760 = vsel %vm2752, %v2748, %v2150
  %v2761 = vsel %vm2753, %v2749, %v2151
  %v2762 = vsel %vm2754, %v2750, %v2152
  %v2763 = vsel %vm2755, %v2751, %v2153
  %vm2764 = vcmask 523264
  %2765 = vst.msk [vmem:[%s5] sm:$0xff] %vm2764, %v2756
  %2766 = vst.msk [vmem:[%s5 + $0x8] sm:$0xff] %vm2764, %v2757
  %2767 = vst.msk [vmem:[%s5 + $0x10] sm:$0xff] %vm2764, %v2758
  %2768 = vst.msk [vmem:[%s5 + $0x18] sm:$0xff] %vm2764, %v2759
  %2769 = vst.msk [vmem:[%s6] sm:$0xff] %vm2764, %v2760
  %2770 = vst.msk [vmem:[%s6 + $0x8] sm:$0xff] %vm2764, %v2761
  %2771 = vst.msk [vmem:[%s6 + $0x10] sm:$0xff] %vm2764, %v2762
  %2772 = vst.msk [vmem:[%s6 + $0x18] sm:$0xff] %vm2764, %v2763
  // Predicated region
  $region22: #{vdp_net_forward.4} parent=0 // pred_check
    _
  $region23: #{vdp_net_forward.4} parent=0 // pred_check_branch
    %2774 = sbr.rel (0) target = $region25
  $region24: #{vdp_net_forward.4} parent=0 // pred_region
    _
  $region25: #{vdp_net_forward.4} parent=0 // pred_fallthru
    _
  // Predicated region
  $region26: #{vdp_net_forward.4} parent=0 // pred_check
    _
  $region27: #{vdp_net_forward.4} parent=0 // pred_check_branch
    %2776 = sbr.rel (0) target = $region29
  $region28: #{vdp_net_forward.4} parent=0 // pred_region
    _
  $region29: #{vdp_net_forward.4} parent=0 // pred_fallthru
    _
  // Predicated region
  $region30: #{vdp_net_forward.4} parent=0 // pred_check
    _
  $region31: #{vdp_net_forward.4} parent=0 // pred_check_branch
    %2778 = sbr.rel (0) target = $region33
  $region32: #{vdp_net_forward.4} parent=0 // pred_region
    _
  $region33: #{vdp_net_forward.4} parent=0 // pred_fallthru
    _
  // Predicated region
  $region34: #{vdp_net_forward.4} parent=0 // pred_check
    _
  $region35: #{vdp_net_forward.4} parent=0 // pred_check_branch
    %2780 = sbr.rel (0) target = $region37
  $region36: #{vdp_net_forward.4} parent=0 // pred_region
    _
  $region37: #{vdp_net_forward.4} parent=0 // pred_fallthru
    _

// kernel: vdp_net_forward.5
$region0: #{vdp_net_forward.5}
  #allocation0 [shape = 'u32[]', space=smem, size = 0x4, offset = 0x4, fixed_abs, tag = 'smem constant byte address 0x4 - core index']
  #allocation1 [shape = 'u32[144,128]{1,0:T(1,128)}', space=vmem, size = 0x12000, scoped, tag = 'internal scratch']
  %s0 = inlined_call_operand.vmem [shape: f32[2,1024], index: 0, kind: input, shape index: {}]
  %s1 = inlined_call_operand.vmem [shape: f32[2,1024], index: 1, kind: input, shape index: {}]
  %s2 = inlined_call_operand.vmem [shape: f32[10,1024], index: 2, kind: input, shape index: {}]
  %s3 = inlined_call_operand.vmem [shape: f32[1,10], index: 3, kind: input, shape index: {}]
  %s4 = inlined_call_operand.vmem [shape: f32[1,10], index: 4, kind: input, shape index: {}]
  %s5 = inlined_call_operand.hbm [shape: f32[2,10], index: 5, kind: output, shape index: {0}]
  %s6 = inlined_call_operand.vmem [shape: f32[2,10,10], index: 6, kind: output, shape index: {1}]
  %7 = xla_tuple %s5, %s6
  %s8 = sld [smem:[#allocation0]]
  $region38: #{vdp_net_forward.5} parent=0
    _
  %s10 = ssub.s32 1, %s8
  %s11 = scalar_select 0, %s10, %s8
  $region1: #{vdp_net_forward.5} parent=0
    #allocation2 [shape = 'u8[1024]{0}', space=vmem, size = 0x400, scoped, tag = 'output window, operand 0, single buffered']
    #allocation3 [shape = 's32[1]{0}', space=sflag, size = 0x4, scoped, tag = 'scoped memory for vdp_net_forward.5']
    %12 = vsyncpa [#allocation3], 0
    // Predicated region
    $region2: #{vdp_net_forward.5} parent=1 // pred_check
      _
    $region3: #{vdp_net_forward.5} parent=1 // pred_check_branch
      %14 = sbr.rel (0) target = $region5
    $region4: #{vdp_net_forward.5} parent=1 // pred_region
      _
    $region5: #{vdp_net_forward.5} parent=1 // pred_fallthru
      _
    // Predicated region
    $region6: #{vdp_net_forward.5} parent=1 // pred_check
      _
    $region7: #{vdp_net_forward.5} parent=1 // pred_check_branch
      %16 = sbr.rel (0) target = $region9
    $region8: #{vdp_net_forward.5} parent=1 // pred_region
      _
    $region9: #{vdp_net_forward.5} parent=1 // pred_fallthru
      _
    // Predicated region
    $region10: #{vdp_net_forward.5} parent=1 // pred_check
      _
    $region11: #{vdp_net_forward.5} parent=1 // pred_check_branch
      %18 = sbr.rel (0) target = $region13
    $region12: #{vdp_net_forward.5} parent=1 // pred_region
      _
    $region13: #{vdp_net_forward.5} parent=1 // pred_fallthru
      _
    // Predicated region
    $region14: #{vdp_net_forward.5} parent=1 // pred_check
      _
    $region15: #{vdp_net_forward.5} parent=1 // pred_check_branch
      %20 = sbr.rel (0) target = $region17
    $region16: #{vdp_net_forward.5} parent=1 // pred_region
      _
    $region17: #{vdp_net_forward.5} parent=1 // pred_fallthru
      _
    // Predicated region
    $region18: #{vdp_net_forward.5} parent=1 // pred_check
      _
    $region19: #{vdp_net_forward.5} parent=1 // pred_check_branch
      %22 = sbr.rel (0) target = $region21
    $region20: #{vdp_net_forward.5} parent=1 // pred_region
      _
    $region21: #{vdp_net_forward.5} parent=1 // pred_fallthru
      _
    %v24 = vld [vmem:[%s0] sm:$0xff]
    %v25 = vld [vmem:[%s0 + $0x8] sm:$0xff]
    %v26 = vld [vmem:[%s1] sm:$0xff]
    %v27 = vld [vmem:[%s1 + $0x8] sm:$0xff]
    %v28 = vld [vmem:[%s2] sm:$0xff]
    %v29 = vld [vmem:[%s2 + $0x8] sm:$0xff]
    %v30 = vld [vmem:[%s2 + $0x10] sm:$0xff]
    %v31 = vld [vmem:[%s2 + $0x18] sm:$0xff]
    %v32 = vld [vmem:[%s2 + $0x20] sm:$0xff]
    %v33 = vld [vmem:[%s2 + $0x28] sm:$0xff]
    %v34 = vld [vmem:[%s2 + $0x30] sm:$0xff]
    %v35 = vld [vmem:[%s2 + $0x38] sm:$0xff]
    %v36 = vld [vmem:[%s2 + $0x40] sm:$0x3]
    %v37 = vld [vmem:[%s2 + $0x48] sm:$0x3]
    %v38 = vld [vmem:[%s2 + $0x50] sm:$0x3]
    %v39 = vld [vmem:[%s2 + $0x58] sm:$0x3]
    %v40 = vld [vmem:[%s2 + $0x60] sm:$0x3]
    %v41 = vld [vmem:[%s2 + $0x68] sm:$0x3]
    %v42 = vld [vmem:[%s2 + $0x70] sm:$0x3]
    %v43 = vld [vmem:[%s2 + $0x78] sm:$0x3]
    %v44 = vld [vmem:[%s3] sm:$0x1]
    %v45 = vld [vmem:[%s4] sm:$0x1]
    %v46 = vpack.c.bf16 %v36, %v28
    %v47 = vpack.c.bf16 %v37, %v29
    %v48 = vpack.c.bf16 %v38, %v30
    %v49 = vpack.c.bf16 %v39, %v31
    %v50 = vpack.c.bf16 %v40, %v32
    %v51 = vpack.c.bf16 %v41, %v33
    %v52 = vpack.c.bf16 %v42, %v34
    %v53 = vpack.c.bf16 %v43, %v35
    %v56 = vcombine.high %v24, %v24
    %v58 = vunpack.c.l.s4 1983009808
    %v59 = vunpack.c.0.s8 %v58
    %v60 = vlaneseq
    %v61 = vshrl.u32 %v60, 7
    %v62 = vsub.s32 %v59, %v61
    %v63 = vrot.slane %v24, %v62
    %v65 = vunpack.c.l.s4 1983009808
    %v66 = vunpack.c.0.s8 %v65
    %v67 = vlaneseq
    %v68 = vshrl.u32 %v67, 7
    %v69 = vsub.s32 %v66, %v68
    %v70 = vrot.slane %v56, %v69
    %v71 = vcombine.high %v63, %v63
    %v72 = vcombine.high %v70, %v70
    %v73 = vcombine.high %v25, %v25
    %v75 = vunpack.c.l.s4 1983009808
    %v76 = vunpack.c.0.s8 %v75
    %v77 = vlaneseq
    %v78 = vshrl.u32 %v77, 7
    %v79 = vsub.s32 %v76, %v78
    %v80 = vrot.slane %v25, %v79
    %v82 = vunpack.c.l.s4 1983009808
    %v83 = vunpack.c.0.s8 %v82
    %v84 = vlaneseq
    %v85 = vshrl.u32 %v84, 7
    %v86 = vsub.s32 %v83, %v85
    %v87 = vrot.slane %v73, %v86
    %v88 = vcombine.high %v80, %v80
    %v89 = vcombine.high %v87, %v87
    %v98 = vpack.c.bf16 %v63, %v63
    %v99 = vpack.c.bf16 %v71, %v71
    %v100 = vpack.c.bf16 %v70, %v70
    %v101 = vpack.c.bf16 %v72, %v72
    %v102 = vpack.c.bf16 %v80, %v80
    %v103 = vpack.c.bf16 %v88, %v88
    %v104 = vpack.c.bf16 %v87, %v87
    %v105 = vpack.c.bf16 %v89, %v89
    %v107 = vlaneseq
    %v108 = vshrl.u32 %v107, 7
    %v109 = vsub.s32 0, %v108
    %v110 = vrot.slane %v44, %v109
    %112 = vmatprep.subr.bf16.mxu0 %v47
    %113 = vmatpush1.bf16.xpose.msra.mxu0 %v46
    %114 = vmatprep.subr.bf16.mxu0 0
    %115 = vmatpush1.bf16.xpose.msra.mxu0 0
    %116 = vmatprep.subr.bf16.mxu0 0
    %117 = vmatpush1.bf16.xpose.msra.mxu0 0
    %118 = vmatprep.subr.bf16.mxu0 0
    %119 = vmatpush1.bf16.xpose.msra.mxu0 0
    %120 = vmatprep.subr.bf16.mxu0 0
    %121 = vmatpush1.bf16.xpose.msra.mxu0 0
    %122 = vmatprep.subr.bf16.mxu0 0
    %123 = vmatpush1.bf16.xpose.msra.mxu0 0
    %124 = vmatprep.subr.bf16.mxu0 0
    %125 = vmatpush1.bf16.xpose.msra.mxu0 0
    %126 = vmatprep.subr.bf16.mxu0 0
    %127 = vmatpush1.bf16.xpose.msra.mxu0 0
    %128 = vmatprep.subr.bf16.mxu0 0
    %129 = vmatpush1.bf16.xpose.msra.mxu0 0
    %130 = vmatprep.subr.bf16.mxu0 0
    %131 = vmatpush1.bf16.xpose.msra.mxu0 0
    %132 = vmatprep.subr.bf16.mxu0 0
    %133 = vmatpush1.bf16.xpose.msra.mxu0 0
    %134 = vmatprep.subr.bf16.mxu0 0
    %135 = vmatpush1.bf16.xpose.msra.mxu0 0
    %136 = vmatprep.subr.bf16.mxu0 0
    %137 = vmatpush1.bf16.xpose.msra.mxu0 0
    %138 = vmatprep.subr.bf16.mxu0 0
    %139 = vmatpush1.bf16.xpose.msra.mxu0 0
    %140 = vmatprep.subr.bf16.mxu0 0
    %141 = vmatpush1.bf16.xpose.msra.mxu0 0
    %142 = vmatprep.subr.bf16.mxu0 0
    %143 = vmatpush1.bf16.xpose.msra.mxu0 0
    %144 = vmatprep.mubr.bf16.mxu0 %v99
    %145 = vmatmul.mubr.bf16.gmra.mrb[0].mxu0 %v98
    %v146 = vpop.f32.mrb[0].mxu0
    %v147 = vadd.f32 %v110, %v146
    %v148 = vpop.f32.mrb[0].mxu0
    %v149 = vpop.f32.mrb[0].mxu0
    %v150 = vpop.f32.mrb[0].mxu0
    %151 = vdwg.mxu0
    %152 = vmatprep.subr.bf16.mxu0 %v49
    %153 = vmatpush1.bf16.xpose.msra.mxu0 %v48
    %154 = vmatprep.subr.bf16.mxu0 0
    %155 = vmatpush1.bf16.xpose.msra.mxu0 0
    %156 = vmatprep.subr.bf16.mxu0 0
    %157 = vmatpush1.bf16.xpose.msra.mxu0 0
    %158 = vmatprep.subr.bf16.mxu0 0
    %159 = vmatpush1.bf16.xpose.msra.mxu0 0
    %160 = vmatprep.subr.bf16.mxu0 0
    %161 = vmatpush1.bf16.xpose.msra.mxu0 0
    %162 = vmatprep.subr.bf16.mxu0 0
    %163 = vmatpush1.bf16.xpose.msra.mxu0 0
    %164 = vmatprep.subr.bf16.mxu0 0
    %165 = vmatpush1.bf16.xpose.msra.mxu0 0
    %166 = vmatprep.subr.bf16.mxu0 0
    %167 = vmatpush1.bf16.xpose.msra.mxu0 0
    %168 = vmatprep.subr.bf16.mxu0 0
    %169 = vmatpush1.bf16.xpose.msra.mxu0 0
    %170 = vmatprep.subr.bf16.mxu0 0
    %171 = vmatpush1.bf16.xpose.msra.mxu0 0
    %172 = vmatprep.subr.bf16.mxu0 0
    %173 = vmatpush1.bf16.xpose.msra.mxu0 0
    %174 = vmatprep.subr.bf16.mxu0 0
    %175 = vmatpush1.bf16.xpose.msra.mxu0 0
    %176 = vmatprep.subr.bf16.mxu0 0
    %177 = vmatpush1.bf16.xpose.msra.mxu0 0
    %178 = vmatprep.subr.bf16.mxu0 0
    %179 = vmatpush1.bf16.xpose.msra.mxu0 0
    %180 = vmatprep.subr.bf16.mxu0 0
    %181 = vmatpush1.bf16.xpose.msra.mxu0 0
    %182 = vmatprep.subr.bf16.mxu0 0
    %183 = vmatpush1.bf16.xpose.msra.mxu0 0
    %184 = vmatprep.mubr.bf16.mxu0 %v101
    %185 = vmatmul.mubr.bf16.gmra.mrb[0].mxu0 %v100
    %v186 = vpop.f32.mrb[0].mxu0
    %v187 = vadd.f32 %v147, %v186
    %v188 = vpop.f32.mrb[0].mxu0
    %v189 = vpop.f32.mrb[0].mxu0
    %v190 = vpop.f32.mrb[0].mxu0
    %191 = vdwg.mxu0
    %192 = vmatprep.subr.bf16.mxu0 %v51
    %193 = vmatpush1.bf16.xpose.msra.mxu0 %v50
    %194 = vmatprep.subr.bf16.mxu0 0
    %195 = vmatpush1.bf16.xpose.msra.mxu0 0
    %196 = vmatprep.subr.bf16.mxu0 0
    %197 = vmatpush1.bf16.xpose.msra.mxu0 0
    %198 = vmatprep.subr.bf16.mxu0 0
    %199 = vmatpush1.bf16.xpose.msra.mxu0 0
    %200 = vmatprep.subr.bf16.mxu0 0
    %201 = vmatpush1.bf16.xpose.msra.mxu0 0
    %202 = vmatprep.subr.bf16.mxu0 0
    %203 = vmatpush1.bf16.xpose.msra.mxu0 0
    %204 = vmatprep.subr.bf16.mxu0 0
    %205 = vmatpush1.bf16.xpose.msra.mxu0 0
    %206 = vmatprep.subr.bf16.mxu0 0
    %207 = vmatpush1.bf16.xpose.msra.mxu0 0
    %208 = vmatprep.subr.bf16.mxu0 0
    %209 = vmatpush1.bf16.xpose.msra.mxu0 0
    %210 = vmatprep.subr.bf16.mxu0 0
    %211 = vmatpush1.bf16.xpose.msra.mxu0 0
    %212 = vmatprep.subr.bf16.mxu0 0
    %213 = vmatpush1.bf16.xpose.msra.mxu0 0
    %214 = vmatprep.subr.bf16.mxu0 0
    %215 = vmatpush1.bf16.xpose.msra.mxu0 0
    %216 = vmatprep.subr.bf16.mxu0 0
    %217 = vmatpush1.bf16.xpose.msra.mxu0 0
    %218 = vmatprep.subr.bf16.mxu0 0
    %219 = vmatpush1.bf16.xpose.msra.mxu0 0
    %220 = vmatprep.subr.bf16.mxu0 0
    %221 = vmatpush1.bf16.xpose.msra.mxu0 0
    %222 = vmatprep.subr.bf16.mxu0 0
    %223 = vmatpush1.bf16.xpose.msra.mxu0 0
    %224 = vmatprep.mubr.bf16.mxu0 %v103
    %225 = vmatmul.mubr.bf16.gmra.mrb[0].mxu0 %v102
    %v226 = vpop.f32.mrb[0].mxu0
    %v227 = vadd.f32 %v187, %v226
    %v228 = vpop.f32.mrb[0].mxu0
    %v229 = vpop.f32.mrb[0].mxu0
    %v230 = vpop.f32.mrb[0].mxu0
    %231 = vdwg.mxu0
    %232 = vmatprep.subr.bf16.mxu0 %v53
    %233 = vmatpush1.bf16.xpose.msra.mxu0 %v52
    %234 = vmatprep.subr.bf16.mxu0 0
    %235 = vmatpush1.bf16.xpose.msra.mxu0 0
    %236 = vmatprep.subr.bf16.mxu0 0
    %237 = vmatpush1.bf16.xpose.msra.mxu0 0
    %238 = vmatprep.subr.bf16.mxu0 0
    %239 = vmatpush1.bf16.xpose.msra.mxu0 0
    %240 = vmatprep.subr.bf16.mxu0 0
    %241 = vmatpush1.bf16.xpose.msra.mxu0 0
    %242 = vmatprep.subr.bf16.mxu0 0
    %243 = vmatpush1.bf16.xpose.msra.mxu0 0
    %244 = vmatprep.subr.bf16.mxu0 0
    %245 = vmatpush1.bf16.xpose.msra.mxu0 0
    %246 = vmatprep.subr.bf16.mxu0 0
    %247 = vmatpush1.bf16.xpose.msra.mxu0 0
    %248 = vmatprep.subr.bf16.mxu0 0
    %249 = vmatpush1.bf16.xpose.msra.mxu0 0
    %250 = vmatprep.subr.bf16.mxu0 0
    %251 = vmatpush1.bf16.xpose.msra.mxu0 0
    %252 = vmatprep.subr.bf16.mxu0 0
    %253 = vmatpush1.bf16.xpose.msra.mxu0 0
    %254 = vmatprep.subr.bf16.mxu0 0
    %255 = vmatpush1.bf16.xpose.msra.mxu0 0
    %256 = vmatprep.subr.bf16.mxu0 0
    %257 = vmatpush1.bf16.xpose.msra.mxu0 0
    %258 = vmatprep.subr.bf16.mxu0 0
    %259 = vmatpush1.bf16.xpose.msra.mxu0 0
    %260 = vmatprep.subr.bf16.mxu0 0
    %261 = vmatpush1.bf16.xpose.msra.mxu0 0
    %262 = vmatprep.subr.bf16.mxu0 0
    %263 = vmatpush1.bf16.xpose.msra.mxu0 0
    %264 = vmatprep.mubr.bf16.mxu0 %v105
    %265 = vmatmul.mubr.bf16.gmra.mrb[0].mxu0 %v104
    %v266 = vpop.f32.mrb[0].mxu0
    %v267 = vadd.f32 %v227, %v266
    %v268 = vpop.f32.mrb[0].mxu0
    %v269 = vpop.f32.mrb[0].mxu0
    %v270 = vpop.f32.mrb[0].mxu0
    %271 = vdwg.mxu0
    %vm272 = vcmask 74752
    %v273 = vsel %vm272, %v267, -inf
    %274 = vmax.xlane.f32.xlu0 %v273
    %v275 = vpop.xlane.xlu0 %274
    %v276 = vsub.f32 %v267, %v275
    %v277 = vmul.f32 %v276, 1.442695
    %v278 = vpow.pop %v277
    %v279 = vsel %vm272, %v278, 0.0
    %280 = vadd.xlane.f32.xlu0 %v279
    %v281 = vpop.xlane.xlu0 %280
    %v282 = vrcp.pop %v281
    %v283 = vmul.f32 %v278, %v282
    %284 = vst.msk [vmem:[#allocation2] sm:$0x3] %vm272, %v283
    %v285 = vlaneseq
    %v286 = vshrl.u32 %v285, 7
    %v287 = vadd.s32 %v286, 8
    %v288 = vlaneseq
    %v289 = vand.u32 %v288, 127
    %vm290 = vcmp.eq.s32.totalorder %v286, %v289
    %vm291 = vcmp.eq.s32.totalorder %v287, %v289
    %v292 = vsel %vm290, 1, 0
    %v293 = vsel %vm291, 1, 0
    %v294 = vcvt.s32.f32 %v292
    %v295 = vcvt.s32.f32 %v293
    %v298 = vlaneseq
    %v299 = vshrl.u32 %v298, 7
    %v300 = vsub.s32 0, %v299
    %v301 = vrot.slane %v26, %v300
    %v302 = vlaneseq
    %v303 = vshrl.u32 %v302, 7
    %v304 = vsub.s32 2, %v303
    %v305 = vrot.slane %v26, %v304
    %v306 = vlaneseq
    %v307 = vshrl.u32 %v306, 7
    %v308 = vsub.s32 4, %v307
    %v309 = vrot.slane %v26, %v308
    %v310 = vlaneseq
    %v311 = vshrl.u32 %v310, 7
    %v312 = vsub.s32 6, %v311
    %v313 = vrot.slane %v26, %v312
    %v314 = vlaneseq
    %v315 = vshrl.u32 %v314, 7
    %v316 = vsub.s32 0, %v315
    %v317 = vrot.slane %v27, %v316
    %v318 = vlaneseq
    %v319 = vshrl.u32 %v318, 7
    %v320 = vsub.s32 2, %v319
    %v321 = vrot.slane %v27, %v320
    %v322 = vlaneseq
    %v323 = vshrl.u32 %v322, 7
    %v324 = vsub.s32 4, %v323
    %v325 = vrot.slane %v27, %v324
    %v326 = vlaneseq
    %v327 = vshrl.u32 %v326, 7
    %v328 = vsub.s32 6, %v327
    %v329 = vrot.slane %v27, %v328
    %vm338 = vcmask 1040384
    %v339 = vsel %vm338, %v301, 0.0
    %v340 = vsel %vm338, %v305, 0.0
    %v341 = vadd.f32 %v339, %v340
    %v342 = vsel %vm338, %v309, 0.0
    %v343 = vadd.f32 %v341, %v342
    %v344 = vsel %vm338, %v313, 0.0
    %v345 = vadd.f32 %v343, %v344
    %v346 = vsel %vm338, %v317, 0.0
    %v347 = vadd.f32 %v345, %v346
    %v348 = vsel %vm338, %v321, 0.0
    %v349 = vadd.f32 %v347, %v348
    %v350 = vsel %vm338, %v325, 0.0
    %v351 = vadd.f32 %v349, %v350
    %v352 = vsel %vm338, %v329, 0.0
    %v353 = vadd.f32 %v351, %v352
    %354 = vadd.xlane.f32.xlu0 %v353
    %v355 = vpop.xlane.xlu0 %354
    %s356 = vtos %v355
    %v357 = vmul.f32 %v24, %v24
    %v358 = vmul.f32 %v25, %v25
    %v361 = vlaneseq
    %v362 = vshrl.u32 %v361, 7
    %v363 = vsub.s32 0, %v362
    %v364 = vrot.slane %v357, %v363
    %v365 = vlaneseq
    %v366 = vshrl.u32 %v365, 7
    %v367 = vsub.s32 2, %v366
    %v368 = vrot.slane %v357, %v367
    %v369 = vlaneseq
    %v370 = vshrl.u32 %v369, 7
    %v371 = vsub.s32 4, %v370
    %v372 = vrot.slane %v357, %v371
    %v373 = vlaneseq
    %v374 = vshrl.u32 %v373, 7
    %v375 = vsub.s32 6, %v374
    %v376 = vrot.slane %v357, %v375
    %v377 = vlaneseq
    %v378 = vshrl.u32 %v377, 7
    %v379 = vsub.s32 0, %v378
    %v380 = vrot.slane %v358, %v379
    %v381 = vlaneseq
    %v382 = vshrl.u32 %v381, 7
    %v383 = vsub.s32 2, %v382
    %v384 = vrot.slane %v358, %v383
    %v385 = vlaneseq
    %v386 = vshrl.u32 %v385, 7
    %v387 = vsub.s32 4, %v386
    %v388 = vrot.slane %v358, %v387
    %v389 = vlaneseq
    %v390 = vshrl.u32 %v389, 7
    %v391 = vsub.s32 6, %v390
    %v392 = vrot.slane %v358, %v391
    %v401 = vsel %vm338, %v364, 0.0
    %v402 = vsel %vm338, %v368, 0.0
    %v403 = vadd.f32 %v401, %v402
    %v404 = vsel %vm338, %v372, 0.0
    %v405 = vadd.f32 %v403, %v404
    %v406 = vsel %vm338, %v376, 0.0
    %v407 = vadd.f32 %v405, %v406
    %v408 = vsel %vm338, %v380, 0.0
    %v409 = vadd.f32 %v407, %v408
    %v410 = vsel %vm338, %v384, 0.0
    %v411 = vadd.f32 %v409, %v410
    %v412 = vsel %vm338, %v388, 0.0
    %v413 = vadd.f32 %v411, %v412
    %v414 = vsel %vm338, %v392, 0.0
    %v415 = vadd.f32 %v413, %v414
    %416 = vadd.xlane.f32.xlu0 %v415
    %v417 = vpop.xlane.xlu0 %416
    %s418 = vtos %v417
    %s419 = sadd.f32 %s356, %s418
    %v420 = vlaneseq
    %v421 = vshrl.u32 %v420, 7
    %v422 = vsub.s32 0, %v421
    %v423 = vrot.slane %v301, %v422
    %v424 = vlaneseq
    %v425 = vshrl.u32 %v424, 7
    %v426 = vsub.s32 0, %v425
    %v427 = vrot.slane %v305, %v426
    %v428 = vlaneseq
    %v429 = vshrl.u32 %v428, 7
    %v430 = vsub.s32 0, %v429
    %v431 = vrot.slane %v309, %v430
    %v432 = vlaneseq
    %v433 = vshrl.u32 %v432, 7
    %v434 = vsub.s32 0, %v433
    %v435 = vrot.slane %v313, %v434
    %v436 = vlaneseq
    %v437 = vshrl.u32 %v436, 7
    %v438 = vsub.s32 0, %v437
    %v439 = vrot.slane %v317, %v438
    %v440 = vlaneseq
    %v441 = vshrl.u32 %v440, 7
    %v442 = vsub.s32 0, %v441
    %v443 = vrot.slane %v321, %v442
    %v444 = vlaneseq
    %v445 = vshrl.u32 %v444, 7
    %v446 = vsub.s32 0, %v445
    %v447 = vrot.slane %v325, %v446
    %v448 = vlaneseq
    %v449 = vshrl.u32 %v448, 7
    %v450 = vsub.s32 0, %v449
    %v451 = vrot.slane %v329, %v450
    %v452 = vmul.f32 %v28, %v423
    %v453 = vmul.f32 %v29, %v427
    %v454 = vmul.f32 %v30, %v431
    %v455 = vmul.f32 %v31, %v435
    %v456 = vmul.f32 %v32, %v439
    %v457 = vmul.f32 %v33, %v443
    %v458 = vmul.f32 %v34, %v447
    %v459 = vmul.f32 %v35, %v451
    %v460 = vmul.f32 %v36, %v423
    %v461 = vmul.f32 %v37, %v427
    %v462 = vmul.f32 %v38, %v431
    %v463 = vmul.f32 %v39, %v435
    %v464 = vmul.f32 %v40, %v439
    %v465 = vmul.f32 %v41, %v443
    %v466 = vmul.f32 %v42, %v447
    %v467 = vmul.f32 %v43, %v451
    %v468 = vpack.c.bf16 %v460, %v452
    %v469 = vpack.c.bf16 %v461, %v453
    %v470 = vpack.c.bf16 %v462, %v454
    %v471 = vpack.c.bf16 %v463, %v455
    %v472 = vpack.c.bf16 %v464, %v456
    %v473 = vpack.c.bf16 %v465, %v457
    %v474 = vpack.c.bf16 %v466, %v458
    %v475 = vpack.c.bf16 %v467, %v459
    %v476 = vstv %s419
    %v477 = vmul.f32 %v45, %v476
    %v479 = vlaneseq
    %v480 = vshrl.u32 %v479, 7
    %v481 = vsub.s32 0, %v480
    %v482 = vrot.slane %v477, %v481
    %v484 = vmul.f32 %v294, %v482
    %v485 = vmul.f32 %v295, %v482
    %486 = vmatprep.subr.bf16.mxu0 %v47
    %487 = vmatpush1.bf16.xpose.msra.mxu0 %v46
    %488 = vmatprep.subr.bf16.mxu0 0
    %489 = vmatpush1.bf16.xpose.msra.mxu0 0
    %490 = vmatprep.subr.bf16.mxu0 0
    %491 = vmatpush1.bf16.xpose.msra.mxu0 0
    %492 = vmatprep.subr.bf16.mxu0 0
    %493 = vmatpush1.bf16.xpose.msra.mxu0 0
    %494 = vmatprep.subr.bf16.mxu0 0
    %495 = vmatpush1.bf16.xpose.msra.mxu0 0
    %496 = vmatprep.subr.bf16.mxu0 0
    %497 = vmatpush1.bf16.xpose.msra.mxu0 0
    %498 = vmatprep.subr.bf16.mxu0 0
    %499 = vmatpush1.bf16.xpose.msra.mxu0 0
    %500 = vmatprep.subr.bf16.mxu0 0
    %501 = vmatpush1.bf16.xpose.msra.mxu0 0
    %502 = vmatprep.subr.bf16.mxu0 0
    %503 = vmatpush1.bf16.xpose.msra.mxu0 0
    %504 = vmatprep.subr.bf16.mxu0 0
    %505 = vmatpush1.bf16.xpose.msra.mxu0 0
    %506 = vmatprep.subr.bf16.mxu0 0
    %507 = vmatpush1.bf16.xpose.msra.mxu0 0
    %508 = vmatprep.subr.bf16.mxu0 0
    %509 = vmatpush1.bf16.xpose.msra.mxu0 0
    %510 = vmatprep.subr.bf16.mxu0 0
    %511 = vmatpush1.bf16.xpose.msra.mxu0 0
    %512 = vmatprep.subr.bf16.mxu0 0
    %513 = vmatpush1.bf16.xpose.msra.mxu0 0
    %514 = vmatprep.subr.bf16.mxu0 0
    %515 = vmatpush1.bf16.xpose.msra.mxu0 0
    %516 = vmatprep.subr.bf16.mxu0 0
    %517 = vmatpush1.bf16.xpose.msra.mxu0 0
    %518 = vmatprep.mubr.bf16.mxu0 %v469
    %519 = vmatmul.mubr.bf16.gmra.mrb[0].mxu0 %v468
    %v520 = vpop.f32.mrb[0].mxu0
    %v521 = vadd.f32 %v484, %v520
    %v522 = vpop.f32.mrb[0].mxu0
    %v523 = vpop.f32.mrb[0].mxu0
    %v524 = vadd.f32 %v485, %v523
    %v525 = vpop.f32.mrb[0].mxu0
    %526 = vdwg.mxu0
    %527 = vmatprep.subr.bf16.mxu0 %v49
    %528 = vmatpush1.bf16.xpose.msra.mxu0 %v48
    %529 = vmatprep.subr.bf16.mxu0 0
    %530 = vmatpush1.bf16.xpose.msra.mxu0 0
    %531 = vmatprep.subr.bf16.mxu0 0
    %532 = vmatpush1.bf16.xpose.msra.mxu0 0
    %533 = vmatprep.subr.bf16.mxu0 0
    %534 = vmatpush1.bf16.xpose.msra.mxu0 0
    %535 = vmatprep.subr.bf16.mxu0 0
    %536 = vmatpush1.bf16.xpose.msra.mxu0 0
    %537 = vmatprep.subr.bf16.mxu0 0
    %538 = vmatpush1.bf16.xpose.msra.mxu0 0
    %539 = vmatprep.subr.bf16.mxu0 0
    %540 = vmatpush1.bf16.xpose.msra.mxu0 0
    %541 = vmatprep.subr.bf16.mxu0 0
    %542 = vmatpush1.bf16.xpose.msra.mxu0 0
    %543 = vmatprep.subr.bf16.mxu0 0
    %544 = vmatpush1.bf16.xpose.msra.mxu0 0
    %545 = vmatprep.subr.bf16.mxu0 0
    %546 = vmatpush1.bf16.xpose.msra.mxu0 0
    %547 = vmatprep.subr.bf16.mxu0 0
    %548 = vmatpush1.bf16.xpose.msra.mxu0 0
    %549 = vmatprep.subr.bf16.mxu0 0
    %550 = vmatpush1.bf16.xpose.msra.mxu0 0
    %551 = vmatprep.subr.bf16.mxu0 0
    %552 = vmatpush1.bf16.xpose.msra.mxu0 0
    %553 = vmatprep.subr.bf16.mxu0 0
    %554 = vmatpush1.bf16.xpose.msra.mxu0 0
    %555 = vmatprep.subr.bf16.mxu0 0
    %556 = vmatpush1.bf16.xpose.msra.mxu0 0
    %557 = vmatprep.subr.bf16.mxu0 0
    %558 = vmatpush1.bf16.xpose.msra.mxu0 0
    %559 = vmatprep.mubr.bf16.mxu0 %v471
    %560 = vmatmul.mubr.bf16.gmra.mrb[0].mxu0 %v470
    %v561 = vpop.f32.mrb[0].mxu0
    %v562 = vadd.f32 %v521, %v561
    %v563 = vpop.f32.mrb[0].mxu0
    %v564 = vpop.f32.mrb[0].mxu0
    %v565 = vadd.f32 %v524, %v564
    %v566 = vpop.f32.mrb[0].mxu0
    %567 = vdwg.mxu0
    %568 = vmatprep.subr.bf16.mxu0 %v51
    %569 = vmatpush1.bf16.xpose.msra.mxu0 %v50
    %570 = vmatprep.subr.bf16.mxu0 0
    %571 = vmatpush1.bf16.xpose.msra.mxu0 0
    %572 = vmatprep.subr.bf16.mxu0 0
    %573 = vmatpush1.bf16.xpose.msra.mxu0 0
    %574 = vmatprep.subr.bf16.mxu0 0
    %575 = vmatpush1.bf16.xpose.msra.mxu0 0
    %576 = vmatprep.subr.bf16.mxu0 0
    %577 = vmatpush1.bf16.xpose.msra.mxu0 0
    %578 = vmatprep.subr.bf16.mxu0 0
    %579 = vmatpush1.bf16.xpose.msra.mxu0 0
    %580 = vmatprep.subr.bf16.mxu0 0
    %581 = vmatpush1.bf16.xpose.msra.mxu0 0
    %582 = vmatprep.subr.bf16.mxu0 0
    %583 = vmatpush1.bf16.xpose.msra.mxu0 0
    %584 = vmatprep.subr.bf16.mxu0 0
    %585 = vmatpush1.bf16.xpose.msra.mxu0 0
    %586 = vmatprep.subr.bf16.mxu0 0
    %587 = vmatpush1.bf16.xpose.msra.mxu0 0
    %588 = vmatprep.subr.bf16.mxu0 0
    %589 = vmatpush1.bf16.xpose.msra.mxu0 0
    %590 = vmatprep.subr.bf16.mxu0 0
    %591 = vmatpush1.bf16.xpose.msra.mxu0 0
    %592 = vmatprep.subr.bf16.mxu0 0
    %593 = vmatpush1.bf16.xpose.msra.mxu0 0
    %594 = vmatprep.subr.bf16.mxu0 0
    %595 = vmatpush1.bf16.xpose.msra.mxu0 0
    %596 = vmatprep.subr.bf16.mxu0 0
    %597 = vmatpush1.bf16.xpose.msra.mxu0 0
    %598 = vmatprep.subr.bf16.mxu0 0
    %599 = vmatpush1.bf16.xpose.msra.mxu0 0
    %600 = vmatprep.mubr.bf16.mxu0 %v473
    %601 = vmatmul.mubr.bf16.gmra.mrb[0].mxu0 %v472
    %v602 = vpop.f32.mrb[0].mxu0
    %v603 = vadd.f32 %v562, %v602
    %v604 = vpop.f32.mrb[0].mxu0
    %v605 = vpop.f32.mrb[0].mxu0
    %v606 = vadd.f32 %v565, %v605
    %v607 = vpop.f32.mrb[0].mxu0
    %608 = vdwg.mxu0
    %609 = vmatprep.subr.bf16.mxu0 %v53
    %610 = vmatpush1.bf16.xpose.msra.mxu0 %v52
    %611 = vmatprep.subr.bf16.mxu0 0
    %612 = vmatpush1.bf16.xpose.msra.mxu0 0
    %613 = vmatprep.subr.bf16.mxu0 0
    %614 = vmatpush1.bf16.xpose.msra.mxu0 0
    %615 = vmatprep.subr.bf16.mxu0 0
    %616 = vmatpush1.bf16.xpose.msra.mxu0 0
    %617 = vmatprep.subr.bf16.mxu0 0
    %618 = vmatpush1.bf16.xpose.msra.mxu0 0
    %619 = vmatprep.subr.bf16.mxu0 0
    %620 = vmatpush1.bf16.xpose.msra.mxu0 0
    %621 = vmatprep.subr.bf16.mxu0 0
    %622 = vmatpush1.bf16.xpose.msra.mxu0 0
    %623 = vmatprep.subr.bf16.mxu0 0
    %624 = vmatpush1.bf16.xpose.msra.mxu0 0
    %625 = vmatprep.subr.bf16.mxu0 0
    %626 = vmatpush1.bf16.xpose.msra.mxu0 0
    %627 = vmatprep.subr.bf16.mxu0 0
    %628 = vmatpush1.bf16.xpose.msra.mxu0 0
    %629 = vmatprep.subr.bf16.mxu0 0
    %630 = vmatpush1.bf16.xpose.msra.mxu0 0
    %631 = vmatprep.subr.bf16.mxu0 0
    %632 = vmatpush1.bf16.xpose.msra.mxu0 0
    %633 = vmatprep.subr.bf16.mxu0 0
    %634 = vmatpush1.bf16.xpose.msra.mxu0 0
    %635 = vmatprep.subr.bf16.mxu0 0
    %636 = vmatpush1.bf16.xpose.msra.mxu0 0
    %637 = vmatprep.subr.bf16.mxu0 0
    %638 = vmatpush1.bf16.xpose.msra.mxu0 0
    %639 = vmatprep.subr.bf16.mxu0 0
    %640 = vmatpush1.bf16.xpose.msra.mxu0 0
    %641 = vmatprep.mubr.bf16.mxu0 %v475
    %642 = vmatmul.mubr.bf16.gmra.mrb[0].mxu0 %v474
    %v643 = vpop.f32.mrb[0].mxu0
    %v644 = vadd.f32 %v603, %v643
    %v645 = vpop.f32.mrb[0].mxu0
    %v646 = vpop.f32.mrb[0].mxu0
    %v647 = vadd.f32 %v606, %v646
    %v648 = vpop.f32.mrb[0].mxu0
    %649 = vdwg.mxu0
    %v650 = vlaneseq
    %v651 = vshrl.u32 %v650, 7
    %v652 = vsub.s32 0, %v651
    %v653 = vrot.slane %v283, %v652
    %v654 = vmul.f32 %v294, %v653
    %v655 = vmul.f32 %v295, %v653
    %657 = vbcast.lane.b32.xlu0 %v653, 256
    %v658 = vpop.permute.xlu0 %657
    %s660 = sor.u32 256, 8
    %661 = vbcast.lane.b32.xlu0 %v653, %s660
    %v662 = vpop.permute.xlu0 %661
    %v663 = vmul.f32 %v658, %v653
    %v664 = vmul.f32 %v662, %v653
    %v665 = vsub.f32 %v654, %v663
    %v666 = vsub.f32 %v655, %v664
    %vm667 = vcmask 80896
    %v669 = vsel %vm667, %v644, 0
    %v672 = vsel %vm667, %v647, 0
    %vm674 = vcmask 1041408
    %v676 = vsel %vm674, %v666, 0
    %678 = vmatprep.subr.mxu0 0.0
    %679 = vmatpush1.msra.mxu0 %v665
    %680 = vmatprep.subr.mxu0 0.0
    %681 = vmatpush1.msra.mxu0 %v676
    %682 = vmatprep.subr.mxu0 0.0
    %683 = vmatpush1.msra.mxu0 0.0
    %684 = vmatprep.subr.mxu0 0.0
    %685 = vmatpush1.msra.mxu0 0.0
    %686 = vmatprep.subr.mxu0 0.0
    %687 = vmatpush1.msra.mxu0 0.0
    %688 = vmatprep.subr.mxu0 0.0
    %689 = vmatpush1.msra.mxu0 0.0
    %690 = vmatprep.subr.mxu0 0.0
    %691 = vmatpush1.msra.mxu0 0.0
    %692 = vmatprep.subr.mxu0 0.0
    %693 = vmatpush1.msra.mxu0 0.0
    %694 = vmatprep.subr.mxu0 0.0
    %695 = vmatpush1.msra.mxu0 0.0
    %696 = vmatprep.subr.mxu0 0.0
    %697 = vmatpush1.msra.mxu0 0.0
    %698 = vmatprep.subr.mxu0 0.0
    %699 = vmatpush1.msra.mxu0 0.0
    %700 = vmatprep.subr.mxu0 0.0
    %701 = vmatpush1.msra.mxu0 0.0
    %702 = vmatprep.subr.mxu0 0.0
    %703 = vmatpush1.msra.mxu0 0.0
    %704 = vmatprep.subr.mxu0 0.0
    %705 = vmatpush1.msra.mxu0 0.0
    %706 = vmatprep.subr.mxu0 0.0
    %707 = vmatpush1.msra.mxu0 0.0
    %708 = vmatprep.subr.mxu0 0.0
    %709 = vmatpush1.msra.mxu0 0.0
    %710 = vmatprep.subr.mxu0 0.0
    %711 = vmatpush1.msra.mxu0 0.0
    %712 = vmatprep.subr.mxu0 0.0
    %713 = vmatpush1.msra.mxu0 0.0
    %714 = vmatprep.subr.mxu0 0.0
    %715 = vmatpush1.msra.mxu0 0.0
    %716 = vmatprep.subr.mxu0 0.0
    %717 = vmatpush1.msra.mxu0 0.0
    %718 = vmatprep.subr.mxu0 0.0
    %719 = vmatpush1.msra.mxu0 0.0
    %720 = vmatprep.subr.mxu0 0.0
    %721 = vmatpush1.msra.mxu0 0.0
    %722 = vmatprep.subr.mxu0 0.0
    %723 = vmatpush1.msra.mxu0 0.0
    %724 = vmatprep.subr.mxu0 0.0
    %725 = vmatpush1.msra.mxu0 0.0
    %726 = vmatprep.subr.mxu0 0.0
    %727 = vmatpush1.msra.mxu0 0.0
    %728 = vmatprep.subr.mxu0 0.0
    %729 = vmatpush1.msra.mxu0 0.0
    %730 = vmatprep.subr.mxu0 0.0
    %731 = vmatpush1.msra.mxu0 0.0
    %732 = vmatprep.subr.mxu0 0.0
    %733 = vmatpush1.msra.mxu0 0.0
    %734 = vmatprep.subr.mxu0 0.0
    %735 = vmatpush1.msra.mxu0 0.0
    %736 = vmatprep.subr.mxu0 0.0
    %737 = vmatpush1.msra.mxu0 0.0
    %738 = vmatprep.subr.mxu0 0.0
    %739 = vmatpush1.msra.mxu0 0.0
    %740 = vmatprep.subr.mxu0 0.0
    %741 = vmatpush1.msra.mxu0 0.0
    %742 = vmatprep.mubr.f32.mxu0 0.0
    %743 = vmatmul.mubr.f32.gmra.mrb[0].mxu0 %v669
    %v744 = vpop.f32.mrb[0].mxu0
    %v745 = vadd.f32 0.0, %v744
    %v746 = vpop.f32.mrb[0].mxu0
    %747 = vmatprep.mubr.f32.mxu0 0.0
    %748 = vmatmul.mubr.f32.gmra.mrb[0].mxu0 %v672
    %v749 = vpop.f32.mrb[0].mxu0
    %v750 = vadd.f32 0.0, %v749
    %v751 = vpop.f32.mrb[0].mxu0
    %752 = vdwg.mxu0
    %v754 = vsel %vm667, %v665, 0
    %v756 = vsel %vm667, %v666, 0
    %v759 = vsel %vm674, %v750, 0
    %761 = vmatprep.subr.mxu0 0.0
    %762 = vmatpush1.msra.mxu0 %v745
    %763 = vmatprep.subr.mxu0 0.0
    %764 = vmatpush1.msra.mxu0 %v759
    %765 = vmatprep.subr.mxu0 0.0
    %766 = vmatpush1.msra.mxu0 0.0
    %767 = vmatprep.subr.mxu0 0.0
    %768 = vmatpush1.msra.mxu0 0.0
    %769 = vmatprep.subr.mxu0 0.0
    %770 = vmatpush1.msra.mxu0 0.0
    %771 = vmatprep.subr.mxu0 0.0
    %772 = vmatpush1.msra.mxu0 0.0
    %773 = vmatprep.subr.mxu0 0.0
    %774 = vmatpush1.msra.mxu0 0.0
    %775 = vmatprep.subr.mxu0 0.0
    %776 = vmatpush1.msra.mxu0 0.0
    %777 = vmatprep.subr.mxu0 0.0
    %778 = vmatpush1.msra.mxu0 0.0
    %779 = vmatprep.subr.mxu0 0.0
    %780 = vmatpush1.msra.mxu0 0.0
    %781 = vmatprep.subr.mxu0 0.0
    %782 = vmatpush1.msra.mxu0 0.0
    %783 = vmatprep.subr.mxu0 0.0
    %784 = vmatpush1.msra.mxu0 0.0
    %785 = vmatprep.subr.mxu0 0.0
    %786 = vmatpush1.msra.mxu0 0.0
    %787 = vmatprep.subr.mxu0 0.0
    %788 = vmatpush1.msra.mxu0 0.0
    %789 = vmatprep.subr.mxu0 0.0
    %790 = vmatpush1.msra.mxu0 0.0
    %791 = vmatprep.subr.mxu0 0.0
    %792 = vmatpush1.msra.mxu0 0.0
    %793 = vmatprep.subr.mxu0 0.0
    %794 = vmatpush1.msra.mxu0 0.0
    %795 = vmatprep.subr.mxu0 0.0
    %796 = vmatpush1.msra.mxu0 0.0
    %797 = vmatprep.subr.mxu0 0.0
    %798 = vmatpush1.msra.mxu0 0.0
    %799 = vmatprep.subr.mxu0 0.0
    %800 = vmatpush1.msra.mxu0 0.0
    %801 = vmatprep.subr.mxu0 0.0
    %802 = vmatpush1.msra.mxu0 0.0
    %803 = vmatprep.subr.mxu0 0.0
    %804 = vmatpush1.msra.mxu0 0.0
    %805 = vmatprep.subr.mxu0 0.0
    %806 = vmatpush1.msra.mxu0 0.0
    %807 = vmatprep.subr.mxu0 0.0
    %808 = vmatpush1.msra.mxu0 0.0
    %809 = vmatprep.subr.mxu0 0.0
    %810 = vmatpush1.msra.mxu0 0.0
    %811 = vmatprep.subr.mxu0 0.0
    %812 = vmatpush1.msra.mxu0 0.0
    %813 = vmatprep.subr.mxu0 0.0
    %814 = vmatpush1.msra.mxu0 0.0
    %815 = vmatprep.subr.mxu0 0.0
    %816 = vmatpush1.msra.mxu0 0.0
    %817 = vmatprep.subr.mxu0 0.0
    %818 = vmatpush1.msra.mxu0 0.0
    %819 = vmatprep.subr.mxu0 0.0
    %820 = vmatpush1.msra.mxu0 0.0
    %821 = vmatprep.subr.mxu0 0.0
    %822 = vmatpush1.msra.mxu0 0.0
    %823 = vmatprep.subr.mxu0 0.0
    %824 = vmatpush1.msra.mxu0 0.0
    %825 = vmatprep.mubr.f32.mxu0 0.0
    %826 = vmatmul.mubr.f32.gmra.mrb[0].mxu0 %v754
    %v827 = vpop.f32.mrb[0].mxu0
    %v828 = vadd.f32 0.0, %v827
    %v829 = vpop.f32.mrb[0].mxu0
    %830 = vmatprep.mubr.f32.mxu0 0.0
    %831 = vmatmul.mubr.f32.gmra.mrb[0].mxu0 %v756
    %v832 = vpop.f32.mrb[0].mxu0
    %v833 = vadd.f32 0.0, %v832
    %v834 = vpop.f32.mrb[0].mxu0
    %835 = vdwg.mxu0
    %836 = vst.msk [vmem:[%s6] sm:$0xff] %vm667, %v828
    %837 = vst.msk [vmem:[%s6 + $0x8] sm:$0x3] %vm272, %v833
    %v838 = vlaneseq
    %v839 = vshrl.u32 %v838, 7
    %v840 = vsub.s32 1, %v839
    %v841 = vrot.slane %v26, %v840
    %v842 = vlaneseq
    %v843 = vshrl.u32 %v842, 7
    %v844 = vsub.s32 3, %v843
    %v845 = vrot.slane %v26, %v844
    %v846 = vlaneseq
    %v847 = vshrl.u32 %v846, 7
    %v848 = vsub.s32 5, %v847
    %v849 = vrot.slane %v26, %v848
    %v850 = vlaneseq
    %v851 = vshrl.u32 %v850, 7
    %v852 = vsub.s32 7, %v851
    %v853 = vrot.slane %v26, %v852
    %v854 = vlaneseq
    %v855 = vshrl.u32 %v854, 7
    %v856 = vsub.s32 1, %v855
    %v857 = vrot.slane %v27, %v856
    %v858 = vlaneseq
    %v859 = vshrl.u32 %v858, 7
    %v860 = vsub.s32 3, %v859
    %v861 = vrot.slane %v27, %v860
    %v862 = vlaneseq
    %v863 = vshrl.u32 %v862, 7
    %v864 = vsub.s32 5, %v863
    %v865 = vrot.slane %v27, %v864
    %v866 = vlaneseq
    %v867 = vshrl.u32 %v866, 7
    %v868 = vsub.s32 7, %v867
    %v869 = vrot.slane %v27, %v868
    %vm878 = vcmask 1041409
    %v879 = vsel %vm878, %v841, 0.0
    %v880 = vsel %vm878, %v845, 0.0
    %v881 = vadd.f32 %v879, %v880
    %v882 = vsel %vm878, %v849, 0.0
    %v883 = vadd.f32 %v881, %v882
    %v884 = vsel %vm878, %v853, 0.0
    %v885 = vadd.f32 %v883, %v884
    %v886 = vsel %vm878, %v857, 0.0
    %v887 = vadd.f32 %v885, %v886
    %v888 = vsel %vm878, %v861, 0.0
    %v889 = vadd.f32 %v887, %v888
    %v890 = vsel %vm878, %v865, 0.0
    %v891 = vadd.f32 %v889, %v890
    %v892 = vsel %vm878, %v869, 0.0
    %v893 = vadd.f32 %v891, %v892
    %894 = vadd.xlane.f32.xlu0 %v893
    %v895 = vpop.xlane.xlu0 %894
    %v897 = vrot.slane %v895, 1
    %s899 = vtos %v897
    %v900 = vlaneseq
    %v901 = vshrl.u32 %v900, 7
    %v902 = vsub.s32 1, %v901
    %v903 = vrot.slane %v357, %v902
    %v904 = vlaneseq
    %v905 = vshrl.u32 %v904, 7
    %v906 = vsub.s32 3, %v905
    %v907 = vrot.slane %v357, %v906
    %v908 = vlaneseq
    %v909 = vshrl.u32 %v908, 7
    %v910 = vsub.s32 5, %v909
    %v911 = vrot.slane %v357, %v910
    %v912 = vlaneseq
    %v913 = vshrl.u32 %v912, 7
    %v914 = vsub.s32 7, %v913
    %v915 = vrot.slane %v357, %v914
    %v916 = vlaneseq
    %v917 = vshrl.u32 %v916, 7
    %v918 = vsub.s32 1, %v917
    %v919 = vrot.slane %v358, %v918
    %v920 = vlaneseq
    %v921 = vshrl.u32 %v920, 7
    %v922 = vsub.s32 3, %v921
    %v923 = vrot.slane %v358, %v922
    %v924 = vlaneseq
    %v925 = vshrl.u32 %v924, 7
    %v926 = vsub.s32 5, %v925
    %v927 = vrot.slane %v358, %v926
    %v928 = vlaneseq
    %v929 = vshrl.u32 %v928, 7
    %v930 = vsub.s32 7, %v929
    %v931 = vrot.slane %v358, %v930
    %v940 = vsel %vm878, %v903, 0.0
    %v941 = vsel %vm878, %v907, 0.0
    %v942 = vadd.f32 %v940, %v941
    %v943 = vsel %vm878, %v911, 0.0
    %v944 = vadd.f32 %v942, %v943
    %v945 = vsel %vm878, %v915, 0.0
    %v946 = vadd.f32 %v944, %v945
    %v947 = vsel %vm878, %v919, 0.0
    %v948 = vadd.f32 %v946, %v947
    %v949 = vsel %vm878, %v923, 0.0
    %v950 = vadd.f32 %v948, %v949
    %v951 = vsel %vm878, %v927, 0.0
    %v952 = vadd.f32 %v950, %v951
    %v953 = vsel %vm878, %v931, 0.0
    %v954 = vadd.f32 %v952, %v953
    %955 = vadd.xlane.f32.xlu0 %v954
    %v956 = vpop.xlane.xlu0 %955
    %v958 = vrot.slane %v956, 1
    %s960 = vtos %v958
    %s961 = sadd.f32 %s899, %s960
    %v962 = vlaneseq
    %v963 = vshrl.u32 %v962, 7
    %v964 = vsub.s32 1, %v963
    %v965 = vrot.slane %v841, %v964
    %v966 = vlaneseq
    %v967 = vshrl.u32 %v966, 7
    %v968 = vsub.s32 1, %v967
    %v969 = vrot.slane %v845, %v968
    %v970 = vlaneseq
    %v971 = vshrl.u32 %v970, 7
    %v972 = vsub.s32 1, %v971
    %v973 = vrot.slane %v849, %v972
    %v974 = vlaneseq
    %v975 = vshrl.u32 %v974, 7
    %v976 = vsub.s32 1, %v975
    %v977 = vrot.slane %v853, %v976
    %v978 = vlaneseq
    %v979 = vshrl.u32 %v978, 7
    %v980 = vsub.s32 1, %v979
    %v981 = vrot.slane %v857, %v980
    %v982 = vlaneseq
    %v983 = vshrl.u32 %v982, 7
    %v984 = vsub.s32 1, %v983
    %v985 = vrot.slane %v861, %v984
    %v986 = vlaneseq
    %v987 = vshrl.u32 %v986, 7
    %v988 = vsub.s32 1, %v987
    %v989 = vrot.slane %v865, %v988
    %v990 = vlaneseq
    %v991 = vshrl.u32 %v990, 7
    %v992 = vsub.s32 1, %v991
    %v993 = vrot.slane %v869, %v992
    %v994 = vmul.f32 %v28, %v965
    %v995 = vmul.f32 %v29, %v969
    %v996 = vmul.f32 %v30, %v973
    %v997 = vmul.f32 %v31, %v977
    %v998 = vmul.f32 %v32, %v981
    %v999 = vmul.f32 %v33, %v985
    %v1000 = vmul.f32 %v34, %v989
    %v1001 = vmul.f32 %v35, %v993
    %v1002 = vmul.f32 %v36, %v965
    %v1003 = vmul.f32 %v37, %v969
    %v1004 = vmul.f32 %v38, %v973
    %v1005 = vmul.f32 %v39, %v977
    %v1006 = vmul.f32 %v40, %v981
    %v1007 = vmul.f32 %v41, %v985
    %v1008 = vmul.f32 %v42, %v989
    %v1009 = vmul.f32 %v43, %v993
    %v1010 = vpack.c.bf16 %v1002, %v994
    %v1011 = vpack.c.bf16 %v1003, %v995
    %v1012 = vpack.c.bf16 %v1004, %v996
    %v1013 = vpack.c.bf16 %v1005, %v997
    %v1014 = vpack.c.bf16 %v1006, %v998
    %v1015 = vpack.c.bf16 %v1007, %v999
    %v1016 = vpack.c.bf16 %v1008, %v1000
    %v1017 = vpack.c.bf16 %v1009, %v1001
    %v1018 = vstv %s961
    %v1019 = vmul.f32 %v45, %v1018
    %v1021 = vlaneseq
    %v1022 = vshrl.u32 %v1021, 7
    %v1023 = vsub.s32 0, %v1022
    %v1024 = vrot.slane %v1019, %v1023
    %v1026 = vmul.f32 %v294, %v1024
    %v1027 = vmul.f32 %v295, %v1024
    %1028 = vmatprep.subr.bf16.mxu0 %v47
    %1029 = vmatpush1.bf16.xpose.msra.mxu0 %v46
    %1030 = vmatprep.subr.bf16.mxu0 0
    %1031 = vmatpush1.bf16.xpose.msra.mxu0 0
    %1032 = vmatprep.subr.bf16.mxu0 0
    %1033 = vmatpush1.bf16.xpose.msra.mxu0 0
    %1034 = vmatprep.subr.bf16.mxu0 0
    %1035 = vmatpush1.bf16.xpose.msra.mxu0 0
    %1036 = vmatprep.subr.bf16.mxu0 0
    %1037 = vmatpush1.bf16.xpose.msra.mxu0 0
    %1038 = vmatprep.subr.bf16.mxu0 0
    %1039 = vmatpush1.bf16.xpose.msra.mxu0 0
    %1040 = vmatprep.subr.bf16.mxu0 0
    %1041 = vmatpush1.bf16.xpose.msra.mxu0 0
    %1042 = vmatprep.subr.bf16.mxu0 0
    %1043 = vmatpush1.bf16.xpose.msra.mxu0 0
    %1044 = vmatprep.subr.bf16.mxu0 0
    %1045 = vmatpush1.bf16.xpose.msra.mxu0 0
    %1046 = vmatprep.subr.bf16.mxu0 0
    %1047 = vmatpush1.bf16.xpose.msra.mxu0 0
    %1048 = vmatprep.subr.bf16.mxu0 0
    %1049 = vmatpush1.bf16.xpose.msra.mxu0 0
    %1050 = vmatprep.subr.bf16.mxu0 0
    %1051 = vmatpush1.bf16.xpose.msra.mxu0 0
    %1052 = vmatprep.subr.bf16.mxu0 0
    %1053 = vmatpush1.bf16.xpose.msra.mxu0 0
    %1054 = vmatprep.subr.bf16.mxu0 0
    %1055 = vmatpush1.bf16.xpose.msra.mxu0 0
    %1056 = vmatprep.subr.bf16.mxu0 0
    %1057 = vmatpush1.bf16.xpose.msra.mxu0 0
    %1058 = vmatprep.subr.bf16.mxu0 0
    %1059 = vmatpush1.bf16.xpose.msra.mxu0 0
    %1060 = vmatprep.mubr.bf16.mxu0 %v1011
    %1061 = vmatmul.mubr.bf16.gmra.mrb[0].mxu0 %v1010
    %v1062 = vpop.f32.mrb[0].mxu0
    %v1063 = vadd.f32 %v1026, %v1062
    %v1064 = vpop.f32.mrb[0].mxu0
    %v1065 = vpop.f32.mrb[0].mxu0
    %v1066 = vadd.f32 %v1027, %v1065
    %v1067 = vpop.f32.mrb[0].mxu0
    %1068 = vdwg.mxu0
    %1069 = vmatprep.subr.bf16.mxu0 %v49
    %1070 = vmatpush1.bf16.xpose.msra.mxu0 %v48
    %1071 = vmatprep.subr.bf16.mxu0 0
    %1072 = vmatpush1.bf16.xpose.msra.mxu0 0
    %1073 = vmatprep.subr.bf16.mxu0 0
    %1074 = vmatpush1.bf16.xpose.msra.mxu0 0
    %1075 = vmatprep.subr.bf16.mxu0 0
    %1076 = vmatpush1.bf16.xpose.msra.mxu0 0
    %1077 = vmatprep.subr.bf16.mxu0 0
    %1078 = vmatpush1.bf16.xpose.msra.mxu0 0
    %1079 = vmatprep.subr.bf16.mxu0 0
    %1080 = vmatpush1.bf16.xpose.msra.mxu0 0
    %1081 = vmatprep.subr.bf16.mxu0 0
    %1082 = vmatpush1.bf16.xpose.msra.mxu0 0
    %1083 = vmatprep.subr.bf16.mxu0 0
    %1084 = vmatpush1.bf16.xpose.msra.mxu0 0
    %1085 = vmatprep.subr.bf16.mxu0 0
    %1086 = vmatpush1.bf16.xpose.msra.mxu0 0
    %1087 = vmatprep.subr.bf16.mxu0 0
    %1088 = vmatpush1.bf16.xpose.msra.mxu0 0
    %1089 = vmatprep.subr.bf16.mxu0 0
    %1090 = vmatpush1.bf16.xpose.msra.mxu0 0
    %1091 = vmatprep.subr.bf16.mxu0 0
    %1092 = vmatpush1.bf16.xpose.msra.mxu0 0
    %1093 = vmatprep.subr.bf16.mxu0 0
    %1094 = vmatpush1.bf16.xpose.msra.mxu0 0
    %1095 = vmatprep.subr.bf16.mxu0 0
    %1096 = vmatpush1.bf16.xpose.msra.mxu0 0
    %1097 = vmatprep.subr.bf16.mxu0 0
    %1098 = vmatpush1.bf16.xpose.msra.mxu0 0
    %1099 = vmatprep.subr.bf16.mxu0 0
    %1100 = vmatpush1.bf16.xpose.msra.mxu0 0
    %1101 = vmatprep.mubr.bf16.mxu0 %v1013
    %1102 = vmatmul.mubr.bf16.gmra.mrb[0].mxu0 %v1012
    %v1103 = vpop.f32.mrb[0].mxu0
    %v1104 = vadd.f32 %v1063, %v1103
    %v1105 = vpop.f32.mrb[0].mxu0
    %v1106 = vpop.f32.mrb[0].mxu0
    %v1107 = vadd.f32 %v1066, %v1106
    %v1108 = vpop.f32.mrb[0].mxu0
    %1109 = vdwg.mxu0
    %1110 = vmatprep.subr.bf16.mxu0 %v51
    %1111 = vmatpush1.bf16.xpose.msra.mxu0 %v50
    %1112 = vmatprep.subr.bf16.mxu0 0
    %1113 = vmatpush1.bf16.xpose.msra.mxu0 0
    %1114 = vmatprep.subr.bf16.mxu0 0
    %1115 = vmatpush1.bf16.xpose.msra.mxu0 0
    %1116 = vmatprep.subr.bf16.mxu0 0
    %1117 = vmatpush1.bf16.xpose.msra.mxu0 0
    %1118 = vmatprep.subr.bf16.mxu0 0
    %1119 = vmatpush1.bf16.xpose.msra.mxu0 0
    %1120 = vmatprep.subr.bf16.mxu0 0
    %1121 = vmatpush1.bf16.xpose.msra.mxu0 0
    %1122 = vmatprep.subr.bf16.mxu0 0
    %1123 = vmatpush1.bf16.xpose.msra.mxu0 0
    %1124 = vmatprep.subr.bf16.mxu0 0
    %1125 = vmatpush1.bf16.xpose.msra.mxu0 0
    %1126 = vmatprep.subr.bf16.mxu0 0
    %1127 = vmatpush1.bf16.xpose.msra.mxu0 0
    %1128 = vmatprep.subr.bf16.mxu0 0
    %1129 = vmatpush1.bf16.xpose.msra.mxu0 0
    %1130 = vmatprep.subr.bf16.mxu0 0
    %1131 = vmatpush1.bf16.xpose.msra.mxu0 0
    %1132 = vmatprep.subr.bf16.mxu0 0
    %1133 = vmatpush1.bf16.xpose.msra.mxu0 0
    %1134 = vmatprep.subr.bf16.mxu0 0
    %1135 = vmatpush1.bf16.xpose.msra.mxu0 0
    %1136 = vmatprep.subr.bf16.mxu0 0
    %1137 = vmatpush1.bf16.xpose.msra.mxu0 0
    %1138 = vmatprep.subr.bf16.mxu0 0
    %1139 = vmatpush1.bf16.xpose.msra.mxu0 0
    %1140 = vmatprep.subr.bf16.mxu0 0
    %1141 = vmatpush1.bf16.xpose.msra.mxu0 0
    %1142 = vmatprep.mubr.bf16.mxu0 %v1015
    %1143 = vmatmul.mubr.bf16.gmra.mrb[0].mxu0 %v1014
    %v1144 = vpop.f32.mrb[0].mxu0
    %v1145 = vadd.f32 %v1104, %v1144
    %v1146 = vpop.f32.mrb[0].mxu0
    %v1147 = vpop.f32.mrb[0].mxu0
    %v1148 = vadd.f32 %v1107, %v1147
    %v1149 = vpop.f32.mrb[0].mxu0
    %1150 = vdwg.mxu0
    %1151 = vmatprep.subr.bf16.mxu0 %v53
    %1152 = vmatpush1.bf16.xpose.msra.mxu0 %v52
    %1153 = vmatprep.subr.bf16.mxu0 0
    %1154 = vmatpush1.bf16.xpose.msra.mxu0 0
    %1155 = vmatprep.subr.bf16.mxu0 0
    %1156 = vmatpush1.bf16.xpose.msra.mxu0 0
    %1157 = vmatprep.subr.bf16.mxu0 0
    %1158 = vmatpush1.bf16.xpose.msra.mxu0 0
    %1159 = vmatprep.subr.bf16.mxu0 0
    %1160 = vmatpush1.bf16.xpose.msra.mxu0 0
    %1161 = vmatprep.subr.bf16.mxu0 0
    %1162 = vmatpush1.bf16.xpose.msra.mxu0 0
    %1163 = vmatprep.subr.bf16.mxu0 0
    %1164 = vmatpush1.bf16.xpose.msra.mxu0 0
    %1165 = vmatprep.subr.bf16.mxu0 0
    %1166 = vmatpush1.bf16.xpose.msra.mxu0 0
    %1167 = vmatprep.subr.bf16.mxu0 0
    %1168 = vmatpush1.bf16.xpose.msra.mxu0 0
    %1169 = vmatprep.subr.bf16.mxu0 0
    %1170 = vmatpush1.bf16.xpose.msra.mxu0 0
    %1171 = vmatprep.subr.bf16.mxu0 0
    %1172 = vmatpush1.bf16.xpose.msra.mxu0 0
    %1173 = vmatprep.subr.bf16.mxu0 0
    %1174 = vmatpush1.bf16.xpose.msra.mxu0 0
    %1175 = vmatprep.subr.bf16.mxu0 0
    %1176 = vmatpush1.bf16.xpose.msra.mxu0 0
    %1177 = vmatprep.subr.bf16.mxu0 0
    %1178 = vmatpush1.bf16.xpose.msra.mxu0 0
    %1179 = vmatprep.subr.bf16.mxu0 0
    %1180 = vmatpush1.bf16.xpose.msra.mxu0 0
    %1181 = vmatprep.subr.bf16.mxu0 0
    %1182 = vmatpush1.bf16.xpose.msra.mxu0 0
    %1183 = vmatprep.mubr.bf16.mxu0 %v1017
    %1184 = vmatmul.mubr.bf16.gmra.mrb[0].mxu0 %v1016
    %v1185 = vpop.f32.mrb[0].mxu0
    %v1186 = vadd.f32 %v1145, %v1185
    %v1187 = vpop.f32.mrb[0].mxu0
    %v1188 = vpop.f32.mrb[0].mxu0
    %v1189 = vadd.f32 %v1148, %v1188
    %v1190 = vpop.f32.mrb[0].mxu0
    %1191 = vdwg.mxu0
    %v1192 = vlaneseq
    %v1193 = vshrl.u32 %v1192, 7
    %v1194 = vsub.s32 1, %v1193
    %v1195 = vrot.slane %v283, %v1194
    %v1196 = vmul.f32 %v294, %v1195
    %v1197 = vmul.f32 %v295, %v1195
    %1199 = vbcast.lane.b32.xlu0 %v1195, 256
    %v1200 = vpop.permute.xlu0 %1199
    %s1202 = sor.u32 256, 8
    %1203 = vbcast.lane.b32.xlu0 %v1195, %s1202
    %v1204 = vpop.permute.xlu0 %1203
    %v1205 = vmul.f32 %v1200, %v1195
    %v1206 = vmul.f32 %v1204, %v1195
    %v1207 = vsub.f32 %v1196, %v1205
    %v1208 = vsub.f32 %v1197, %v1206
    %v1210 = vsel %vm667, %v1186, 0
    %v1213 = vsel %vm667, %v1189, 0
    %v1216 = vsel %vm674, %v1208, 0
    %1218 = vmatprep.subr.mxu0 0.0
    %1219 = vmatpush1.msra.mxu0 %v1207
    %1220 = vmatprep.subr.mxu0 0.0
    %1221 = vmatpush1.msra.mxu0 %v1216
    %1222 = vmatprep.subr.mxu0 0.0
    %1223 = vmatpush1.msra.mxu0 0.0
    %1224 = vmatprep.subr.mxu0 0.0
    %1225 = vmatpush1.msra.mxu0 0.0
    %1226 = vmatprep.subr.mxu0 0.0
    %1227 = vmatpush1.msra.mxu0 0.0
    %1228 = vmatprep.subr.mxu0 0.0
    %1229 = vmatpush1.msra.mxu0 0.0
    %1230 = vmatprep.subr.mxu0 0.0
    %1231 = vmatpush1.msra.mxu0 0.0
    %1232 = vmatprep.subr.mxu0 0.0
    %1233 = vmatpush1.msra.mxu0 0.0
    %1234 = vmatprep.subr.mxu0 0.0
    %1235 = vmatpush1.msra.mxu0 0.0
    %1236 = vmatprep.subr.mxu0 0.0
    %1237 = vmatpush1.msra.mxu0 0.0
    %1238 = vmatprep.subr.mxu0 0.0
    %1239 = vmatpush1.msra.mxu0 0.0
    %1240 = vmatprep.subr.mxu0 0.0
    %1241 = vmatpush1.msra.mxu0 0.0
    %1242 = vmatprep.subr.mxu0 0.0
    %1243 = vmatpush1.msra.mxu0 0.0
    %1244 = vmatprep.subr.mxu0 0.0
    %1245 = vmatpush1.msra.mxu0 0.0
    %1246 = vmatprep.subr.mxu0 0.0
    %1247 = vmatpush1.msra.mxu0 0.0
    %1248 = vmatprep.subr.mxu0 0.0
    %1249 = vmatpush1.msra.mxu0 0.0
    %1250 = vmatprep.subr.mxu0 0.0
    %1251 = vmatpush1.msra.mxu0 0.0
    %1252 = vmatprep.subr.mxu0 0.0
    %1253 = vmatpush1.msra.mxu0 0.0
    %1254 = vmatprep.subr.mxu0 0.0
    %1255 = vmatpush1.msra.mxu0 0.0
    %1256 = vmatprep.subr.mxu0 0.0
    %1257 = vmatpush1.msra.mxu0 0.0
    %1258 = vmatprep.subr.mxu0 0.0
    %1259 = vmatpush1.msra.mxu0 0.0
    %1260 = vmatprep.subr.mxu0 0.0
    %1261 = vmatpush1.msra.mxu0 0.0
    %1262 = vmatprep.subr.mxu0 0.0
    %1263 = vmatpush1.msra.mxu0 0.0
    %1264 = vmatprep.subr.mxu0 0.0
    %1265 = vmatpush1.msra.mxu0 0.0
    %1266 = vmatprep.subr.mxu0 0.0
    %1267 = vmatpush1.msra.mxu0 0.0
    %1268 = vmatprep.subr.mxu0 0.0
    %1269 = vmatpush1.msra.mxu0 0.0
    %1270 = vmatprep.subr.mxu0 0.0
    %1271 = vmatpush1.msra.mxu0 0.0
    %1272 = vmatprep.subr.mxu0 0.0
    %1273 = vmatpush1.msra.mxu0 0.0
    %1274 = vmatprep.subr.mxu0 0.0
    %1275 = vmatpush1.msra.mxu0 0.0
    %1276 = vmatprep.subr.mxu0 0.0
    %1277 = vmatpush1.msra.mxu0 0.0
    %1278 = vmatprep.subr.mxu0 0.0
    %1279 = vmatpush1.msra.mxu0 0.0
    %1280 = vmatprep.subr.mxu0 0.0
    %1281 = vmatpush1.msra.mxu0 0.0
    %1282 = vmatprep.mubr.f32.mxu0 0.0
    %1283 = vmatmul.mubr.f32.gmra.mrb[0].mxu0 %v1210
    %v1284 = vpop.f32.mrb[0].mxu0
    %v1285 = vadd.f32 0.0, %v1284
    %v1286 = vpop.f32.mrb[0].mxu0
    %1287 = vmatprep.mubr.f32.mxu0 0.0
    %1288 = vmatmul.mubr.f32.gmra.mrb[0].mxu0 %v1213
    %v1289 = vpop.f32.mrb[0].mxu0
    %v1290 = vadd.f32 0.0, %v1289
    %v1291 = vpop.f32.mrb[0].mxu0
    %1292 = vdwg.mxu0
    %v1294 = vsel %vm667, %v1207, 0
    %v1296 = vsel %vm667, %v1208, 0
    %v1299 = vsel %vm674, %v1290, 0
    %1301 = vmatprep.subr.mxu0 0.0
    %1302 = vmatpush1.msra.mxu0 %v1285
    %1303 = vmatprep.subr.mxu0 0.0
    %1304 = vmatpush1.msra.mxu0 %v1299
    %1305 = vmatprep.subr.mxu0 0.0
    %1306 = vmatpush1.msra.mxu0 0.0
    %1307 = vmatprep.subr.mxu0 0.0
    %1308 = vmatpush1.msra.mxu0 0.0
    %1309 = vmatprep.subr.mxu0 0.0
    %1310 = vmatpush1.msra.mxu0 0.0
    %1311 = vmatprep.subr.mxu0 0.0
    %1312 = vmatpush1.msra.mxu0 0.0
    %1313 = vmatprep.subr.mxu0 0.0
    %1314 = vmatpush1.msra.mxu0 0.0
    %1315 = vmatprep.subr.mxu0 0.0
    %1316 = vmatpush1.msra.mxu0 0.0
    %1317 = vmatprep.subr.mxu0 0.0
    %1318 = vmatpush1.msra.mxu0 0.0
    %1319 = vmatprep.subr.mxu0 0.0
    %1320 = vmatpush1.msra.mxu0 0.0
    %1321 = vmatprep.subr.mxu0 0.0
    %1322 = vmatpush1.msra.mxu0 0.0
    %1323 = vmatprep.subr.mxu0 0.0
    %1324 = vmatpush1.msra.mxu0 0.0
    %1325 = vmatprep.subr.mxu0 0.0
    %1326 = vmatpush1.msra.mxu0 0.0
    %1327 = vmatprep.subr.mxu0 0.0
    %1328 = vmatpush1.msra.mxu0 0.0
    %1329 = vmatprep.subr.mxu0 0.0
    %1330 = vmatpush1.msra.mxu0 0.0
    %1331 = vmatprep.subr.mxu0 0.0
    %1332 = vmatpush1.msra.mxu0 0.0
    %1333 = vmatprep.subr.mxu0 0.0
    %1334 = vmatpush1.msra.mxu0 0.0
    %1335 = vmatprep.subr.mxu0 0.0
    %1336 = vmatpush1.msra.mxu0 0.0
    %1337 = vmatprep.subr.mxu0 0.0
    %1338 = vmatpush1.msra.mxu0 0.0
    %1339 = vmatprep.subr.mxu0 0.0
    %1340 = vmatpush1.msra.mxu0 0.0
    %1341 = vmatprep.subr.mxu0 0.0
    %1342 = vmatpush1.msra.mxu0 0.0
    %1343 = vmatprep.subr.mxu0 0.0
    %1344 = vmatpush1.msra.mxu0 0.0
    %1345 = vmatprep.subr.mxu0 0.0
    %1346 = vmatpush1.msra.mxu0 0.0
    %1347 = vmatprep.subr.mxu0 0.0
    %1348 = vmatpush1.msra.mxu0 0.0
    %1349 = vmatprep.subr.mxu0 0.0
    %1350 = vmatpush1.msra.mxu0 0.0
    %1351 = vmatprep.subr.mxu0 0.0
    %1352 = vmatpush1.msra.mxu0 0.0
    %1353 = vmatprep.subr.mxu0 0.0
    %1354 = vmatpush1.msra.mxu0 0.0
    %1355 = vmatprep.subr.mxu0 0.0
    %1356 = vmatpush1.msra.mxu0 0.0
    %1357 = vmatprep.subr.mxu0 0.0
    %1358 = vmatpush1.msra.mxu0 0.0
    %1359 = vmatprep.subr.mxu0 0.0
    %1360 = vmatpush1.msra.mxu0 0.0
    %1361 = vmatprep.subr.mxu0 0.0
    %1362 = vmatpush1.msra.mxu0 0.0
    %1363 = vmatprep.subr.mxu0 0.0
    %1364 = vmatpush1.msra.mxu0 0.0
    %1365 = vmatprep.mubr.f32.mxu0 0.0
    %1366 = vmatmul.mubr.f32.gmra.mrb[0].mxu0 %v1294
    %v1367 = vpop.f32.mrb[0].mxu0
    %v1368 = vadd.f32 0.0, %v1367
    %v1369 = vpop.f32.mrb[0].mxu0
    %1370 = vmatprep.mubr.f32.mxu0 0.0
    %1371 = vmatmul.mubr.f32.gmra.mrb[0].mxu0 %v1296
    %v1372 = vpop.f32.mrb[0].mxu0
    %v1373 = vadd.f32 0.0, %v1372
    %v1374 = vpop.f32.mrb[0].mxu0
    %1375 = vdwg.mxu0
    %s1376 = scalar_lea.vmem %s6, 16
    %1377 = vst.msk [vmem:[%s1376] sm:$0xff] %vm667, %v1368
    %1378 = vst.msk [vmem:[%s1376 + $0x8] sm:$0x3] %vm272, %v1373
    // Predicated region
    $region22: #{vdp_net_forward.5} parent=1 // pred_check
      _
    $region23: #{vdp_net_forward.5} parent=1 // pred_check_branch
      %1380 = sbr.rel (0) target = $region25
    $region24: #{vdp_net_forward.5} parent=1 // pred_region
      %s1382 = ssub.s32 32, 32
      %1383 = vsyncadd [#allocation3], %s1382
      %s1385 = sshll.u32 [#allocation2], 4
      %s1386 = int_to_ptr.vmem [resolvable:$true] %s1385
      %1388 = dma.vmem_to_hbm [thread:$0]  %s1386, 32, %s5, [#allocation3]
    $region25: #{vdp_net_forward.5} parent=1 // pred_fallthru
      _
    // Predicated region
    $region26: #{vdp_net_forward.5} parent=1 // pred_check
      _
    $region27: #{vdp_net_forward.5} parent=1 // pred_check_branch
      %1390 = sbr.rel (0) target = $region29
    $region28: #{vdp_net_forward.5} parent=1 // pred_region
      _
    $region29: #{vdp_net_forward.5} parent=1 // pred_fallthru
      _
    // Predicated region
    $region30: #{vdp_net_forward.5} parent=1 // pred_check
      _
    $region31: #{vdp_net_forward.5} parent=1 // pred_check_branch
      %1392 = sbr.rel (0) target = $region33
    $region32: #{vdp_net_forward.5} parent=1 // pred_region
      %1393 = dma.done [#allocation3], 32
    $region33: #{vdp_net_forward.5} parent=1 // pred_fallthru
      _
    // Predicated region
    $region34: #{vdp_net_forward.5} parent=1 // pred_check
      _
    $region35: #{vdp_net_forward.5} parent=1 // pred_check_branch
      %1395 = sbr.rel (0) target = $region37
    $region36: #{vdp_net_forward.5} parent=1 // pred_region
      _
    $region37: #{vdp_net_forward.5} parent=1 // pred_fallthru
      _
    %1396 = vsyncpa [#allocation3], 1

</llo_original>
